<compile_context>
chip_gen: v6e
topology: v6e:2x2x1
jax: 0.10.0
libtpu: 0.0.40
codegen_flags: <defaults>
</compile_context>

<pallas_src>
import functools

import jax
import jax.numpy as jnp
from jax import lax
from jax.experimental import pallas as pl
from jax.experimental.pallas import tpu as pltpu

LANE = 128


def _round_up(x, m):
    return ((x + m - 1) // m) * m


def _pad2(a, rows, cols):
    return jnp.pad(a, ((0, rows - a.shape[0]), (0, cols - a.shape[1])))


def embed_sum(tables, idx):
    out = jnp.zeros((idx.shape[0], tables[0].shape[1]), jnp.float32)
    for f, tab in enumerate(tables):
        out = out + jnp.take(tab, idx[:, f], axis=0)
    return out


# ------------------------------ Pallas kernel ------------------------------ #
def gnn_graphpred_kernel(eps_ref, x0_ref, gsrc_ref, gdst_ref, eemb_ref,
                         w1_ref, w2_ref, vec_ref, pool_ref, wp_ref, bp_ref,
                         node_ref, pred_ref, *, d_pad):
    """Grid axis 0 = GNN layer.  node_ref is the VMEM-resident layer-to-layer carry.

    One grid step = one full GIN layer:
        h  = (1+eps)*x + scatter_add(relu(gather(x, src) + edge_emb))
        h  = BN( Linear2( ReLU( BN( Linear1(h) ) ) ) )
        x' = ReLU(h) for all but the last layer (dropout p=0 -> identity)
    The last step additionally does graph pooling + graph_pred_linear.
    """
    l = pl.program_id(0)
    n_layers = pl.num_programs(0)

    @pl.when(l == 0)
    def _init():
        node_ref[...] = x0_ref[...]

    x = node_ref[...]                                    # [N, Dp] f32 (resident carry)
    x_bf = x.astype(jnp.bfloat16)

    # --- message passing (bf16 MXU; 0/1 one-hot operators are exact in bf16) ---
    # gather: xj[e] = x[src[e]]
    xj = jnp.dot(gsrc_ref[...], x_bf, preferred_element_type=jnp.float32)        # [E, Dp]
    msg = jnp.maximum(xj + eemb_ref[...].astype(jnp.float32), 0.0)               # [E, Dp]
    # scatter-add: agg[n] = sum_{e: dst[e]==n} msg[e]   (transposed-LHS matmul)
    agg = lax.dot_general(gdst_ref[...], msg.astype(jnp.bfloat16),
                          (((0,), (0,)), ((), ())),
                          preferred_element_type=jnp.float32)                    # [N, Dp]
    h = (1.0 + eps_ref[l]) * x + agg

    # packed per-layer bias / BN vectors: rows 0..2 are Hp-wide, rows 3..5 Dp-wide
    vec = vec_ref[...]                                                           # [8, Hp]
    b1, g1, be1 = vec[0:1, :], vec[1:2, :], vec[2:3, :]
    b2, g2, be2 = vec[3:4, :d_pad], vec[4:5, :d_pad], vec[5:6, :d_pad]

    # --- MLP: Linear(D,2D) -> BatchNorm1d(2D) (train-mode stats) -> ReLU -> Linear(2D,D) ---
    h1 = jnp.dot(h, w1_ref[...], preferred_element_type=jnp.float32) + b1
    mu1 = jnp.mean(h1, axis=0, keepdims=True)
    d1 = h1 - mu1
    var1 = jnp.mean(d1 * d1, axis=0, keepdims=True)
    h1 = jnp.maximum(d1 * lax.rsqrt(var1 + 1e-5) * g1 + be1, 0.0)
    h2 = jnp.dot(h1, w2_ref[...], preferred_element_type=jnp.float32) + b2

    # --- outer BatchNorm1d(D), training-mode batch stats ---
    mu2 = jnp.mean(h2, axis=0, keepdims=True)
    d2 = h2 - mu2
    var2 = jnp.mean(d2 * d2, axis=0, keepdims=True)
    h2 = d2 * lax.rsqrt(var2 + 1e-5) * g2 + be2

    is_last = l == n_layers - 1

    @pl.when(jnp.logical_not(is_last))
    def _mid():
        node_ref[...] = jnp.maximum(h2, 0.0)

    @pl.when(is_last)
    def _last():
        node_ref[...] = h2
        # graph pooling (sum/mean encoded in pool matrix) + graph_pred_linear
        g = jnp.dot(pool_ref[...], h2, preferred_element_type=jnp.float32)       # [G, Dp]
        pred_ref[...] = jnp.dot(g, wp_ref[...],
                                preferred_element_type=jnp.float32) + bp_ref[...]


# ------------------------------ Pallas wrapper ------------------------------ #
def _vmem_limit_bytes():
    # v5e/v6e: 128 MiB physical -> ~100 MiB so larger dense operators stay resident;
    # v7x:      64 MiB physical -> capped around 56 MiB.
    try:
        cap = int(pltpu.get_tpu_info().vmem_capacity_bytes)
    except Exception:
        cap = 64 * 1024 * 1024  # conservative (v7x-sized) fallback
    return int(max(32 * 1024 * 1024, min(cap - 8 * 1024 * 1024, 100 * 1024 * 1024)))


def gnn_graphpred_forward(atom_x, edge_index, edge_attr, batch, params,
                          num_graphs, graph_pooling="mean"):
    N = atom_x.shape[0]
    E = edge_index.shape[1]
    D = params["atom_tables"][0].shape[1]
    T = params["pred_w"].shape[1]
    L = len(params["layers"])
    G = num_graphs
    Dp = max(LANE, _round_up(D, LANE))
    Hp = max(LANE, _round_up(2 * D, LANE))

    # Dense 0/1 gather / scatter operators, bf16 (exact).  Only the [E, N] layout is
    # shipped; the scatter is a transposed-LHS matmul inside the kernel.
    # TODO(synk): for large graphs (N,E >~ 1-2k) switch to the scalar-prefetch sparse
    #             path (PrefetchScalarGridSpec + pl.ds row gather + VMEM scatter-add):
    #             O(E*D) instead of O(E*N*D) and no dense-operator VMEM wall.
    # TODO(synk): on v7x store gsrc/gdst as fp8 (0/1 exact) to halve operator bytes again.
    gsrc = jax.nn.one_hot(edge_index[0], N, dtype=jnp.bfloat16)    # [E, N]
    gdst = jax.nn.one_hot(edge_index[1], N, dtype=jnp.bfloat16)    # [E, N]

    # graph pooling matrix [G, N]  (kept f32: mean weights 1/count are not bf16-exact)
    pmat = jax.nn.one_hot(batch, G, dtype=jnp.float32).T
    if graph_pooling == "mean":
        pmat = pmat / jnp.maximum(pmat.sum(axis=1, keepdims=True), 1.0)
    elif graph_pooling != "sum":
        raise ValueError("only sum/mean pooling implemented")  # TODO(synk): max/attention/set2set pooling

    x0 = _pad2(embed_sum(params["atom_tables"], atom_x), N, Dp)                  # [N, Dp]

    lys = params["layers"]
    eps = jnp.stack([lp["eps"] for lp in lys]).astype(jnp.float32)               # [L]
    eemb = jnp.stack([_pad2(embed_sum(lp["bond_tables"], edge_attr), E, Dp)
                      for lp in lys]).astype(jnp.bfloat16)                       # [L, E, Dp]
    w1 = jnp.stack([_pad2(lp["w1"], Dp, Hp) for lp in lys])                      # [L, Dp, Hp]
    w2 = jnp.stack([_pad2(lp["w2"], Hp, Dp) for lp in lys])                      # [L, Hp, Dp]

    def _row(v):                                                                 # -> [1, Hp]
        return jnp.pad(v.reshape(1, -1), ((0, 0), (0, Hp - v.shape[0])))

    # pack the 6 per-layer bias/BN vectors (+2 zero rows -> exactly 8 sublanes)
    vecs = jnp.stack([jnp.concatenate(
        [_row(lp["b1"]), _row(lp["g1"]), _row(lp["be1"]),
         _row(lp["b2"]), _row(lp["g2"]), _row(lp["be2"]),
         jnp.zeros((2, Hp), jnp.float32)], axis=0) for lp in lys])               # [L, 8, Hp]

    wp = _pad2(params["pred_w"], Dp, T)                                          # [Dp, T]
    bp = params["pred_b"].reshape(1, T)
    # TODO(synk): pad T toward 128 for lane-dense pred stores once num_tasks grows.

    args = (eps, x0, gsrc, gdst, eemb, w1, w2, vecs, pmat, wp, bp)
    kernel = functools.partial(gnn_graphpred_kernel, d_pad=Dp)

    def _build(single_buffer):
        def _const(shape):
            # layer-invariant operand: same block every grid step -> single-buffer it
            n = len(shape)
            kw = {"pipeline_mode": pl.Buffered(1)} if single_buffer else {}
            return pl.BlockSpec(shape, lambda l, n=n: (0,) * n, **kw)

        def _per_layer(tail):
            n = len(tail)
            return pl.BlockSpec((None,) + tail, lambda l, n=n: (l,) + (0,) * n)

        # TODO(synk): on v7x add a leading "parallel" grid axis over independent graph
        #             partitions to use both TensorCores -- requires eval-mode BN
        #             (running stats) or a cross-core stats reduction (CMEM/semaphores).
        return pl.pallas_call(
            kernel,
            out_shape=(jax.ShapeDtypeStruct((N, Dp), jnp.float32),
                       jax.ShapeDtypeStruct((G, T), jnp.float32)),
            grid=(L,),
            in_specs=[
                pl.BlockSpec(memory_space=pltpu.MemorySpace.SMEM),  # eps [L] (scalar path)
                _const((N, Dp)),        # x0
                _const((E, N)),         # gsrc (bf16)
                _const((E, N)),         # gdst (bf16)
                _per_layer((E, Dp)),    # per-layer edge embeddings (bf16)
                _per_layer((Dp, Hp)),   # w1
                _per_layer((Hp, Dp)),   # w2
                _per_layer((8, Hp)),    # packed b1/g1/be1/b2/g2/be2
                _const((G, N)),         # pooling matrix
                _const((Dp, T)),        # graph_pred_linear weight
                _const((1, T)),         # graph_pred_linear bias
            ],
            out_specs=(pl.BlockSpec((N, Dp), lambda l: (0, 0)),
                       pl.BlockSpec((G, T), lambda l: (0, 0))),
            compiler_params=pltpu.CompilerParams(
                dimension_semantics=("arbitrary",),
                vmem_limit_bytes=_vmem_limit_bytes()),
        )

    try:
        node_pad, pred = jax.block_until_ready(_build(True)(*args))
    except Exception:
        # installed jax rejects pipeline_mode=pl.Buffered(1) on pallas_call specs:
        # fall back to default double buffering (costs VMEM, not correctness).
        node_pad, pred = jax.block_until_ready(_build(False)(*args))

    return node_pad[:, :D], pred


# ---------------------------- pure-JAX reference ---------------------------- #
def gnn_graphpred_forward_ref(atom_x, edge_index, edge_attr, batch, params,
                              num_graphs, graph_pooling="mean"):
    N = atom_x.shape[0]
    gsrc = jax.nn.one_hot(edge_index[0], N, dtype=jnp.float32)
    sdst = jax.nn.one_hot(edge_index[1], N, dtype=jnp.float32).T
    h = embed_sum(params["atom_tables"], atom_x)
    L = len(params["layers"])
    for li, lp in enumerate(params["layers"]):
        e = embed_sum(lp["bond_tables"], edge_attr)
        msg = jnp.maximum(gsrc @ h + e, 0.0)
        agg = sdst @ msg
        z = (1.0 + lp["eps"]) * h + agg
        h1 = z @ lp["w1"] + lp["b1"]
        mu1 = h1.mean(0, keepdims=True)
        var1 = ((h1 - mu1) ** 2).mean(0, keepdims=True)
        h1 = jnp.maximum((h1 - mu1) / jnp.sqrt(var1 + 1e-5) * lp["g1"] + lp["be1"], 0.0)
        h2 = h1 @ lp["w2"] + lp["b2"]
        mu2 = h2.mean(0, keepdims=True)
        var2 = ((h2 - mu2) ** 2).mean(0, keepdims=True)
        h2 = (h2 - mu2) / jnp.sqrt(var2 + 1e-5) * lp["g2"] + lp["be2"]
        h = jnp.maximum(h2, 0.0) if li != L - 1 else h2
    pmat = jax.nn.one_hot(batch, num_graphs, dtype=jnp.float32).T
    if graph_pooling == "mean":
        pmat = pmat / jnp.maximum(pmat.sum(1, keepdims=True), 1.0)
    graph_rep = pmat @ h
    pred = graph_rep @ params["pred_w"] + params["pred_b"]
    return h, pred


# --------------------------- parameter construction -------------------------- #
def init_linear(key, fan_in, fan_out):
    kw, kb = jax.random.split(key)
    bound = 1.0 / float(fan_in) ** 0.5
    w = jax.random.uniform(kw, (fan_in, fan_out), jnp.float32, -bound, bound)
    b = jax.random.uniform(kb, (fan_out,), jnp.float32, -bound, bound)
    return w, b


def init_layer_params(key, emb_dim):
    k1, k2 = jax.random.split(key)
    w1, b1 = init_linear(k1, emb_dim, 2 * emb_dim)
    w2, b2 = init_linear(k2, 2 * emb_dim, emb_dim)
    return {
        "eps": jnp.zeros((), jnp.float32),                 # GINConv eps init = 0
        "w1": w1, "b1": b1, "w2": w2, "b2": b2,
        "g1": jnp.ones((2 * emb_dim,), jnp.float32),       # mlp BatchNorm1d(2D)
        "be1": jnp.zeros((2 * emb_dim,), jnp.float32),
        "g2": jnp.ones((emb_dim,), jnp.float32),           # outer BatchNorm1d(D)
        "be2": jnp.zeros((emb_dim,), jnp.float32),
    }


# ------------------------------------ main ----------------------------------- #
if __name__ == "__main__":
    num_layer = 2
    emb_dim = 32
    num_tasks = 1
    N, E, G = 32, 64, 4
    atom_vocab = [5, 4]       # 2 integer atom features
    bond_vocab = [4, 3]       # 2 integer bond features

    key = jax.random.PRNGKey(0)
    k_in, k_atom, k_bond, k_layers, k_pred = jax.random.split(key, 5)

    # deterministic synthetic graph inputs
    ka1, ka2, ka3 = jax.random.split(k_in, 3)
    atom_x = jnp.stack(
        [jax.random.randint(jax.random.fold_in(ka1, i), (N,), 0, v) for i, v in enumerate(atom_vocab)],
        axis=1).astype(jnp.int32)                                         # [N, 2]
    edge_index = jax.random.randint(ka2, (2, E), 0, N).astype(jnp.int32)  # [2, E]
    edge_attr = jnp.stack(
        [jax.random.randint(jax.random.fold_in(ka3, i), (E,), 0, v) for i, v in enumerate(bond_vocab)],
        axis=1).astype(jnp.int32)                                         # [E, 2]
    batch = jnp.repeat(jnp.arange(G, dtype=jnp.int32), N // G)            # [N]

    # deterministic parameters
    atom_tables = [0.1 * jax.random.normal(jax.random.fold_in(k_atom, i), (v, emb_dim), jnp.float32)
                   for i, v in enumerate(atom_vocab)]
    layers = []
    for l in range(num_layer):
        lp = init_layer_params(jax.random.fold_in(k_layers, l), emb_dim)
        lp["bond_tables"] = [
            0.1 * jax.random.normal(jax.random.fold_in(jax.random.fold_in(k_bond, l), i),
                                    (v, emb_dim), jnp.float32)
            for i, v in enumerate(bond_vocab)]
        layers.append(lp)
    pred_w, pred_b = init_linear(k_pred, emb_dim, num_tasks)
    params = {"atom_tables": atom_tables, "layers": layers,
              "pred_w": pred_w, "pred_b": pred_b}

    node_rep, pred = gnn_graphpred_forward(atom_x, edge_index, edge_attr, batch,
                                           params, num_graphs=G)
    pred = jax.block_until_ready(pred)
    node_rep = jax.block_until_ready(node_rep)

    node_ref, pred_ref = gnn_graphpred_forward_ref(atom_x, edge_index, edge_attr, batch,
                                                   params, num_graphs=G)
    node_ref = jax.block_until_ready(node_ref)
    pred_ref = jax.block_until_ready(pred_ref)

    assert node_rep.shape == (N, emb_dim)
    assert pred.shape == (G, num_tasks)
    # bf16 message-passing matmuls vs pure-f32 reference -> ~0.2-0.5% relative error,
    # hence the 3e-2 tolerance (accumulation is still f32).
    assert jnp.allclose(node_rep, node_ref, atol=3e-2, rtol=3e-2), "node rep mismatch vs JAX reference"
    assert jnp.allclose(pred, pred_ref, atol=3e-2, rtol=3e-2), "prediction mismatch vs JAX reference"
    print("KERNEL_OK")
</pallas_src>

<mosaic_0001>
module attributes {stable_mosaic.version = 11 : i64} {
  func.func @gnn_graphpred_kernel(%arg0: i32, %arg1: memref<2xf32, #tpu.memory_space<smem>>, %arg2: memref<32x128xf32, #tpu.memory_space<vmem>>, %arg3: memref<64x32xbf16, #tpu.memory_space<vmem>>, %arg4: memref<64x32xbf16, #tpu.memory_space<vmem>>, %arg5: memref<1x64x128xbf16, #tpu.memory_space<vmem>>, %arg6: memref<1x128x128xf32, #tpu.memory_space<vmem>>, %arg7: memref<1x128x128xf32, #tpu.memory_space<vmem>>, %arg8: memref<1x8x128xf32, #tpu.memory_space<vmem>>, %arg9: memref<4x32xf32, #tpu.memory_space<vmem>>, %arg10: memref<128x1xf32, #tpu.memory_space<vmem>>, %arg11: memref<1x1xf32, #tpu.memory_space<vmem>>, %arg12: memref<32x128xf32, #tpu.memory_space<vmem>>, %arg13: memref<4x1xf32, #tpu.memory_space<vmem>>) attributes {dimension_semantics = [#tpu.dimension_semantics<arbitrary>], iteration_bounds = array<i64: 2>, scalar_prefetch = 0 : i64, scratch_operands = 0 : i64, tpu.core_type = #tpu.core_type<tc>, window_params = [{transform_indices = @transform_0, window_bounds = array<i64: 2>}, {pipeline_mode = #tpu.pipeline_mode<synchronous>, transform_indices = @transform_1, window_bounds = array<i64: 32, 128>}, {pipeline_mode = #tpu.pipeline_mode<synchronous>, transform_indices = @transform_2, window_bounds = array<i64: 64, 32>}, {pipeline_mode = #tpu.pipeline_mode<synchronous>, transform_indices = @transform_3, window_bounds = array<i64: 64, 32>}, {transform_indices = @transform_4, window_bounds = array<i64: 1, 64, 128>}, {transform_indices = @transform_5, window_bounds = array<i64: 1, 128, 128>}, {transform_indices = @transform_6, window_bounds = array<i64: 1, 128, 128>}, {transform_indices = @transform_7, window_bounds = array<i64: 1, 8, 128>}, {pipeline_mode = #tpu.pipeline_mode<synchronous>, transform_indices = @transform_8, window_bounds = array<i64: 4, 32>}, {pipeline_mode = #tpu.pipeline_mode<synchronous>, transform_indices = @transform_9, window_bounds = array<i64: 128, 1>}, {pipeline_mode = #tpu.pipeline_mode<synchronous>, transform_indices = @transform_10, window_bounds = array<i64: 1, 1>}, {pipeline_mode = #tpu.pipeline_mode<synchronous>, transform_indices = @transform_11, window_bounds = array<i64: 32, 128>}, {pipeline_mode = #tpu.pipeline_mode<synchronous>, transform_indices = @transform_12, window_bounds = array<i64: 4, 1>}]} {
    %c0_i32 = arith.constant 0 : i32
    %0 = arith.cmpi eq, %arg0, %c0_i32 : i32
    %1 = arith.extui %0 : i1 to i32
    %c0_i32_0 = arith.constant 0 : i32
    %2 = arith.cmpi ne, %1, %c0_i32_0 : i32
    scf.if %2 {
      %c0_36 = arith.constant 0 : index
      %c0_37 = arith.constant 0 : index
      %88 = vector.load %arg2[%c0_36, %c0_37] : memref<32x128xf32, #tpu.memory_space<vmem>>, vector<32x128xf32>
      %c0_38 = arith.constant 0 : index
      %c0_39 = arith.constant 0 : index
      %89 = vector.load %arg12[%c0_38, %c0_39] : memref<32x128xf32, #tpu.memory_space<vmem>>, vector<32x128xf32>
      tpu.vector_store %arg12[%c0_38, %c0_39], %88 {strides = array<i32>} : memref<32x128xf32, #tpu.memory_space<vmem>>, vector<32x128xf32>,
    } else {
    }
    %c0 = arith.constant 0 : index
    %c0_1 = arith.constant 0 : index
    %3 = vector.load %arg12[%c0, %c0_1] : memref<32x128xf32, #tpu.memory_space<vmem>>, vector<32x128xf32>
    %4 = arith.truncf %3 : vector<32x128xf32> to vector<32x128xbf16>
    %c0_2 = arith.constant 0 : index
    %c0_3 = arith.constant 0 : index
    %5 = vector.load %arg3[%c0_2, %c0_3] : memref<64x32xbf16, #tpu.memory_space<vmem>>, vector<64x32xbf16>
    %cst = arith.constant dense<0.000000e+00> : vector<64x128xf32>
    %6 = tpu.matmul %5, %4, %cst {dimension_numbers = #tpu.dot_dimension_numbers<[1], [0], [0], [1], [0, 0, 1, 1], [], []>} : vector<64x32xbf16>, vector<32x128xbf16>, vector<64x128xf32> -> vector<64x128xf32>
    %c0_4 = arith.constant 0 : index
    %c0_5 = arith.constant 0 : index
    %c0_6 = arith.constant 0 : index
    %7 = vector.load %arg5[%c0_4, %c0_5, %c0_6] : memref<1x64x128xbf16, #tpu.memory_space<vmem>>, vector<1x64x128xbf16>
    %8 = vector.shape_cast %7 : vector<1x64x128xbf16> to vector<64x128xbf16>
    %9 = arith.extf %8 : vector<64x128xbf16> to vector<64x128xf32>
    %10 = arith.addf %6, %9 : vector<64x128xf32>
    %cst_7 = arith.constant 0.000000e+00 : f32
    %11 = vector.broadcast %cst_7 : f32 to vector<64x128xf32>
    %12 = arith.maximumf %10, %11 : vector<64x128xf32>
    %c0_8 = arith.constant 0 : index
    %c0_9 = arith.constant 0 : index
    %13 = vector.load %arg4[%c0_8, %c0_9] : memref<64x32xbf16, #tpu.memory_space<vmem>>, vector<64x32xbf16>
    %14 = arith.truncf %12 : vector<64x128xf32> to vector<64x128xbf16>
    %cst_10 = arith.constant dense<0.000000e+00> : vector<32x128xf32>
    %15 = tpu.matmul %13, %14, %cst_10 {dimension_numbers = #tpu.dot_dimension_numbers<[0], [0], [1], [1], [0, 1, 1, 1], [], []>} : vector<64x32xbf16>, vector<64x128xbf16>, vector<32x128xf32> -> vector<32x128xf32>
    %16 = arith.index_cast %arg0 : i32 to index
    %17 = memref.load %arg1[%16] : memref<2xf32, #tpu.memory_space<smem>>
    %cst_11 = arith.constant 1.000000e+00 : f32
    %18 = arith.addf %cst_11, %17 : f32
    %19 = vector.broadcast %18 : f32 to vector<32x128xf32>
    %20 = arith.mulf %19, %3 : vector<32x128xf32>
    %21 = arith.addf %20, %15 : vector<32x128xf32>
    %c0_12 = arith.constant 0 : index
    %c0_13 = arith.constant 0 : index
    %c0_14 = arith.constant 0 : index
    %22 = vector.load %arg8[%c0_12, %c0_13, %c0_14] : memref<1x8x128xf32, #tpu.memory_space<vmem>>, vector<1x8x128xf32>
    %23 = vector.shape_cast %22 : vector<1x8x128xf32> to vector<8x128xf32>
    %24 = vector.extract_strided_slice %23 {offsets = [0, 0], sizes = [1, 128], strides = [1, 1]} : vector<8x128xf32> to vector<1x128xf32>
    %25 = vector.extract_strided_slice %23 {offsets = [1, 0], sizes = [1, 128], strides = [1, 1]} : vector<8x128xf32> to vector<1x128xf32>
    %26 = vector.extract_strided_slice %23 {offsets = [2, 0], sizes = [1, 128], strides = [1, 1]} : vector<8x128xf32> to vector<1x128xf32>
    %27 = vector.extract_strided_slice %23 {offsets = [3, 0], sizes = [1, 128], strides = [1, 1]} : vector<8x128xf32> to vector<1x128xf32>
    %28 = vector.extract_strided_slice %23 {offsets = [4, 0], sizes = [1, 128], strides = [1, 1]} : vector<8x128xf32> to vector<1x128xf32>
    %29 = vector.extract_strided_slice %23 {offsets = [5, 0], sizes = [1, 128], strides = [1, 1]} : vector<8x128xf32> to vector<1x128xf32>
    %c0_15 = arith.constant 0 : index
    %c0_16 = arith.constant 0 : index
    %c0_17 = arith.constant 0 : index
    %30 = vector.load %arg6[%c0_15, %c0_16, %c0_17] : memref<1x128x128xf32, #tpu.memory_space<vmem>>, vector<1x128x128xf32>
    %31 = vector.shape_cast %30 : vector<1x128x128xf32> to vector<128x128xf32>
    %cst_18 = arith.constant dense<0.000000e+00> : vector<32x128xf32>
    %32 = tpu.matmul %21, %31, %cst_18 {dimension_numbers = #tpu.dot_dimension_numbers<[1], [0], [0], [1], [0, 0, 1, 1], [], []>} : vector<32x128xf32>, vector<128x128xf32>, vector<32x128xf32> -> vector<32x128xf32>
    %33 = vector.broadcast %24 : vector<1x128xf32> to vector<32x128xf32>
    %34 = arith.addf %32, %33 : vector<32x128xf32>
    %cst_19 = arith.constant dense<0.000000e+00> : vector<128xf32>
    %35 = vector.multi_reduction <add>, %34, %cst_19 [0] : vector<32x128xf32> to vector<128xf32>
    %36 = vector.shape_cast %35 : vector<128xf32> to vector<1x128xf32>
    %cst_20 = arith.constant 3.200000e+01 : f32
    %37 = vector.broadcast %cst_20 : f32 to vector<1x128xf32>
    %38 = arith.divf %36, %37 : vector<1x128xf32>
    %39 = vector.broadcast %38 : vector<1x128xf32> to vector<32x128xf32>
    %40 = arith.subf %34, %39 : vector<32x128xf32>
    %41 = arith.mulf %40, %40 : vector<32x128xf32>
    %cst_21 = arith.constant dense<0.000000e+00> : vector<128xf32>
    %42 = vector.multi_reduction <add>, %41, %cst_21 [0] : vector<32x128xf32> to vector<128xf32>
    %43 = vector.shape_cast %42 : vector<128xf32> to vector<1x128xf32>
    %cst_22 = arith.constant 3.200000e+01 : f32
    %44 = vector.broadcast %cst_22 : f32 to vector<1x128xf32>
    %45 = arith.divf %43, %44 : vector<1x128xf32>
    %cst_23 = arith.constant 9.99999974E-6 : f32
    %46 = vector.broadcast %cst_23 : f32 to vector<1x128xf32>
    %47 = arith.addf %45, %46 : vector<1x128xf32>
    %48 = math.rsqrt %47 : vector<1x128xf32>
    %49 = vector.broadcast %48 : vector<1x128xf32> to vector<32x128xf32>
    %50 = arith.mulf %40, %49 : vector<32x128xf32>
    %51 = vector.broadcast %25 : vector<1x128xf32> to vector<32x128xf32>
    %52 = arith.mulf %50, %51 : vector<32x128xf32>
    %53 = vector.broadcast %26 : vector<1x128xf32> to vector<32x128xf32>
    %54 = arith.addf %52, %53 : vector<32x128xf32>
    %cst_24 = arith.constant 0.000000e+00 : f32
    %55 = vector.broadcast %cst_24 : f32 to vector<32x128xf32>
    %56 = arith.maximumf %54, %55 : vector<32x128xf32>
    %c0_25 = arith.constant 0 : index
    %c0_26 = arith.constant 0 : index
    %c0_27 = arith.constant 0 : index
    %57 = vector.load %arg7[%c0_25, %c0_26, %c0_27] : memref<1x128x128xf32, #tpu.memory_space<vmem>>, vector<1x128x128xf32>
    %58 = vector.shape_cast %57 : vector<1x128x128xf32> to vector<128x128xf32>
    %cst_28 = arith.constant dense<0.000000e+00> : vector<32x128xf32>
    %59 = tpu.matmul %56, %58, %cst_28 {dimension_numbers = #tpu.dot_dimension_numbers<[1], [0], [0], [1], [0, 0, 1, 1], [], []>} : vector<32x128xf32>, vector<128x128xf32>, vector<32x128xf32> -> vector<32x128xf32>
    %60 = vector.broadcast %27 : vector<1x128xf32> to vector<32x128xf32>
    %61 = arith.addf %59, %60 : vector<32x128xf32>
    %cst_29 = arith.constant dense<0.000000e+00> : vector<128xf32>
    %62 = vector.multi_reduction <add>, %61, %cst_29 [0] : vector<32x128xf32> to vector<128xf32>
    %63 = vector.shape_cast %62 : vector<128xf32> to vector<1x128xf32>
    %cst_30 = arith.constant 3.200000e+01 : f32
    %64 = vector.broadcast %cst_30 : f32 to vector<1x128xf32>
    %65 = arith.divf %63, %64 : vector<1x128xf32>
    %66 = vector.broadcast %65 : vector<1x128xf32> to vector<32x128xf32>
    %67 = arith.subf %61, %66 : vector<32x128xf32>
    %68 = arith.mulf %67, %67 : vector<32x128xf32>
    %cst_31 = arith.constant dense<0.000000e+00> : vector<128xf32>
    %69 = vector.multi_reduction <add>, %68, %cst_31 [0] : vector<32x128xf32> to vector<128xf32>
    %70 = vector.shape_cast %69 : vector<128xf32> to vector<1x128xf32>
    %cst_32 = arith.constant 3.200000e+01 : f32
    %71 = vector.broadcast %cst_32 : f32 to vector<1x128xf32>
    %72 = arith.divf %70, %71 : vector<1x128xf32>
    %cst_33 = arith.constant 9.99999974E-6 : f32
    %73 = vector.broadcast %cst_33 : f32 to vector<1x128xf32>
    %74 = arith.addf %72, %73 : vector<1x128xf32>
    %75 = math.rsqrt %74 : vector<1x128xf32>
    %76 = vector.broadcast %75 : vector<1x128xf32> to vector<32x128xf32>
    %77 = arith.mulf %67, %76 : vector<32x128xf32>
    %78 = vector.broadcast %28 : vector<1x128xf32> to vector<32x128xf32>
    %79 = arith.mulf %77, %78 : vector<32x128xf32>
    %80 = vector.broadcast %29 : vector<1x128xf32> to vector<32x128xf32>
    %81 = arith.addf %79, %80 : vector<32x128xf32>
    %c1_i32 = arith.constant 1 : i32
    %82 = arith.cmpi eq, %arg0, %c1_i32 : i32
    %true = arith.constant true
    %83 = arith.xori %82, %true : i1
    %84 = arith.extui %83 : i1 to i32
    %c0_i32_34 = arith.constant 0 : i32
    %85 = arith.cmpi ne, %84, %c0_i32_34 : i32
    scf.if %85 {
      %cst_36 = arith.constant 0.000000e+00 : f32
      %88 = vector.broadcast %cst_36 : f32 to vector<32x128xf32>
      %89 = arith.maximumf %81, %88 : vector<32x128xf32>
      %c0_37 = arith.constant 0 : index
      %c0_38 = arith.constant 0 : index
      %90 = vector.load %arg12[%c0_37, %c0_38] : memref<32x128xf32, #tpu.memory_space<vmem>>, vector<32x128xf32>
      tpu.vector_store %arg12[%c0_37, %c0_38], %89 {strides = array<i32>} : memref<32x128xf32, #tpu.memory_space<vmem>>, vector<32x128xf32>,
    } else {
    }
    %86 = arith.extui %82 : i1 to i32
    %c0_i32_35 = arith.constant 0 : i32
    %87 = arith.cmpi ne, %86, %c0_i32_35 : i32
    scf.if %87 {
      %c0_36 = arith.constant 0 : index
      %c0_37 = arith.constant 0 : index
      %88 = vector.load %arg12[%c0_36, %c0_37] : memref<32x128xf32, #tpu.memory_space<vmem>>, vector<32x128xf32>
      tpu.vector_store %arg12[%c0_36, %c0_37], %81 {strides = array<i32>} : memref<32x128xf32, #tpu.memory_space<vmem>>, vector<32x128xf32>,
      %c0_38 = arith.constant 0 : index
      %c0_39 = arith.constant 0 : index
      %89 = vector.load %arg9[%c0_38, %c0_39] : memref<4x32xf32, #tpu.memory_space<vmem>>, vector<4x32xf32>
      %cst_40 = arith.constant dense<0.000000e+00> : vector<4x128xf32>
      %90 = tpu.matmul %89, %81, %cst_40 {dimension_numbers = #tpu.dot_dimension_numbers<[1], [0], [0], [1], [0, 0, 1, 1], [], []>} : vector<4x32xf32>, vector<32x128xf32>, vector<4x128xf32> -> vector<4x128xf32>
      %c0_41 = arith.constant 0 : index
      %c0_42 = arith.constant 0 : index
      %91 = vector.load %arg10[%c0_41, %c0_42] : memref<128x1xf32, #tpu.memory_space<vmem>>, vector<128x1xf32>
      %cst_43 = arith.constant dense<0.000000e+00> : vector<4x1xf32>
      %92 = tpu.matmul %90, %91, %cst_43 {dimension_numbers = #tpu.dot_dimension_numbers<[1], [0], [0], [1], [0, 0, 1, 1], [], []>} : vector<4x128xf32>, vector<128x1xf32>, vector<4x1xf32> -> vector<4x1xf32>
      %c0_44 = arith.constant 0 : index
      %c0_45 = arith.constant 0 : index
      %93 = vector.load %arg11[%c0_44, %c0_45] : memref<1x1xf32, #tpu.memory_space<vmem>>, vector<1x1xf32>
      %94 = vector.broadcast %93 : vector<1x1xf32> to vector<4x1xf32>
      %95 = arith.addf %92, %94 : vector<4x1xf32>
      %c0_46 = arith.constant 0 : index
      %c0_47 = arith.constant 0 : index
      %96 = vector.load %arg13[%c0_46, %c0_47] : memref<4x1xf32, #tpu.memory_space<vmem>>, vector<4x1xf32>
      tpu.vector_store %arg13[%c0_46, %c0_47], %95 {strides = array<i32>} : memref<4x1xf32, #tpu.memory_space<vmem>>, vector<4x1xf32>,
    } else {
    }
    return
  }
  func.func @transform_0(%arg0: i32) -> i32 {
    %c0_i32 = arith.constant 0 : i32
    %c0_i32_0 = arith.constant 0 : i32
    return %c0_i32 : i32
  }
  func.func @transform_1(%arg0: i32) -> (i32, i32) {
    %c0_i32 = arith.constant 0 : i32
    %c0_i32_0 = arith.constant 0 : i32
    %c0_i32_1 = arith.constant 0 : i32
    return %c0_i32, %c0_i32_0 : i32, i32
  }
  func.func @transform_2(%arg0: i32) -> (i32, i32) {
    %c0_i32 = arith.constant 0 : i32
    %c0_i32_0 = arith.constant 0 : i32
    %c0_i32_1 = arith.constant 0 : i32
    return %c0_i32, %c0_i32_0 : i32, i32
  }
  func.func @transform_3(%arg0: i32) -> (i32, i32) {
    %c0_i32 = arith.constant 0 : i32
    %c0_i32_0 = arith.constant 0 : i32
    %c0_i32_1 = arith.constant 0 : i32
    return %c0_i32, %c0_i32_0 : i32, i32
  }
  func.func @transform_4(%arg0: i32) -> (i32, i32, i32) {
    %c0_i32 = arith.constant 0 : i32
    %c0_i32_0 = arith.constant 0 : i32
    %c0_i32_1 = arith.constant 0 : i32
    return %arg0, %c0_i32, %c0_i32_0 : i32, i32, i32
  }
  func.func @transform_5(%arg0: i32) -> (i32, i32, i32) {
    %c0_i32 = arith.constant 0 : i32
    %c0_i32_0 = arith.constant 0 : i32
    %c0_i32_1 = arith.constant 0 : i32
    return %arg0, %c0_i32, %c0_i32_0 : i32, i32, i32
  }
  func.func @transform_6(%arg0: i32) -> (i32, i32, i32) {
    %c0_i32 = arith.constant 0 : i32
    %c0_i32_0 = arith.constant 0 : i32
    %c0_i32_1 = arith.constant 0 : i32
    return %arg0, %c0_i32, %c0_i32_0 : i32, i32, i32
  }
  func.func @transform_7(%arg0: i32) -> (i32, i32, i32) {
    %c0_i32 = arith.constant 0 : i32
    %c0_i32_0 = arith.constant 0 : i32
    %c0_i32_1 = arith.constant 0 : i32
    return %arg0, %c0_i32, %c0_i32_0 : i32, i32, i32
  }
  func.func @transform_8(%arg0: i32) -> (i32, i32) {
    %c0_i32 = arith.constant 0 : i32
    %c0_i32_0 = arith.constant 0 : i32
    %c0_i32_1 = arith.constant 0 : i32
    return %c0_i32, %c0_i32_0 : i32, i32
  }
  func.func @transform_9(%arg0: i32) -> (i32, i32) {
    %c0_i32 = arith.constant 0 : i32
    %c0_i32_0 = arith.constant 0 : i32
    %c0_i32_1 = arith.constant 0 : i32
    return %c0_i32, %c0_i32_0 : i32, i32
  }
  func.func @transform_10(%arg0: i32) -> (i32, i32) {
    %c0_i32 = arith.constant 0 : i32
    %c0_i32_0 = arith.constant 0 : i32
    %c0_i32_1 = arith.constant 0 : i32
    return %c0_i32, %c0_i32_0 : i32, i32
  }
  func.func @transform_11(%arg0: i32) -> (i32, i32) {
    %c0_i32 = arith.constant 0 : i32
    %c0_i32_0 = arith.constant 0 : i32
    %c0_i32_1 = arith.constant 0 : i32
    return %c0_i32, %c0_i32_0 : i32, i32
  }
  func.func @transform_12(%arg0: i32) -> (i32, i32) {
    %c0_i32 = arith.constant 0 : i32
    %c0_i32_0 = arith.constant 0 : i32
    %c0_i32_1 = arith.constant 0 : i32
    return %c0_i32, %c0_i32_0 : i32, i32
  }
}

module attributes {stable_mosaic.version = 11 : i64} {
  func.func @gnn_graphpred_kernel(%arg0: i32, %arg1: memref<2xf32, #tpu.memory_space<smem>>, %arg2: memref<32x128xf32, #tpu.memory_space<vmem>>, %arg3: memref<64x32xbf16, #tpu.memory_space<vmem>>, %arg4: memref<64x32xbf16, #tpu.memory_space<vmem>>, %arg5: memref<1x64x128xbf16, #tpu.memory_space<vmem>>, %arg6: memref<1x128x128xf32, #tpu.memory_space<vmem>>, %arg7: memref<1x128x128xf32, #tpu.memory_space<vmem>>, %arg8: memref<1x8x128xf32, #tpu.memory_space<vmem>>, %arg9: memref<4x32xf32, #tpu.memory_space<vmem>>, %arg10: memref<128x1xf32, #tpu.memory_space<vmem>>, %arg11: memref<1x1xf32, #tpu.memory_space<vmem>>, %arg12: memref<32x128xf32, #tpu.memory_space<vmem>>, %arg13: memref<4x1xf32, #tpu.memory_space<vmem>>) attributes {dimension_semantics = [#tpu.dimension_semantics<arbitrary>], iteration_bounds = array<i64: 2>, scalar_prefetch = 0 : i64, scratch_operands = 0 : i64, tpu.core_type = #tpu.core_type<tc>, window_params = [{transform_indices = @transform_0, window_bounds = array<i64: 2>}, {pipeline_mode = #tpu.pipeline_mode<synchronous>, transform_indices = @transform_1, window_bounds = array<i64: 32, 128>}, {pipeline_mode = #tpu.pipeline_mode<synchronous>, transform_indices = @transform_2, window_bounds = array<i64: 64, 32>}, {pipeline_mode = #tpu.pipeline_mode<synchronous>, transform_indices = @transform_3, window_bounds = array<i64: 64, 32>}, {transform_indices = @transform_4, window_bounds = array<i64: 1, 64, 128>}, {transform_indices = @transform_5, window_bounds = array<i64: 1, 128, 128>}, {transform_indices = @transform_6, window_bounds = array<i64: 1, 128, 128>}, {transform_indices = @transform_7, window_bounds = array<i64: 1, 8, 128>}, {pipeline_mode = #tpu.pipeline_mode<synchronous>, transform_indices = @transform_8, window_bounds = array<i64: 4, 32>}, {pipeline_mode = #tpu.pipeline_mode<synchronous>, transform_indices = @transform_9, window_bounds = array<i64: 128, 1>}, {pipeline_mode = #tpu.pipeline_mode<synchronous>, transform_indices = @transform_10, window_bounds = array<i64: 1, 1>}, {pipeline_mode = #tpu.pipeline_mode<synchronous>, transform_indices = @transform_11, window_bounds = array<i64: 32, 128>}, {pipeline_mode = #tpu.pipeline_mode<synchronous>, transform_indices = @transform_12, window_bounds = array<i64: 4, 1>}]} {
    %c0_i32 = arith.constant 0 : i32
    %0 = arith.cmpi eq, %arg0, %c0_i32 : i32
    %1 = arith.extui %0 : i1 to i32
    %c0_i32_0 = arith.constant 0 : i32
    %2 = arith.cmpi ne, %1, %c0_i32_0 : i32
    scf.if %2 {
      %c0_36 = arith.constant 0 : index
      %c0_37 = arith.constant 0 : index
      %88 = vector.load %arg2[%c0_36, %c0_37] : memref<32x128xf32, #tpu.memory_space<vmem>>, vector<32x128xf32>
      %c0_38 = arith.constant 0 : index
      %c0_39 = arith.constant 0 : index
      %89 = vector.load %arg12[%c0_38, %c0_39] : memref<32x128xf32, #tpu.memory_space<vmem>>, vector<32x128xf32>
      tpu.vector_store %arg12[%c0_38, %c0_39], %88 {strides = array<i32>} : memref<32x128xf32, #tpu.memory_space<vmem>>, vector<32x128xf32>,
    } else {
    }
    %c0 = arith.constant 0 : index
    %c0_1 = arith.constant 0 : index
    %3 = vector.load %arg12[%c0, %c0_1] : memref<32x128xf32, #tpu.memory_space<vmem>>, vector<32x128xf32>
    %4 = arith.truncf %3 : vector<32x128xf32> to vector<32x128xbf16>
    %c0_2 = arith.constant 0 : index
    %c0_3 = arith.constant 0 : index
    %5 = vector.load %arg3[%c0_2, %c0_3] : memref<64x32xbf16, #tpu.memory_space<vmem>>, vector<64x32xbf16>
    %cst = arith.constant dense<0.000000e+00> : vector<64x128xf32>
    %6 = tpu.matmul %5, %4, %cst {dimension_numbers = #tpu.dot_dimension_numbers<[1], [0], [0], [1], [0, 0, 1, 1], [], []>} : vector<64x32xbf16>, vector<32x128xbf16>, vector<64x128xf32> -> vector<64x128xf32>
    %c0_4 = arith.constant 0 : index
    %c0_5 = arith.constant 0 : index
    %c0_6 = arith.constant 0 : index
    %7 = vector.load %arg5[%c0_4, %c0_5, %c0_6] : memref<1x64x128xbf16, #tpu.memory_space<vmem>>, vector<1x64x128xbf16>
    %8 = vector.shape_cast %7 : vector<1x64x128xbf16> to vector<64x128xbf16>
    %9 = arith.extf %8 : vector<64x128xbf16> to vector<64x128xf32>
    %10 = arith.addf %6, %9 : vector<64x128xf32>
    %cst_7 = arith.constant 0.000000e+00 : f32
    %11 = vector.broadcast %cst_7 : f32 to vector<64x128xf32>
    %12 = arith.maximumf %10, %11 : vector<64x128xf32>
    %c0_8 = arith.constant 0 : index
    %c0_9 = arith.constant 0 : index
    %13 = vector.load %arg4[%c0_8, %c0_9] : memref<64x32xbf16, #tpu.memory_space<vmem>>, vector<64x32xbf16>
    %14 = arith.truncf %12 : vector<64x128xf32> to vector<64x128xbf16>
    %cst_10 = arith.constant dense<0.000000e+00> : vector<32x128xf32>
    %15 = tpu.matmul %13, %14, %cst_10 {dimension_numbers = #tpu.dot_dimension_numbers<[0], [0], [1], [1], [0, 1, 1, 1], [], []>} : vector<64x32xbf16>, vector<64x128xbf16>, vector<32x128xf32> -> vector<32x128xf32>
    %16 = arith.index_cast %arg0 : i32 to index
    %17 = memref.load %arg1[%16] : memref<2xf32, #tpu.memory_space<smem>>
    %cst_11 = arith.constant 1.000000e+00 : f32
    %18 = arith.addf %cst_11, %17 : f32
    %19 = vector.broadcast %18 : f32 to vector<32x128xf32>
    %20 = arith.mulf %19, %3 : vector<32x128xf32>
    %21 = arith.addf %20, %15 : vector<32x128xf32>
    %c0_12 = arith.constant 0 : index
    %c0_13 = arith.constant 0 : index
    %c0_14 = arith.constant 0 : index
    %22 = vector.load %arg8[%c0_12, %c0_13, %c0_14] : memref<1x8x128xf32, #tpu.memory_space<vmem>>, vector<1x8x128xf32>
    %23 = vector.shape_cast %22 : vector<1x8x128xf32> to vector<8x128xf32>
    %24 = vector.extract_strided_slice %23 {offsets = [0, 0], sizes = [1, 128], strides = [1, 1]} : vector<8x128xf32> to vector<1x128xf32>
    %25 = vector.extract_strided_slice %23 {offsets = [1, 0], sizes = [1, 128], strides = [1, 1]} : vector<8x128xf32> to vector<1x128xf32>
    %26 = vector.extract_strided_slice %23 {offsets = [2, 0], sizes = [1, 128], strides = [1, 1]} : vector<8x128xf32> to vector<1x128xf32>
    %27 = vector.extract_strided_slice %23 {offsets = [3, 0], sizes = [1, 128], strides = [1, 1]} : vector<8x128xf32> to vector<1x128xf32>
    %28 = vector.extract_strided_slice %23 {offsets = [4, 0], sizes = [1, 128], strides = [1, 1]} : vector<8x128xf32> to vector<1x128xf32>
    %29 = vector.extract_strided_slice %23 {offsets = [5, 0], sizes = [1, 128], strides = [1, 1]} : vector<8x128xf32> to vector<1x128xf32>
    %c0_15 = arith.constant 0 : index
    %c0_16 = arith.constant 0 : index
    %c0_17 = arith.constant 0 : index
    %30 = vector.load %arg6[%c0_15, %c0_16, %c0_17] : memref<1x128x128xf32, #tpu.memory_space<vmem>>, vector<1x128x128xf32>
    %31 = vector.shape_cast %30 : vector<1x128x128xf32> to vector<128x128xf32>
    %cst_18 = arith.constant dense<0.000000e+00> : vector<32x128xf32>
    %32 = tpu.matmul %21, %31, %cst_18 {dimension_numbers = #tpu.dot_dimension_numbers<[1], [0], [0], [1], [0, 0, 1, 1], [], []>} : vector<32x128xf32>, vector<128x128xf32>, vector<32x128xf32> -> vector<32x128xf32>
    %33 = vector.broadcast %24 : vector<1x128xf32> to vector<32x128xf32>
    %34 = arith.addf %32, %33 : vector<32x128xf32>
    %cst_19 = arith.constant dense<0.000000e+00> : vector<128xf32>
    %35 = vector.multi_reduction <add>, %34, %cst_19 [0] : vector<32x128xf32> to vector<128xf32>
    %36 = vector.shape_cast %35 : vector<128xf32> to vector<1x128xf32>
    %cst_20 = arith.constant 3.200000e+01 : f32
    %37 = vector.broadcast %cst_20 : f32 to vector<1x128xf32>
    %38 = arith.divf %36, %37 : vector<1x128xf32>
    %39 = vector.broadcast %38 : vector<1x128xf32> to vector<32x128xf32>
    %40 = arith.subf %34, %39 : vector<32x128xf32>
    %41 = arith.mulf %40, %40 : vector<32x128xf32>
    %cst_21 = arith.constant dense<0.000000e+00> : vector<128xf32>
    %42 = vector.multi_reduction <add>, %41, %cst_21 [0] : vector<32x128xf32> to vector<128xf32>
    %43 = vector.shape_cast %42 : vector<128xf32> to vector<1x128xf32>
    %cst_22 = arith.constant 3.200000e+01 : f32
    %44 = vector.broadcast %cst_22 : f32 to vector<1x128xf32>
    %45 = arith.divf %43, %44 : vector<1x128xf32>
    %cst_23 = arith.constant 9.99999974E-6 : f32
    %46 = vector.broadcast %cst_23 : f32 to vector<1x128xf32>
    %47 = arith.addf %45, %46 : vector<1x128xf32>
    %48 = math.rsqrt %47 : vector<1x128xf32>
    %49 = vector.broadcast %48 : vector<1x128xf32> to vector<32x128xf32>
    %50 = arith.mulf %40, %49 : vector<32x128xf32>
    %51 = vector.broadcast %25 : vector<1x128xf32> to vector<32x128xf32>
    %52 = arith.mulf %50, %51 : vector<32x128xf32>
    %53 = vector.broadcast %26 : vector<1x128xf32> to vector<32x128xf32>
    %54 = arith.addf %52, %53 : vector<32x128xf32>
    %cst_24 = arith.constant 0.000000e+00 : f32
    %55 = vector.broadcast %cst_24 : f32 to vector<32x128xf32>
    %56 = arith.maximumf %54, %55 : vector<32x128xf32>
    %c0_25 = arith.constant 0 : index
    %c0_26 = arith.constant 0 : index
    %c0_27 = arith.constant 0 : index
    %57 = vector.load %arg7[%c0_25, %c0_26, %c0_27] : memref<1x128x128xf32, #tpu.memory_space<vmem>>, vector<1x128x128xf32>
    %58 = vector.shape_cast %57 : vector<1x128x128xf32> to vector<128x128xf32>
    %cst_28 = arith.constant dense<0.000000e+00> : vector<32x128xf32>
    %59 = tpu.matmul %56, %58, %cst_28 {dimension_numbers = #tpu.dot_dimension_numbers<[1], [0], [0], [1], [0, 0, 1, 1], [], []>} : vector<32x128xf32>, vector<128x128xf32>, vector<32x128xf32> -> vector<32x128xf32>
    %60 = vector.broadcast %27 : vector<1x128xf32> to vector<32x128xf32>
    %61 = arith.addf %59, %60 : vector<32x128xf32>
    %cst_29 = arith.constant dense<0.000000e+00> : vector<128xf32>
    %62 = vector.multi_reduction <add>, %61, %cst_29 [0] : vector<32x128xf32> to vector<128xf32>
    %63 = vector.shape_cast %62 : vector<128xf32> to vector<1x128xf32>
    %cst_30 = arith.constant 3.200000e+01 : f32
    %64 = vector.broadcast %cst_30 : f32 to vector<1x128xf32>
    %65 = arith.divf %63, %64 : vector<1x128xf32>
    %66 = vector.broadcast %65 : vector<1x128xf32> to vector<32x128xf32>
    %67 = arith.subf %61, %66 : vector<32x128xf32>
    %68 = arith.mulf %67, %67 : vector<32x128xf32>
    %cst_31 = arith.constant dense<0.000000e+00> : vector<128xf32>
    %69 = vector.multi_reduction <add>, %68, %cst_31 [0] : vector<32x128xf32> to vector<128xf32>
    %70 = vector.shape_cast %69 : vector<128xf32> to vector<1x128xf32>
    %cst_32 = arith.constant 3.200000e+01 : f32
    %71 = vector.broadcast %cst_32 : f32 to vector<1x128xf32>
    %72 = arith.divf %70, %71 : vector<1x128xf32>
    %cst_33 = arith.constant 9.99999974E-6 : f32
    %73 = vector.broadcast %cst_33 : f32 to vector<1x128xf32>
    %74 = arith.addf %72, %73 : vector<1x128xf32>
    %75 = math.rsqrt %74 : vector<1x128xf32>
    %76 = vector.broadcast %75 : vector<1x128xf32> to vector<32x128xf32>
    %77 = arith.mulf %67, %76 : vector<32x128xf32>
    %78 = vector.broadcast %28 : vector<1x128xf32> to vector<32x128xf32>
    %79 = arith.mulf %77, %78 : vector<32x128xf32>
    %80 = vector.broadcast %29 : vector<1x128xf32> to vector<32x128xf32>
    %81 = arith.addf %79, %80 : vector<32x128xf32>
    %c1_i32 = arith.constant 1 : i32
    %82 = arith.cmpi eq, %arg0, %c1_i32 : i32
    %true = arith.constant true
    %83 = arith.xori %82, %true : i1
    %84 = arith.extui %83 : i1 to i32
    %c0_i32_34 = arith.constant 0 : i32
    %85 = arith.cmpi ne, %84, %c0_i32_34 : i32
    scf.if %85 {
      %cst_36 = arith.constant 0.000000e+00 : f32
      %88 = vector.broadcast %cst_36 : f32 to vector<32x128xf32>
      %89 = arith.maximumf %81, %88 : vector<32x128xf32>
      %c0_37 = arith.constant 0 : index
      %c0_38 = arith.constant 0 : index
      %90 = vector.load %arg12[%c0_37, %c0_38] : memref<32x128xf32, #tpu.memory_space<vmem>>, vector<32x128xf32>
      tpu.vector_store %arg12[%c0_37, %c0_38], %89 {strides = array<i32>} : memref<32x128xf32, #tpu.memory_space<vmem>>, vector<32x128xf32>,
    } else {
    }
    %86 = arith.extui %82 : i1 to i32
    %c0_i32_35 = arith.constant 0 : i32
    %87 = arith.cmpi ne, %86, %c0_i32_35 : i32
    scf.if %87 {
      %c0_36 = arith.constant 0 : index
      %c0_37 = arith.constant 0 : index
      %88 = vector.load %arg12[%c0_36, %c0_37] : memref<32x128xf32, #tpu.memory_space<vmem>>, vector<32x128xf32>
      tpu.vector_store %arg12[%c0_36, %c0_37], %81 {strides = array<i32>} : memref<32x128xf32, #tpu.memory_space<vmem>>, vector<32x128xf32>,
      %c0_38 = arith.constant 0 : index
      %c0_39 = arith.constant 0 : index
      %89 = vector.load %arg9[%c0_38, %c0_39] : memref<4x32xf32, #tpu.memory_space<vmem>>, vector<4x32xf32>
      %cst_40 = arith.constant dense<0.000000e+00> : vector<4x128xf32>
      %90 = tpu.matmul %89, %81, %cst_40 {dimension_numbers = #tpu.dot_dimension_numbers<[1], [0], [0], [1], [0, 0, 1, 1], [], []>} : vector<4x32xf32>, vector<32x128xf32>, vector<4x128xf32> -> vector<4x128xf32>
      %c0_41 = arith.constant 0 : index
      %c0_42 = arith.constant 0 : index
      %91 = vector.load %arg10[%c0_41, %c0_42] : memref<128x1xf32, #tpu.memory_space<vmem>>, vector<128x1xf32>
      %cst_43 = arith.constant dense<0.000000e+00> : vector<4x1xf32>
      %92 = tpu.matmul %90, %91, %cst_43 {dimension_numbers = #tpu.dot_dimension_numbers<[1], [0], [0], [1], [0, 0, 1, 1], [], []>} : vector<4x128xf32>, vector<128x1xf32>, vector<4x1xf32> -> vector<4x1xf32>
      %c0_44 = arith.constant 0 : index
      %c0_45 = arith.constant 0 : index
      %93 = vector.load %arg11[%c0_44, %c0_45] : memref<1x1xf32, #tpu.memory_space<vmem>>, vector<1x1xf32>
      %94 = vector.broadcast %93 : vector<1x1xf32> to vector<4x1xf32>
      %95 = arith.addf %92, %94 : vector<4x1xf32>
      %c0_46 = arith.constant 0 : index
      %c0_47 = arith.constant 0 : index
      %96 = vector.load %arg13[%c0_46, %c0_47] : memref<4x1xf32, #tpu.memory_space<vmem>>, vector<4x1xf32>
      tpu.vector_store %arg13[%c0_46, %c0_47], %95 {strides = array<i32>} : memref<4x1xf32, #tpu.memory_space<vmem>>, vector<4x1xf32>,
    } else {
    }
    return
  }
  func.func @transform_0(%arg0: i32) -> i32 {
    %c0_i32 = arith.constant 0 : i32
    %c0_i32_0 = arith.constant 0 : i32
    return %c0_i32 : i32
  }
  func.func @transform_1(%arg0: i32) -> (i32, i32) {
    %c0_i32 = arith.constant 0 : i32
    %c0_i32_0 = arith.constant 0 : i32
    %c0_i32_1 = arith.constant 0 : i32
    return %c0_i32, %c0_i32_0 : i32, i32
  }
  func.func @transform_2(%arg0: i32) -> (i32, i32) {
    %c0_i32 = arith.constant 0 : i32
    %c0_i32_0 = arith.constant 0 : i32
    %c0_i32_1 = arith.constant 0 : i32
    return %c0_i32, %c0_i32_0 : i32, i32
  }
  func.func @transform_3(%arg0: i32) -> (i32, i32) {
    %c0_i32 = arith.constant 0 : i32
    %c0_i32_0 = arith.constant 0 : i32
    %c0_i32_1 = arith.constant 0 : i32
    return %c0_i32, %c0_i32_0 : i32, i32
  }
  func.func @transform_4(%arg0: i32) -> (i32, i32, i32) {
    %c0_i32 = arith.constant 0 : i32
    %c0_i32_0 = arith.constant 0 : i32
    %c0_i32_1 = arith.constant 0 : i32
    return %arg0, %c0_i32, %c0_i32_0 : i32, i32, i32
  }
  func.func @transform_5(%arg0: i32) -> (i32, i32, i32) {
    %c0_i32 = arith.constant 0 : i32
    %c0_i32_0 = arith.constant 0 : i32
    %c0_i32_1 = arith.constant 0 : i32
    return %arg0, %c0_i32, %c0_i32_0 : i32, i32, i32
  }
  func.func @transform_6(%arg0: i32) -> (i32, i32, i32) {
    %c0_i32 = arith.constant 0 : i32
    %c0_i32_0 = arith.constant 0 : i32
    %c0_i32_1 = arith.constant 0 : i32
    return %arg0, %c0_i32, %c0_i32_0 : i32, i32, i32
  }
  func.func @transform_7(%arg0: i32) -> (i32, i32, i32) {
    %c0_i32 = arith.constant 0 : i32
    %c0_i32_0 = arith.constant 0 : i32
    %c0_i32_1 = arith.constant 0 : i32
    return %arg0, %c0_i32, %c0_i32_0 : i32, i32, i32
  }
  func.func @transform_8(%arg0: i32) -> (i32, i32) {
    %c0_i32 = arith.constant 0 : i32
    %c0_i32_0 = arith.constant 0 : i32
    %c0_i32_1 = arith.constant 0 : i32
    return %c0_i32, %c0_i32_0 : i32, i32
  }
  func.func @transform_9(%arg0: i32) -> (i32, i32) {
    %c0_i32 = arith.constant 0 : i32
    %c0_i32_0 = arith.constant 0 : i32
    %c0_i32_1 = arith.constant 0 : i32
    return %c0_i32, %c0_i32_0 : i32, i32
  }
  func.func @transform_10(%arg0: i32) -> (i32, i32) {
    %c0_i32 = arith.constant 0 : i32
    %c0_i32_0 = arith.constant 0 : i32
    %c0_i32_1 = arith.constant 0 : i32
    return %c0_i32, %c0_i32_0 : i32, i32
  }
  func.func @transform_11(%arg0: i32) -> (i32, i32) {
    %c0_i32 = arith.constant 0 : i32
    %c0_i32_0 = arith.constant 0 : i32
    %c0_i32_1 = arith.constant 0 : i32
    return %c0_i32, %c0_i32_0 : i32, i32
  }
  func.func @transform_12(%arg0: i32) -> (i32, i32) {
    %c0_i32 = arith.constant 0 : i32
    %c0_i32_0 = arith.constant 0 : i32
    %c0_i32_1 = arith.constant 0 : i32
    return %c0_i32, %c0_i32_0 : i32, i32
  }
}

</mosaic_0001>

<llo_original>
// kernel: tpu_custom_call.1
$region0: #{tpu_custom_call.1}
  #allocation0 [shape = 'u32[]', space=smem, size = 0x4, offset = 0x4, fixed_abs, tag = 'smem constant byte address 0x4 - core index']
  #allocation1 [shape = 'u32[144,128]{1,0:T(1,128)}', space=vmem, size = 0x12000, scoped, tag = 'internal scratch']
  #allocation2 [shape = 'f32[1,1]{1,0:T(1,128)S(1)}', space=vmem, size = 0x200, scoped, tag = 'scoped memory for tpu_custom_call.1']
  %s0 = inlined_call_operand.vmem [shape: f32[2], index: 0, kind: input, shape index: {}]
  %s1 = inlined_call_operand.vmem [shape: f32[32,128], index: 1, kind: input, shape index: {}]
  %s2 = inlined_call_operand.vmem [shape: bf16[64,32], index: 2, kind: input, shape index: {}]
  %s3 = inlined_call_operand.vmem [shape: bf16[64,32], index: 3, kind: input, shape index: {}]
  %s4 = inlined_call_operand.vmem [shape: bf16[2,64,128], index: 4, kind: input, shape index: {}]
  %s5 = inlined_call_operand.hbm [shape: f32[2,128,128], index: 5, kind: input, shape index: {}]
  %s6 = inlined_call_operand.hbm [shape: f32[2,128,128], index: 6, kind: input, shape index: {}]
  %s7 = inlined_call_operand.vmem [shape: f32[2,8,128], index: 7, kind: input, shape index: {}]
  %s8 = inlined_call_operand.vmem [shape: f32[4,32], index: 8, kind: input, shape index: {}]
  %s9 = inlined_call_operand.vmem [shape: f32[128,1], index: 9, kind: input, shape index: {}]
  %s10 = inlined_call_operand.<no memory space> [shape: f32[1,1], index: 10, kind: input, shape index: {}]
  %s11 = inlined_call_operand.hbm [shape: f32[32,128], index: 11, kind: output, shape index: {0}]
  %s12 = inlined_call_operand.vmem [shape: f32[4,1], index: 12, kind: output, shape index: {1}]
  %13 = xla_tuple %s11, %s12
  %s14 = sld [smem:[#allocation0]]
  $region109: #{tpu_custom_call.1} parent=0
    _
  %s16 = ssub.s32 1, %s14
  %s17 = scalar_select 0, %s16, %s14
  %v18 = vstv %s10
  %19 = vst [vmem:[#allocation2] sm:$0x1] %v18
  $region1: #{tpu_custom_call.1} parent=0
    #allocation3 [shape = 'u8[512]{0}', space=smem, size = 0x200, scoped, tag = 'input window, operand 0, single buffered']
    #allocation4 [shape = 's32[2]{0}', space=sflag, size = 0x8, scoped, tag = 'scoped memory for tpu_custom_call.1']
    #allocation5 [shape = 's32[2]{0}', space=sflag, size = 0x8, scoped, tag = 'scoped memory for tpu_custom_call.1']
    #allocation6 [shape = 's32[2]{0}', space=sflag, size = 0x8, scoped, tag = 'scoped memory for tpu_custom_call.1']
    #allocation7 [shape = 'u8[131072]{0}', space=vmem, size = 0x20000, scoped, tag = 'input window, operand 5']
    #allocation8 [shape = 'u8[131072]{0}', space=vmem, size = 0x20000, scoped, tag = 'input window, operand 6']
    #allocation9 [shape = 's32[2]{0}', space=sflag, size = 0x8, scoped, tag = 'scoped memory for tpu_custom_call.1']
    #allocation10 [shape = 'u8[16384]{0}', space=vmem, size = 0x4000, scoped, tag = 'output window, operand 0, single buffered']
    %20 = vsyncpa [#allocation6], 0
    %21 = vsyncpa [#allocation4], 0
    %s22 = scalar_lea.sflag [#allocation4], 1
    %23 = vsyncpa %s22, 0
    %24 = vsyncpa [#allocation9], 0
    %s25 = scalar_lea.sflag [#allocation9], 1
    %26 = vsyncpa %s25, 0
    %27 = vsyncpa [#allocation5], 0
    loop: start=0, step=1, limit=4
    $region2: #{tpu_custom_call.1} parent=1 // loop_pre_header
      _
    $region3: #{tpu_custom_call.1} parent=1 // loop_header
      %s29 = sphi 0, %s33
      %p30 = scmp.ge.s32.totalorder %s29, 4
      %s37 = sphi 0, %s37
      %s39 = sphi 0, %s37
      %s40 = sphi 0, %s39
      %s54 = sphi 0, %s40
      %s58 = sphi 0, %s58
      %s60 = sphi 0, %s58
      %s61 = sphi 0, %s60
      %s75 = sphi 0, %s61
      %s79 = sphi 0, %s79
      %s81 = sphi 0, %s79
      %s82 = sphi 0, %s81
      %s96 = sphi 0, %s82
      %s100 = sphi 0, %s100
      %s102 = sphi 0, %s100
      %s103 = sphi 0, %s102
      %s117 = sphi 0, %s103
      %s123 = sphi 0, %s125
      %s126 = sphi 0, %s123
      %s127 = sphi 0, %s126
      %s143 = sphi 0, %s127
      %s149 = sphi 0, %s151
      %s152 = sphi 0, %s149
      %s153 = sphi 0, %s152
      %s169 = sphi 0, %s153
      %s175 = sphi 0, %s177
      %s178 = sphi 0, %s175
      %s179 = sphi 0, %s178
      %s195 = sphi 0, %s179
      %s201 = sphi 0, %s203
      %s204 = sphi 0, %s201
      %s205 = sphi 0, %s204
      %s221 = sphi 0, %s205
      %s225 = sphi 0, %s225
      %s227 = sphi 0, %s225
      %s228 = sphi 0, %s227
      %s242 = sphi 0, %s228
      %s246 = sphi 0, %s246
      %s248 = sphi 0, %s246
      %s249 = sphi 0, %s248
      %s263 = sphi 0, %s249
      %s267 = sphi 0, %s267
      %s269 = sphi 0, %s267
      %s270 = sphi 0, %s269
      %s284 = sphi 0, %s270
      %s288 = sphi 0, %s288
      %s290 = sphi 0, %s288
      %s291 = sphi 0, %s290
      %s305 = sphi 0, %s291
      %s309 = sphi 0, %s309
      %s311 = sphi 0, %s309
      %s312 = sphi 0, %s311
      %s326 = sphi 0, %s312
    $region4: #{tpu_custom_call.1} parent=1 // loop_header_branch
      %32 = sbr.rel (%p30) target = $region8
    $region5: #{tpu_custom_call.1} parent=1 // loop_body
      %s34 = ssub.s32 %s29, 1
      %s35 = ssub.s32 %s29, 2
      %s36 = sadd.s32 %s29, 1
      %s38 = sadd.s32 %s37, 1
      %p41 = scmp.eq.s32.totalorder %s29, 1
      %p42 = scmp.ne.s32.totalorder %s37, %s39
      %p43 = scmp.eq.s32.totalorder %s29, 0
      %p44 = por %p42, %p43
      %p45 = scmp.ne.s32.totalorder %s37, %s39
      %p46 = scmp.eq.s32.totalorder %s34, 1
      %p47 = por %p45, %p46
      %p48 = scmp.ne.s32.totalorder %s39, %s40
      %p49 = scmp.eq.s32.totalorder %s34, 0
      %p50 = por %p48, %p49
      %p51 = scmp.ne.s32.totalorder %s39, %s40
      %p52 = scmp.eq.s32.totalorder %s35, 1
      %p53 = por %p51, %p52
      %p55 = scmp.ne.s32.totalorder %s40, %s54
      %p56 = scmp.eq.s32.totalorder %s35, 0
      %p57 = por %p55, %p56
      %s59 = sadd.s32 %s58, 1
      %p62 = scmp.eq.s32.totalorder %s29, 1
      %p63 = scmp.ne.s32.totalorder %s58, %s60
      %p64 = scmp.eq.s32.totalorder %s29, 0
      %p65 = por %p63, %p64
      %p66 = scmp.ne.s32.totalorder %s58, %s60
      %p67 = scmp.eq.s32.totalorder %s34, 1
      %p68 = por %p66, %p67
      %p69 = scmp.ne.s32.totalorder %s60, %s61
      %p70 = scmp.eq.s32.totalorder %s34, 0
      %p71 = por %p69, %p70
      %p72 = scmp.ne.s32.totalorder %s60, %s61
      %p73 = scmp.eq.s32.totalorder %s35, 1
      %p74 = por %p72, %p73
      %p76 = scmp.ne.s32.totalorder %s61, %s75
      %p77 = scmp.eq.s32.totalorder %s35, 0
      %p78 = por %p76, %p77
      %s80 = sadd.s32 %s79, 1
      %p83 = scmp.eq.s32.totalorder %s29, 1
      %p84 = scmp.ne.s32.totalorder %s79, %s81
      %p85 = scmp.eq.s32.totalorder %s29, 0
      %p86 = por %p84, %p85
      %p87 = scmp.ne.s32.totalorder %s79, %s81
      %p88 = scmp.eq.s32.totalorder %s34, 1
      %p89 = por %p87, %p88
      %p90 = scmp.ne.s32.totalorder %s81, %s82
      %p91 = scmp.eq.s32.totalorder %s34, 0
      %p92 = por %p90, %p91
      %p93 = scmp.ne.s32.totalorder %s81, %s82
      %p94 = scmp.eq.s32.totalorder %s35, 1
      %p95 = por %p93, %p94
      %p97 = scmp.ne.s32.totalorder %s82, %s96
      %p98 = scmp.eq.s32.totalorder %s35, 0
      %p99 = por %p97, %p98
      %s101 = sadd.s32 %s100, 1
      %p104 = scmp.eq.s32.totalorder %s29, 1
      %p105 = scmp.ne.s32.totalorder %s100, %s102
      %p106 = scmp.eq.s32.totalorder %s29, 0
      %p107 = por %p105, %p106
      %p108 = scmp.ne.s32.totalorder %s100, %s102
      %p109 = scmp.eq.s32.totalorder %s34, 1
      %p110 = por %p108, %p109
      %p111 = scmp.ne.s32.totalorder %s102, %s103
      %p112 = scmp.eq.s32.totalorder %s34, 0
      %p113 = por %p111, %p112
      %p114 = scmp.ne.s32.totalorder %s102, %s103
      %p115 = scmp.eq.s32.totalorder %s35, 1
      %p116 = por %p114, %p115
      %p118 = scmp.ne.s32.totalorder %s103, %s117
      %p119 = scmp.eq.s32.totalorder %s35, 0
      %p120 = por %p118, %p119
      %s121 = ssub.s32 %s29, %s36
      %p122 = scmp.eq.s32.totalorder %s121, 0
      %s124 = sadd.s32 %s123, 1
      %s125 = scalar_select %p122, %s123, %s124
      %p128 = pneg %p122
      %p129 = scmp.eq.s32.totalorder %s29, 1
      %p130 = por %p128, %p129
      %p131 = scmp.ne.s32.totalorder %s123, %s126
      %p132 = scmp.eq.s32.totalorder %s29, 0
      %p133 = por %p131, %p132
      %p134 = scmp.ne.s32.totalorder %s123, %s126
      %p135 = scmp.eq.s32.totalorder %s34, 1
      %p136 = por %p134, %p135
      %p137 = scmp.ne.s32.totalorder %s126, %s127
      %p138 = scmp.eq.s32.totalorder %s34, 0
      %p139 = por %p137, %p138
      %p140 = scmp.ne.s32.totalorder %s126, %s127
      %p141 = scmp.eq.s32.totalorder %s35, 1
      %p142 = por %p140, %p141
      %p144 = scmp.ne.s32.totalorder %s127, %s143
      %p145 = scmp.eq.s32.totalorder %s35, 0
      %p146 = por %p144, %p145
      %s147 = ssub.s32 %s29, %s36
      %p148 = scmp.eq.s32.totalorder %s147, 0
      %s150 = sadd.s32 %s149, 1
      %s151 = scalar_select %p148, %s149, %s150
      %p154 = pneg %p148
      %p155 = scmp.eq.s32.totalorder %s29, 1
      %p156 = por %p154, %p155
      %p157 = scmp.ne.s32.totalorder %s149, %s152
      %p158 = scmp.eq.s32.totalorder %s29, 0
      %p159 = por %p157, %p158
      %p160 = scmp.ne.s32.totalorder %s149, %s152
      %p161 = scmp.eq.s32.totalorder %s34, 1
      %p162 = por %p160, %p161
      %p163 = scmp.ne.s32.totalorder %s152, %s153
      %p164 = scmp.eq.s32.totalorder %s34, 0
      %p165 = por %p163, %p164
      %p166 = scmp.ne.s32.totalorder %s152, %s153
      %p167 = scmp.eq.s32.totalorder %s35, 1
      %p168 = por %p166, %p167
      %p170 = scmp.ne.s32.totalorder %s153, %s169
      %p171 = scmp.eq.s32.totalorder %s35, 0
      %p172 = por %p170, %p171
      %s173 = ssub.s32 %s29, %s36
      %p174 = scmp.eq.s32.totalorder %s173, 0
      %s176 = sadd.s32 %s175, 1
      %s177 = scalar_select %p174, %s175, %s176
      %p180 = pneg %p174
      %p181 = scmp.eq.s32.totalorder %s29, 1
      %p182 = por %p180, %p181
      %p183 = scmp.ne.s32.totalorder %s175, %s178
      %p184 = scmp.eq.s32.totalorder %s29, 0
      %p185 = por %p183, %p184
      %p186 = scmp.ne.s32.totalorder %s175, %s178
      %p187 = scmp.eq.s32.totalorder %s34, 1
      %p188 = por %p186, %p187
      %p189 = scmp.ne.s32.totalorder %s178, %s179
      %p190 = scmp.eq.s32.totalorder %s34, 0
      %p191 = por %p189, %p190
      %p192 = scmp.ne.s32.totalorder %s178, %s179
      %p193 = scmp.eq.s32.totalorder %s35, 1
      %p194 = por %p192, %p193
      %p196 = scmp.ne.s32.totalorder %s179, %s195
      %p197 = scmp.eq.s32.totalorder %s35, 0
      %p198 = por %p196, %p197
      %s199 = ssub.s32 %s29, %s36
      %p200 = scmp.eq.s32.totalorder %s199, 0
      %s202 = sadd.s32 %s201, 1
      %s203 = scalar_select %p200, %s201, %s202
      %p206 = pneg %p200
      %p207 = scmp.eq.s32.totalorder %s29, 1
      %p208 = por %p206, %p207
      %p209 = scmp.ne.s32.totalorder %s201, %s204
      %p210 = scmp.eq.s32.totalorder %s29, 0
      %p211 = por %p209, %p210
      %p212 = scmp.ne.s32.totalorder %s201, %s204
      %p213 = scmp.eq.s32.totalorder %s34, 1
      %p214 = por %p212, %p213
      %p215 = scmp.ne.s32.totalorder %s204, %s205
      %p216 = scmp.eq.s32.totalorder %s34, 0
      %p217 = por %p215, %p216
      %p218 = scmp.ne.s32.totalorder %s204, %s205
      %p219 = scmp.eq.s32.totalorder %s35, 1
      %p220 = por %p218, %p219
      %p222 = scmp.ne.s32.totalorder %s205, %s221
      %p223 = scmp.eq.s32.totalorder %s35, 0
      %p224 = por %p222, %p223
      %s226 = sadd.s32 %s225, 1
      %p229 = scmp.eq.s32.totalorder %s29, 1
      %p230 = scmp.ne.s32.totalorder %s225, %s227
      %p231 = scmp.eq.s32.totalorder %s29, 0
      %p232 = por %p230, %p231
      %p233 = scmp.ne.s32.totalorder %s225, %s227
      %p234 = scmp.eq.s32.totalorder %s34, 1
      %p235 = por %p233, %p234
      %p236 = scmp.ne.s32.totalorder %s227, %s228
      %p237 = scmp.eq.s32.totalorder %s34, 0
      %p238 = por %p236, %p237
      %p239 = scmp.ne.s32.totalorder %s227, %s228
      %p240 = scmp.eq.s32.totalorder %s35, 1
      %p241 = por %p239, %p240
      %p243 = scmp.ne.s32.totalorder %s228, %s242
      %p244 = scmp.eq.s32.totalorder %s35, 0
      %p245 = por %p243, %p244
      %s247 = sadd.s32 %s246, 1
      %p250 = scmp.eq.s32.totalorder %s29, 1
      %p251 = scmp.ne.s32.totalorder %s246, %s248
      %p252 = scmp.eq.s32.totalorder %s29, 0
      %p253 = por %p251, %p252
      %p254 = scmp.ne.s32.totalorder %s246, %s248
      %p255 = scmp.eq.s32.totalorder %s34, 1
      %p256 = por %p254, %p255
      %p257 = scmp.ne.s32.totalorder %s248, %s249
      %p258 = scmp.eq.s32.totalorder %s34, 0
      %p259 = por %p257, %p258
      %p260 = scmp.ne.s32.totalorder %s248, %s249
      %p261 = scmp.eq.s32.totalorder %s35, 1
      %p262 = por %p260, %p261
      %p264 = scmp.ne.s32.totalorder %s249, %s263
      %p265 = scmp.eq.s32.totalorder %s35, 0
      %p266 = por %p264, %p265
      %s268 = sadd.s32 %s267, 1
      %p271 = scmp.eq.s32.totalorder %s29, 1
      %p272 = scmp.ne.s32.totalorder %s267, %s269
      %p273 = scmp.eq.s32.totalorder %s29, 0
      %p274 = por %p272, %p273
      %p275 = scmp.ne.s32.totalorder %s267, %s269
      %p276 = scmp.eq.s32.totalorder %s34, 1
      %p277 = por %p275, %p276
      %p278 = scmp.ne.s32.totalorder %s269, %s270
      %p279 = scmp.eq.s32.totalorder %s34, 0
      %p280 = por %p278, %p279
      %p281 = scmp.ne.s32.totalorder %s269, %s270
      %p282 = scmp.eq.s32.totalorder %s35, 1
      %p283 = por %p281, %p282
      %p285 = scmp.ne.s32.totalorder %s270, %s284
      %p286 = scmp.eq.s32.totalorder %s35, 0
      %p287 = por %p285, %p286
      %s289 = sadd.s32 %s288, 1
      %p292 = scmp.eq.s32.totalorder %s29, 1
      %p293 = scmp.ne.s32.totalorder %s288, %s290
      %p294 = scmp.eq.s32.totalorder %s29, 0
      %p295 = por %p293, %p294
      %p296 = scmp.ne.s32.totalorder %s288, %s290
      %p297 = scmp.eq.s32.totalorder %s34, 1
      %p298 = por %p296, %p297
      %p299 = scmp.ne.s32.totalorder %s290, %s291
      %p300 = scmp.eq.s32.totalorder %s34, 0
      %p301 = por %p299, %p300
      %p302 = scmp.ne.s32.totalorder %s290, %s291
      %p303 = scmp.eq.s32.totalorder %s35, 1
      %p304 = por %p302, %p303
      %p306 = scmp.ne.s32.totalorder %s291, %s305
      %p307 = scmp.eq.s32.totalorder %s35, 0
      %p308 = por %p306, %p307
      %s310 = sadd.s32 %s309, 1
      %p313 = scmp.eq.s32.totalorder %s29, 1
      %p314 = scmp.ne.s32.totalorder %s309, %s311
      %p315 = scmp.eq.s32.totalorder %s29, 0
      %p316 = por %p314, %p315
      %p317 = scmp.ne.s32.totalorder %s309, %s311
      %p318 = scmp.eq.s32.totalorder %s34, 1
      %p319 = por %p317, %p318
      %p320 = scmp.ne.s32.totalorder %s311, %s312
      %p321 = scmp.eq.s32.totalorder %s34, 0
      %p322 = por %p320, %p321
      %p323 = scmp.ne.s32.totalorder %s311, %s312
      %p324 = scmp.eq.s32.totalorder %s35, 1
      %p325 = por %p323, %p324
      %p327 = scmp.ne.s32.totalorder %s312, %s326
      %p328 = scmp.eq.s32.totalorder %s35, 0
      %p329 = por %p327, %p328
      %p330 = scmp.le.s32.totalorder 1, %s29
      %p331 = scmp.lt.s32.totalorder %s29, 3
      %p332 = pnand %p330, %p331
      %p333 = pneg %p332
      // Predicated region
      $region9: #{tpu_custom_call.1} parent=5 // pred_check
        _
      $region10: #{tpu_custom_call.1} parent=5 // pred_check_branch
        %335 = sbr.rel (%p332) target = $region12
      $region11: #{tpu_custom_call.1} parent=5 // pred_region
        %s336 = ssub.s32 %s29, 1
        // Predicated region
        $region13: #{tpu_custom_call.1} parent=11 // pred_check
          %p337 = pneg %p50
        $region14: #{tpu_custom_call.1} parent=11 // pred_check_branch
          %339 = sbr.rel (%p337) target = $region16
        $region15: #{tpu_custom_call.1} parent=11 // pred_region
          %s341 = ssub.s32 16, 16
          %342 = vsyncadd [#allocation6], %s341
          %s344 = sshll.u32 %s0, 4
          %s345 = int_to_ptr.vmem [resolvable:$true] %s344
          %347 = dma.vmem_to_smem %s345, 16, [#allocation3], [#allocation6]
        $region16: #{tpu_custom_call.1} parent=11 // pred_fallthru
          _
        // Predicated region
        $region17: #{tpu_custom_call.1} parent=11 // pred_check
          %p348 = pneg %p71
        $region18: #{tpu_custom_call.1} parent=11 // pred_check_branch
          %350 = sbr.rel (%p348) target = $region20
        $region19: #{tpu_custom_call.1} parent=11 // pred_region
          _
        $region20: #{tpu_custom_call.1} parent=11 // pred_fallthru
          _
        // Predicated region
        $region21: #{tpu_custom_call.1} parent=11 // pred_check
          %p351 = pneg %p92
        $region22: #{tpu_custom_call.1} parent=11 // pred_check_branch
          %353 = sbr.rel (%p351) target = $region24
        $region23: #{tpu_custom_call.1} parent=11 // pred_region
          _
        $region24: #{tpu_custom_call.1} parent=11 // pred_fallthru
          _
        // Predicated region
        $region25: #{tpu_custom_call.1} parent=11 // pred_check
          %p354 = pneg %p113
        $region26: #{tpu_custom_call.1} parent=11 // pred_check_branch
          %356 = sbr.rel (%p354) target = $region28
        $region27: #{tpu_custom_call.1} parent=11 // pred_region
          _
        $region28: #{tpu_custom_call.1} parent=11 // pred_fallthru
          _
        // Predicated region
        $region29: #{tpu_custom_call.1} parent=11 // pred_check
          %p357 = pneg %p238
        $region30: #{tpu_custom_call.1} parent=11 // pred_check_branch
          %359 = sbr.rel (%p357) target = $region32
        $region31: #{tpu_custom_call.1} parent=11 // pred_region
          _
        $region32: #{tpu_custom_call.1} parent=11 // pred_fallthru
          _
        // Predicated region
        $region33: #{tpu_custom_call.1} parent=11 // pred_check
          %p360 = pneg %p259
        $region34: #{tpu_custom_call.1} parent=11 // pred_check_branch
          %362 = sbr.rel (%p360) target = $region36
        $region35: #{tpu_custom_call.1} parent=11 // pred_region
          _
        $region36: #{tpu_custom_call.1} parent=11 // pred_fallthru
          _
        // Predicated region
        $region37: #{tpu_custom_call.1} parent=11 // pred_check
          %p363 = pneg %p280
        $region38: #{tpu_custom_call.1} parent=11 // pred_check_branch
          %365 = sbr.rel (%p363) target = $region40
        $region39: #{tpu_custom_call.1} parent=11 // pred_region
          _
        $region40: #{tpu_custom_call.1} parent=11 // pred_fallthru
          _
      $region12: #{tpu_custom_call.1} parent=5 // pred_fallthru
        _
      %p366 = scmp.lt.s32.totalorder %s29, 2
      // Predicated region
      $region41: #{tpu_custom_call.1} parent=5 // pred_check
        %p367 = pneg %p366
      $region42: #{tpu_custom_call.1} parent=5 // pred_check_branch
        %369 = sbr.rel (%p367) target = $region44
      $region43: #{tpu_custom_call.1} parent=5 // pred_region
        // Predicated region
        $region45: #{tpu_custom_call.1} parent=43 // pred_check
          %p370 = pneg %p133
        $region46: #{tpu_custom_call.1} parent=43 // pred_check_branch
          %372 = sbr.rel (%p370) target = $region48
        $region47: #{tpu_custom_call.1} parent=43 // pred_region
          %p373 = scmp.lt.s32.totalorder %s29, 1
          %s374 = scalar_select %p373, %s29, 1
          %s375 = smul.addr %s374, 8
          %s376 = smul.addr %s375, 4
          %s377 = scalar_lea.vmem %s4, %s376
        $region48: #{tpu_custom_call.1} parent=43 // pred_fallthru
          _
        // Predicated region
        $region49: #{tpu_custom_call.1} parent=43 // pred_check
          %p378 = pneg %p159
        $region50: #{tpu_custom_call.1} parent=43 // pred_check_branch
          %380 = sbr.rel (%p378) target = $region52
        $region51: #{tpu_custom_call.1} parent=43 // pred_region
          %s381 = sand.u32 %s149, 1
          %s382 = scalar_lea.sflag [#allocation4], %s381
          %s383 = sand.u32 %s149, 1
          %s384 = smul.addr %s383, 128
          %s385 = scalar_lea.vmem [#allocation7], %s384
          %s387 = ssub.s32 2048, 2048
          %388 = vsyncadd %s382, %s387
          %s389 = smul.addr %s29, 16
          %s390 = smul.addr %s389, 128
          %s391 = scalar_lea.hbm %s5, %s390
          %s392 = sshll.u32 %s385, 4
          %s393 = int_to_ptr.vmem [resolvable:$true] %s392
          %398 = dma.hbm_to_vmem [thread:$0]  %s391, 2048, %s393, %s382, 128, 128, 8
        $region52: #{tpu_custom_call.1} parent=43 // pred_fallthru
          _
        // Predicated region
        $region53: #{tpu_custom_call.1} parent=43 // pred_check
          %p399 = pneg %p185
        $region54: #{tpu_custom_call.1} parent=43 // pred_check_branch
          %401 = sbr.rel (%p399) target = $region56
        $region55: #{tpu_custom_call.1} parent=43 // pred_region
          %s402 = sand.u32 %s175, 1
          %s403 = scalar_lea.sflag [#allocation9], %s402
          %s404 = sand.u32 %s175, 1
          %s405 = smul.addr %s404, 128
          %s406 = scalar_lea.vmem [#allocation8], %s405
          %s408 = ssub.s32 2048, 2048
          %409 = vsyncadd %s403, %s408
          %s410 = smul.addr %s29, 16
          %s411 = smul.addr %s410, 128
          %s412 = scalar_lea.hbm %s6, %s411
          %s413 = sshll.u32 %s406, 4
          %s414 = int_to_ptr.vmem [resolvable:$true] %s413
          %419 = dma.hbm_to_vmem [thread:$0]  %s412, 2048, %s414, %s403, 128, 128, 8
        $region56: #{tpu_custom_call.1} parent=43 // pred_fallthru
          _
        // Predicated region
        $region57: #{tpu_custom_call.1} parent=43 // pred_check
          %p420 = pneg %p211
        $region58: #{tpu_custom_call.1} parent=43 // pred_check_branch
          %422 = sbr.rel (%p420) target = $region60
        $region59: #{tpu_custom_call.1} parent=43 // pred_region
          %p423 = scmp.lt.s32.totalorder %s29, 1
          %s424 = scalar_select %p423, %s29, 1
          %s425 = smul.addr %s424, 8
          %s426 = scalar_lea.vmem %s7, %s425
        $region60: #{tpu_custom_call.1} parent=43 // pred_fallthru
          _
      $region44: #{tpu_custom_call.1} parent=5 // pred_fallthru
        _
      %p427 = scmp.le.s32.totalorder 1, %s29
      %p428 = scmp.lt.s32.totalorder %s29, 3
      %p429 = pnand %p427, %p428
      %p430 = pneg %p429
      // Predicated region
      $region61: #{tpu_custom_call.1} parent=5 // pred_check
        _
      $region62: #{tpu_custom_call.1} parent=5 // pred_check_branch
        %432 = sbr.rel (%p429) target = $region64
      $region63: #{tpu_custom_call.1} parent=5 // pred_region
        %s433 = ssub.s32 %s29, 1
        // Predicated region
        $region65: #{tpu_custom_call.1} parent=63 // pred_check
          %p434 = pneg %p50
        $region66: #{tpu_custom_call.1} parent=63 // pred_check_branch
          %436 = sbr.rel (%p434) target = $region68
        $region67: #{tpu_custom_call.1} parent=63 // pred_region
          %437 = dma.done [#allocation6], 16
        $region68: #{tpu_custom_call.1} parent=63 // pred_fallthru
          _
        %s438 = sand.u32 %s152, 1
        %s439 = scalar_lea.sflag [#allocation4], %s438
        %s440 = sand.u32 %s152, 1
        %s441 = smul.addr %s440, 128
        %s442 = scalar_lea.vmem [#allocation7], %s441
        // Predicated region
        $region69: #{tpu_custom_call.1} parent=63 // pred_check
          %p443 = pneg %p165
        $region70: #{tpu_custom_call.1} parent=63 // pred_check_branch
          %445 = sbr.rel (%p443) target = $region72
        $region71: #{tpu_custom_call.1} parent=63 // pred_region
          %446 = dma.done %s439, 2048
        $region72: #{tpu_custom_call.1} parent=63 // pred_fallthru
          _
        %s447 = sand.u32 %s178, 1
        %s448 = scalar_lea.sflag [#allocation9], %s447
        %s449 = sand.u32 %s178, 1
        %s450 = smul.addr %s449, 128
        %s451 = scalar_lea.vmem [#allocation8], %s450
        // Predicated region
        $region73: #{tpu_custom_call.1} parent=63 // pred_check
          %p452 = pneg %p191
        $region74: #{tpu_custom_call.1} parent=63 // pred_check_branch
          %454 = sbr.rel (%p452) target = $region76
        $region75: #{tpu_custom_call.1} parent=63 // pred_region
          %455 = dma.done %s448, 2048
        $region76: #{tpu_custom_call.1} parent=63 // pred_fallthru
          _
        %456 = sfence
        %p457 = pneg %p50
        %p458 = pneg %p47
        %p459 = pneg %p71
        %p460 = pneg %p68
        %p461 = pneg %p92
        %p462 = pneg %p89
        %p463 = pneg %p113
        %p464 = pneg %p110
        %p465 = scmp.lt.s32.totalorder %s34, 1
        %s466 = scalar_select %p465, %s34, 1
        %s467 = smul.addr %s466, 8
        %s468 = smul.addr %s467, 4
        %s469 = scalar_lea.vmem %s4, %s468
        %p470 = pneg %p139
        %p471 = pneg %p136
        %s472 = sand.u32 %s152, 1
        %s473 = scalar_lea.sflag [#allocation4], %s472
        %s474 = sand.u32 %s152, 1
        %s475 = smul.addr %s474, 128
        %s476 = scalar_lea.vmem [#allocation7], %s475
        %p477 = pneg %p165
        %p478 = pneg %p162
        %s479 = sand.u32 %s178, 1
        %s480 = scalar_lea.sflag [#allocation9], %s479
        %s481 = sand.u32 %s178, 1
        %s482 = smul.addr %s481, 128
        %s483 = scalar_lea.vmem [#allocation8], %s482
        %p484 = pneg %p191
        %p485 = pneg %p188
        %p486 = scmp.lt.s32.totalorder %s34, 1
        %s487 = scalar_select %p486, %s34, 1
        %s488 = smul.addr %s487, 8
        %s489 = scalar_lea.vmem %s7, %s488
        %p490 = pneg %p217
        %p491 = pneg %p214
        %p492 = pneg %p238
        %p493 = pneg %p235
        %p494 = pneg %p259
        %p495 = pneg %p256
        %p496 = pneg %p280
        %p497 = pneg %p277
        %p498 = pneg %p301
        %p499 = pneg %p298
        %p500 = pneg %p322
        %p501 = pneg %p319
        %p502 = scmp.lt.s32.totalorder %s34, 1
        %s503 = scalar_select %p502, %s34, 1
        %s504 = smul.addr %s503, 8
        %s505 = smul.addr %s504, 4
        %s506 = scalar_lea.vmem %s4, %s505
        %p507 = scmp.lt.s32.totalorder %s34, 1
        %s508 = scalar_select %p507, %s34, 1
        %s509 = smul.addr %s508, 8
        %s510 = scalar_lea.vmem %s7, %s509
        %p512 = scmp.eq.s32.totalorder %s34, 0
        // Predicated region
        $region77: #{tpu_custom_call.1} parent=63 // pred_check
          %p513 = pneg %p512
        $region78: #{tpu_custom_call.1} parent=63 // pred_check_branch
          %515 = sbr.rel (%p513) target = $region80
        $region79: #{tpu_custom_call.1} parent=63 // pred_region
          %v516 = vld [vmem:[%s1] sm:$0xff]
          %v517 = vld [vmem:[%s1 + $0x8] sm:$0xff]
          %v518 = vld [vmem:[%s1 + $0x10] sm:$0xff]
          %v519 = vld [vmem:[%s1 + $0x18] sm:$0xff]
          %520 = vst [vmem:[#allocation10] sm:$0xff] %v516
          %521 = vst [vmem:[#allocation10 + $0x8] sm:$0xff] %v517
          %522 = vst [vmem:[#allocation10 + $0x10] sm:$0xff] %v518
          %523 = vst [vmem:[#allocation10 + $0x18] sm:$0xff] %v519
        $region80: #{tpu_custom_call.1} parent=63 // pred_fallthru
          _
        %v524 = vld [vmem:[#allocation10] sm:$0xff]
        %v525 = vld [vmem:[#allocation10 + $0x8] sm:$0xff]
        %v526 = vld [vmem:[#allocation10 + $0x10] sm:$0xff]
        %v527 = vld [vmem:[#allocation10 + $0x18] sm:$0xff]
        %v528 = vpack.c.bf16 %v525, %v524
        %v529 = vpack.c.bf16 %v527, %v526
        %v530 = vld [vmem:[%s2] sm:$0xf]
        %v531 = vld [vmem:[%s2 + $0x4] sm:$0xf]
        %v532 = vld [vmem:[%s2 + $0x8] sm:$0xf]
        %v533 = vld [vmem:[%s2 + $0xc] sm:$0xf]
        %v534 = vld [vmem:[%s2 + $0x10] sm:$0xf]
        %v535 = vld [vmem:[%s2 + $0x14] sm:$0xf]
        %v536 = vld [vmem:[%s2 + $0x18] sm:$0xf]
        %v537 = vld [vmem:[%s2 + $0x1c] sm:$0xf]
        %v538 = vld [vmem:[%s506] sm:$0xf]
        %v539 = vld [vmem:[%s506 + $0x4] sm:$0xf]
        %v540 = vld [vmem:[%s506 + $0x8] sm:$0xf]
        %v541 = vld [vmem:[%s506 + $0xc] sm:$0xf]
        %v542 = vld [vmem:[%s506 + $0x10] sm:$0xf]
        %v543 = vld [vmem:[%s506 + $0x14] sm:$0xf]
        %v544 = vld [vmem:[%s506 + $0x18] sm:$0xf]
        %v545 = vld [vmem:[%s506 + $0x1c] sm:$0xf]
        %v546 = vunpack.c.l.bf16 %v538
        %v547 = vunpack.c.l.bf16 %v539
        %v548 = vunpack.c.l.bf16 %v540
        %v549 = vunpack.c.l.bf16 %v541
        %v550 = vunpack.c.l.bf16 %v542
        %v551 = vunpack.c.l.bf16 %v543
        %v552 = vunpack.c.l.bf16 %v544
        %v553 = vunpack.c.l.bf16 %v545
        %v562 = vunpack.c.l.b16 %v530
        %v563 = vunpack.c.l.b16 %v531
        %v564 = vunpack.c.l.b16 %v532
        %v565 = vunpack.c.l.b16 %v533
        %v566 = vunpack.c.l.b16 %v534
        %v567 = vunpack.c.l.b16 %v535
        %v568 = vunpack.c.l.b16 %v536
        %v569 = vunpack.c.l.b16 %v537
        %v570 = vpack.c.b16 %v563, %v562
        %v571 = vpack.c.b16 %v565, %v564
        %v572 = vpack.c.b16 %v567, %v566
        %v573 = vpack.c.b16 %v569, %v568
        %vm574 = vcmask 261120
        %v576 = vsel %vm574, %v570, 0
        %v579 = vsel %vm574, %v571, 0
        %v582 = vsel %vm574, %v572, 0
        %v585 = vsel %vm574, %v573, 0
        %587 = vmatprep.subr.bf16.mxu0 0
        %588 = vmatpush1.bf16.msra.mxu0 0
        %589 = vmatprep.subr.bf16.mxu0 0
        %590 = vmatpush1.bf16.msra.mxu0 0
        %591 = vmatprep.subr.bf16.mxu0 0
        %592 = vmatpush1.bf16.msra.mxu0 0
        %593 = vmatprep.subr.bf16.mxu0 0
        %594 = vmatpush1.bf16.msra.mxu0 0
        %595 = vmatprep.subr.bf16.mxu0 0
        %596 = vmatpush1.bf16.msra.mxu0 0
        %597 = vmatprep.subr.bf16.mxu0 0
        %598 = vmatpush1.bf16.msra.mxu0 0
        %599 = vmatprep.subr.bf16.mxu0 0
        %600 = vmatpush1.bf16.msra.mxu0 %v529
        %601 = vmatprep.subr.bf16.mxu0 0
        %602 = vmatpush1.bf16.msra.mxu0 %v528
        %603 = vmatprep.subr.bf16.mxu0 0
        %604 = vmatpush2.bf16.msra.mxu0 0
        %605 = vmatprep.subr.bf16.mxu0 0
        %606 = vmatpush2.bf16.msra.mxu0 0
        %607 = vmatprep.subr.bf16.mxu0 0
        %608 = vmatpush2.bf16.msra.mxu0 0
        %609 = vmatprep.subr.bf16.mxu0 0
        %610 = vmatpush2.bf16.msra.mxu0 0
        %611 = vmatprep.subr.bf16.mxu0 0
        %612 = vmatpush2.bf16.msra.mxu0 0
        %613 = vmatprep.subr.bf16.mxu0 0
        %614 = vmatpush2.bf16.msra.mxu0 0
        %615 = vmatprep.subr.bf16.mxu0 0
        %616 = vmatpush2.bf16.msra.mxu0 0
        %617 = vmatprep.subr.bf16.mxu0 0
        %618 = vmatpush2.bf16.msra.mxu0 0
        %619 = vmatprep.mubr.bf16.mxu0 0
        %620 = vmatmul.mubr.bf16.gmra.mxu0 %v576
        %v621 = vpop.f32.mrf.mxu0
        %v622 = vadd.f32 %v546, %v621
        %v623 = vpop.f32.mrf.mxu0
        %v624 = vpop.f32.mrf.mxu0
        %v625 = vadd.f32 %v547, %v624
        %v626 = vpop.f32.mrf.mxu0
        %627 = vmatprep.mubr.bf16.mxu0 0
        %628 = vmatmul.mubr.bf16.gmra.mxu0 %v579
        %v629 = vpop.f32.mrf.mxu0
        %v630 = vadd.f32 %v548, %v629
        %v631 = vpop.f32.mrf.mxu0
        %v632 = vpop.f32.mrf.mxu0
        %v633 = vadd.f32 %v549, %v632
        %v634 = vpop.f32.mrf.mxu0
        %635 = vmatprep.mubr.bf16.mxu0 0
        %636 = vmatmul.mubr.bf16.gmra.mxu0 %v582
        %v637 = vpop.f32.mrf.mxu0
        %v638 = vadd.f32 %v550, %v637
        %v639 = vpop.f32.mrf.mxu0
        %v640 = vpop.f32.mrf.mxu0
        %v641 = vadd.f32 %v551, %v640
        %v642 = vpop.f32.mrf.mxu0
        %643 = vmatprep.mubr.bf16.mxu0 0
        %644 = vmatmul.mubr.bf16.gmra.mxu0 %v585
        %v645 = vpop.f32.mrf.mxu0
        %v646 = vadd.f32 %v552, %v645
        %v647 = vpop.f32.mrf.mxu0
        %v648 = vpop.f32.mrf.mxu0
        %v649 = vadd.f32 %v553, %v648
        %v650 = vpop.f32.mrf.mxu0
        %651 = vdwg.mxu0
        %v652 = vmax.f32 %v622, 0.0
        %v653 = vmax.f32 %v625, 0.0
        %v654 = vmax.f32 %v630, 0.0
        %v655 = vmax.f32 %v633, 0.0
        %v656 = vmax.f32 %v638, 0.0
        %v657 = vmax.f32 %v641, 0.0
        %v658 = vmax.f32 %v646, 0.0
        %v659 = vmax.f32 %v649, 0.0
        %v660 = vld [vmem:[%s3] sm:$0xf]
        %v661 = vld [vmem:[%s3 + $0x4] sm:$0xf]
        %v662 = vld [vmem:[%s3 + $0x8] sm:$0xf]
        %v663 = vld [vmem:[%s3 + $0xc] sm:$0xf]
        %v664 = vld [vmem:[%s3 + $0x10] sm:$0xf]
        %v665 = vld [vmem:[%s3 + $0x14] sm:$0xf]
        %v666 = vld [vmem:[%s3 + $0x18] sm:$0xf]
        %v667 = vld [vmem:[%s3 + $0x1c] sm:$0xf]
        %v668 = vpack.c.bf16 %v653, %v652
        %v669 = vpack.c.bf16 %v655, %v654
        %v670 = vpack.c.bf16 %v657, %v656
        %v671 = vpack.c.bf16 %v659, %v658
        %v680 = vunpack.c.l.b16 %v660
        %v681 = vunpack.c.l.b16 %v661
        %v682 = vunpack.c.l.b16 %v662
        %v683 = vunpack.c.l.b16 %v663
        %v684 = vunpack.c.l.b16 %v664
        %v685 = vunpack.c.l.b16 %v665
        %v686 = vunpack.c.l.b16 %v666
        %v687 = vunpack.c.l.b16 %v667
        %v688 = vpack.c.b16 %v681, %v680
        %v689 = vpack.c.b16 %v683, %v682
        %v690 = vpack.c.b16 %v685, %v684
        %v691 = vpack.c.b16 %v687, %v686
        %696 = vxpose.xlu0.c.b16.start [1/8] %v688, 128
        %697 = vxpose.xlu0.c.b16.cont [2/8] %v689, 128
        %698 = vxpose.xlu0.c.b16.cont [3/8] %v690, 128
        %699 = vxpose.xlu0.c.b16.cont [4/8] %v691, 128
        %700 = vxpose.xlu0.c.b16.cont [5/8] 0, 128
        %701 = vxpose.xlu0.c.b16.cont [6/8] 0, 128
        %702 = vxpose.xlu0.c.b16.cont [7/8] 0, 128
        %703 = vxpose.xlu0.c.b16.end [8/8] 0, 128
        %v704 = vpop.trf.xlu0
        %v705 = vpop.trf.xlu0
        %v706 = vpop.trf.xlu0
        %v707 = vpop.trf.xlu0
        %v708 = vpop.trf.xlu0
        %v709 = vpop.trf.xlu0
        %v710 = vpop.trf.xlu0
        %v711 = vpop.trf.xlu0
        %vm712 = vcmask 523264
        %v714 = vsel %vm712, %v704, 0
        %v717 = vsel %vm712, %v705, 0
        %719 = vmatprep.subr.bf16.mxu0 0
        %720 = vmatpush1.bf16.msra.mxu0 0
        %721 = vmatprep.subr.bf16.mxu0 0
        %722 = vmatpush1.bf16.msra.mxu0 0
        %723 = vmatprep.subr.bf16.mxu0 0
        %724 = vmatpush1.bf16.msra.mxu0 0
        %725 = vmatprep.subr.bf16.mxu0 0
        %726 = vmatpush1.bf16.msra.mxu0 0
        %727 = vmatprep.subr.bf16.mxu0 0
        %728 = vmatpush1.bf16.msra.mxu0 %v671
        %729 = vmatprep.subr.bf16.mxu0 0
        %730 = vmatpush1.bf16.msra.mxu0 %v670
        %731 = vmatprep.subr.bf16.mxu0 0
        %732 = vmatpush1.bf16.msra.mxu0 %v669
        %733 = vmatprep.subr.bf16.mxu0 0
        %734 = vmatpush1.bf16.msra.mxu0 %v668
        %735 = vmatprep.subr.bf16.mxu0 0
        %736 = vmatpush2.bf16.msra.mxu0 0
        %737 = vmatprep.subr.bf16.mxu0 0
        %738 = vmatpush2.bf16.msra.mxu0 0
        %739 = vmatprep.subr.bf16.mxu0 0
        %740 = vmatpush2.bf16.msra.mxu0 0
        %741 = vmatprep.subr.bf16.mxu0 0
        %742 = vmatpush2.bf16.msra.mxu0 0
        %743 = vmatprep.subr.bf16.mxu0 0
        %744 = vmatpush2.bf16.msra.mxu0 0
        %745 = vmatprep.subr.bf16.mxu0 0
        %746 = vmatpush2.bf16.msra.mxu0 0
        %747 = vmatprep.subr.bf16.mxu0 0
        %748 = vmatpush2.bf16.msra.mxu0 0
        %749 = vmatprep.subr.bf16.mxu0 0
        %750 = vmatpush2.bf16.msra.mxu0 0
        %751 = vmatprep.mubr.bf16.mxu0 0
        %752 = vmatmul.mubr.bf16.gmra.mxu0 %v714
        %v753 = vpop.f32.mrf.mxu0
        %v754 = vadd.f32 0.0, %v753
        %v755 = vpop.f32.mrf.mxu0
        %v756 = vpop.f32.mrf.mxu0
        %v757 = vadd.f32 0.0, %v756
        %v758 = vpop.f32.mrf.mxu0
        %759 = vmatprep.mubr.bf16.mxu0 0
        %760 = vmatmul.mubr.bf16.gmra.mxu0 %v717
        %v761 = vpop.f32.mrf.mxu0
        %v762 = vadd.f32 0.0, %v761
        %v763 = vpop.f32.mrf.mxu0
        %v764 = vpop.f32.mrf.mxu0
        %v765 = vadd.f32 0.0, %v764
        %v766 = vpop.f32.mrf.mxu0
        %767 = vdwg.mxu0
        %s768 = sld [smem:[#allocation3 + %s34]]
        %s769 = sadd.f32 %s768, 1.0
        %v770 = vstv %s769
        %v771 = vmul.f32 %v770, %v524
        %v772 = vmul.f32 %v770, %v525
        %v773 = vmul.f32 %v770, %v526
        %v774 = vmul.f32 %v770, %v527
        %v775 = vadd.f32 %v771, %v754
        %v776 = vadd.f32 %v772, %v757
        %v777 = vadd.f32 %v773, %v762
        %v778 = vadd.f32 %v774, %v765
        %v779 = vld [vmem:[%s510] sm:$0xff]
        %v780 = vld [vmem:[%s442] sm:$0xff]
        %v781 = vld [vmem:[%s442 + $0x8] sm:$0xff]
        %v782 = vld [vmem:[%s442 + $0x10] sm:$0xff]
        %v783 = vld [vmem:[%s442 + $0x18] sm:$0xff]
        %v784 = vld [vmem:[%s442 + $0x20] sm:$0xff]
        %v785 = vld [vmem:[%s442 + $0x28] sm:$0xff]
        %v786 = vld [vmem:[%s442 + $0x30] sm:$0xff]
        %v787 = vld [vmem:[%s442 + $0x38] sm:$0xff]
        %v788 = vld [vmem:[%s442 + $0x40] sm:$0xff]
        %v789 = vld [vmem:[%s442 + $0x48] sm:$0xff]
        %v790 = vld [vmem:[%s442 + $0x50] sm:$0xff]
        %v791 = vld [vmem:[%s442 + $0x58] sm:$0xff]
        %v792 = vld [vmem:[%s442 + $0x60] sm:$0xff]
        %v793 = vld [vmem:[%s442 + $0x68] sm:$0xff]
        %v794 = vld [vmem:[%s442 + $0x70] sm:$0xff]
        %v795 = vld [vmem:[%s442 + $0x78] sm:$0xff]
        %v796 = vlaneseq
        %v797 = vshrl.u32 %v796, 7
        %v798 = vsub.s32 0, %v797
        %v799 = vrot.slane %v779, %v798
        %800 = vmatprep.subr.mxu0 0.0
        %801 = vmatpush1.msra.mxu0 %v795
        %802 = vmatprep.subr.mxu0 0.0
        %803 = vmatpush1.msra.mxu0 %v794
        %804 = vmatprep.subr.mxu0 0.0
        %805 = vmatpush1.msra.mxu0 %v793
        %806 = vmatprep.subr.mxu0 0.0
        %807 = vmatpush1.msra.mxu0 %v792
        %808 = vmatprep.subr.mxu0 0.0
        %809 = vmatpush1.msra.mxu0 %v791
        %810 = vmatprep.subr.mxu0 0.0
        %811 = vmatpush1.msra.mxu0 %v790
        %812 = vmatprep.subr.mxu0 0.0
        %813 = vmatpush1.msra.mxu0 %v789
        %814 = vmatprep.subr.mxu0 0.0
        %815 = vmatpush1.msra.mxu0 %v788
        %816 = vmatprep.subr.mxu0 0.0
        %817 = vmatpush1.msra.mxu0 %v787
        %818 = vmatprep.subr.mxu0 0.0
        %819 = vmatpush1.msra.mxu0 %v786
        %820 = vmatprep.subr.mxu0 0.0
        %821 = vmatpush1.msra.mxu0 %v785
        %822 = vmatprep.subr.mxu0 0.0
        %823 = vmatpush1.msra.mxu0 %v784
        %824 = vmatprep.subr.mxu0 0.0
        %825 = vmatpush1.msra.mxu0 %v783
        %826 = vmatprep.subr.mxu0 0.0
        %827 = vmatpush1.msra.mxu0 %v782
        %828 = vmatprep.subr.mxu0 0.0
        %829 = vmatpush1.msra.mxu0 %v781
        %830 = vmatprep.subr.mxu0 0.0
        %831 = vmatpush1.msra.mxu0 %v780
        %832 = vmatprep.subr.mxu0 0.0
        %833 = vmatpush2.msra.mxu0 0.0
        %834 = vmatprep.subr.mxu0 0.0
        %835 = vmatpush2.msra.mxu0 0.0
        %836 = vmatprep.subr.mxu0 0.0
        %837 = vmatpush2.msra.mxu0 0.0
        %838 = vmatprep.subr.mxu0 0.0
        %839 = vmatpush2.msra.mxu0 0.0
        %840 = vmatprep.subr.mxu0 0.0
        %841 = vmatpush2.msra.mxu0 0.0
        %842 = vmatprep.subr.mxu0 0.0
        %843 = vmatpush2.msra.mxu0 0.0
        %844 = vmatprep.subr.mxu0 0.0
        %845 = vmatpush2.msra.mxu0 0.0
        %846 = vmatprep.subr.mxu0 0.0
        %847 = vmatpush2.msra.mxu0 0.0
        %848 = vmatprep.subr.mxu0 0.0
        %849 = vmatpush2.msra.mxu0 0.0
        %850 = vmatprep.subr.mxu0 0.0
        %851 = vmatpush2.msra.mxu0 0.0
        %852 = vmatprep.subr.mxu0 0.0
        %853 = vmatpush2.msra.mxu0 0.0
        %854 = vmatprep.subr.mxu0 0.0
        %855 = vmatpush2.msra.mxu0 0.0
        %856 = vmatprep.subr.mxu0 0.0
        %857 = vmatpush2.msra.mxu0 0.0
        %858 = vmatprep.subr.mxu0 0.0
        %859 = vmatpush2.msra.mxu0 0.0
        %860 = vmatprep.subr.mxu0 0.0
        %861 = vmatpush2.msra.mxu0 0.0
        %862 = vmatprep.subr.mxu0 0.0
        %863 = vmatpush2.msra.mxu0 0.0
        %864 = vmatprep.mubr.f32.mxu0 0.0
        %865 = vmatmul.mubr.f32.gmra.mxu0 %v775
        %v866 = vpop.f32.mrf.mxu0
        %v867 = vadd.f32 %v799, %v866
        %v868 = vpop.f32.mrf.mxu0
        %869 = vmatprep.mubr.f32.mxu0 0.0
        %870 = vmatmul.mubr.f32.gmra.mxu0 %v776
        %v871 = vpop.f32.mrf.mxu0
        %v872 = vadd.f32 %v799, %v871
        %v873 = vpop.f32.mrf.mxu0
        %874 = vmatprep.mubr.f32.mxu0 0.0
        %875 = vmatmul.mubr.f32.gmra.mxu0 %v777
        %v876 = vpop.f32.mrf.mxu0
        %v877 = vadd.f32 %v799, %v876
        %v878 = vpop.f32.mrf.mxu0
        %879 = vmatprep.mubr.f32.mxu0 0.0
        %880 = vmatmul.mubr.f32.gmra.mxu0 %v778
        %v881 = vpop.f32.mrf.mxu0
        %v882 = vadd.f32 %v799, %v881
        %v883 = vpop.f32.mrf.mxu0
        %884 = vdwg.mxu0
        %v885 = vadd.f32 %v867, %v872
        %v886 = vadd.f32 %v885, %v877
        %v887 = vadd.f32 %v886, %v882
        %v888 = vrot.slane %v887, 4
        %v889 = vadd.f32 %v887, %v888
        %v890 = vrot.slane %v889, 2
        %v891 = vadd.f32 %v889, %v890
        %v892 = vrot.slane %v891, 1
        %v893 = vadd.f32 %v891, %v892
        %v894 = vrcp.pop 32.0
        %v895 = vmul.f32 %v893, %v894
        %v896 = vsub.f32 %v867, %v895
        %v897 = vsub.f32 %v872, %v895
        %v898 = vsub.f32 %v877, %v895
        %v899 = vsub.f32 %v882, %v895
        %v900 = vmul.f32 %v896, %v896
        %v901 = vmul.f32 %v897, %v897
        %v902 = vmul.f32 %v898, %v898
        %v903 = vmul.f32 %v899, %v899
        %v904 = vadd.f32 %v900, %v901
        %v905 = vadd.f32 %v904, %v902
        %v906 = vadd.f32 %v905, %v903
        %v907 = vrot.slane %v906, 4
        %v908 = vadd.f32 %v906, %v907
        %v909 = vrot.slane %v908, 2
        %v910 = vadd.f32 %v908, %v909
        %v911 = vrot.slane %v910, 1
        %v912 = vadd.f32 %v910, %v911
        %v913 = vmul.f32 %v912, %v894
        %v914 = vadd.f32 %v913, 1e-05
        %v915 = vrsqrt.pop %v914
        %v916 = vmul.f32 %v896, %v915
        %v917 = vmul.f32 %v897, %v915
        %v918 = vmul.f32 %v898, %v915
        %v919 = vmul.f32 %v899, %v915
        %v920 = vlaneseq
        %v921 = vshrl.u32 %v920, 7
        %v922 = vsub.s32 1, %v921
        %v923 = vrot.slane %v779, %v922
        %v924 = vmul.f32 %v916, %v923
        %v925 = vmul.f32 %v917, %v923
        %v926 = vmul.f32 %v918, %v923
        %v927 = vmul.f32 %v919, %v923
        %v928 = vlaneseq
        %v929 = vshrl.u32 %v928, 7
        %v930 = vsub.s32 2, %v929
        %v931 = vrot.slane %v779, %v930
        %v932 = vadd.f32 %v924, %v931
        %v933 = vadd.f32 %v925, %v931
        %v934 = vadd.f32 %v926, %v931
        %v935 = vadd.f32 %v927, %v931
        %v936 = vmax.f32 %v932, 0.0
        %v937 = vmax.f32 %v933, 0.0
        %v938 = vmax.f32 %v934, 0.0
        %v939 = vmax.f32 %v935, 0.0
        %v940 = vld [vmem:[%s451] sm:$0xff]
        %v941 = vld [vmem:[%s451 + $0x8] sm:$0xff]
        %v942 = vld [vmem:[%s451 + $0x10] sm:$0xff]
        %v943 = vld [vmem:[%s451 + $0x18] sm:$0xff]
        %v944 = vld [vmem:[%s451 + $0x20] sm:$0xff]
        %v945 = vld [vmem:[%s451 + $0x28] sm:$0xff]
        %v946 = vld [vmem:[%s451 + $0x30] sm:$0xff]
        %v947 = vld [vmem:[%s451 + $0x38] sm:$0xff]
        %v948 = vld [vmem:[%s451 + $0x40] sm:$0xff]
        %v949 = vld [vmem:[%s451 + $0x48] sm:$0xff]
        %v950 = vld [vmem:[%s451 + $0x50] sm:$0xff]
        %v951 = vld [vmem:[%s451 + $0x58] sm:$0xff]
        %v952 = vld [vmem:[%s451 + $0x60] sm:$0xff]
        %v953 = vld [vmem:[%s451 + $0x68] sm:$0xff]
        %v954 = vld [vmem:[%s451 + $0x70] sm:$0xff]
        %v955 = vld [vmem:[%s451 + $0x78] sm:$0xff]
        %v956 = vlaneseq
        %v957 = vshrl.u32 %v956, 7
        %v958 = vsub.s32 3, %v957
        %v959 = vrot.slane %v779, %v958
        %960 = vmatprep.subr.mxu0 0.0
        %961 = vmatpush1.msra.mxu0 %v955
        %962 = vmatprep.subr.mxu0 0.0
        %963 = vmatpush1.msra.mxu0 %v954
        %964 = vmatprep.subr.mxu0 0.0
        %965 = vmatpush1.msra.mxu0 %v953
        %966 = vmatprep.subr.mxu0 0.0
        %967 = vmatpush1.msra.mxu0 %v952
        %968 = vmatprep.subr.mxu0 0.0
        %969 = vmatpush1.msra.mxu0 %v951
        %970 = vmatprep.subr.mxu0 0.0
        %971 = vmatpush1.msra.mxu0 %v950
        %972 = vmatprep.subr.mxu0 0.0
        %973 = vmatpush1.msra.mxu0 %v949
        %974 = vmatprep.subr.mxu0 0.0
        %975 = vmatpush1.msra.mxu0 %v948
        %976 = vmatprep.subr.mxu0 0.0
        %977 = vmatpush1.msra.mxu0 %v947
        %978 = vmatprep.subr.mxu0 0.0
        %979 = vmatpush1.msra.mxu0 %v946
        %980 = vmatprep.subr.mxu0 0.0
        %981 = vmatpush1.msra.mxu0 %v945
        %982 = vmatprep.subr.mxu0 0.0
        %983 = vmatpush1.msra.mxu0 %v944
        %984 = vmatprep.subr.mxu0 0.0
        %985 = vmatpush1.msra.mxu0 %v943
        %986 = vmatprep.subr.mxu0 0.0
        %987 = vmatpush1.msra.mxu0 %v942
        %988 = vmatprep.subr.mxu0 0.0
        %989 = vmatpush1.msra.mxu0 %v941
        %990 = vmatprep.subr.mxu0 0.0
        %991 = vmatpush1.msra.mxu0 %v940
        %992 = vmatprep.subr.mxu0 0.0
        %993 = vmatpush2.msra.mxu0 0.0
        %994 = vmatprep.subr.mxu0 0.0
        %995 = vmatpush2.msra.mxu0 0.0
        %996 = vmatprep.subr.mxu0 0.0
        %997 = vmatpush2.msra.mxu0 0.0
        %998 = vmatprep.subr.mxu0 0.0
        %999 = vmatpush2.msra.mxu0 0.0
        %1000 = vmatprep.subr.mxu0 0.0
        %1001 = vmatpush2.msra.mxu0 0.0
        %1002 = vmatprep.subr.mxu0 0.0
        %1003 = vmatpush2.msra.mxu0 0.0
        %1004 = vmatprep.subr.mxu0 0.0
        %1005 = vmatpush2.msra.mxu0 0.0
        %1006 = vmatprep.subr.mxu0 0.0
        %1007 = vmatpush2.msra.mxu0 0.0
        %1008 = vmatprep.subr.mxu0 0.0
        %1009 = vmatpush2.msra.mxu0 0.0
        %1010 = vmatprep.subr.mxu0 0.0
        %1011 = vmatpush2.msra.mxu0 0.0
        %1012 = vmatprep.subr.mxu0 0.0
        %1013 = vmatpush2.msra.mxu0 0.0
        %1014 = vmatprep.subr.mxu0 0.0
        %1015 = vmatpush2.msra.mxu0 0.0
        %1016 = vmatprep.subr.mxu0 0.0
        %1017 = vmatpush2.msra.mxu0 0.0
        %1018 = vmatprep.subr.mxu0 0.0
        %1019 = vmatpush2.msra.mxu0 0.0
        %1020 = vmatprep.subr.mxu0 0.0
        %1021 = vmatpush2.msra.mxu0 0.0
        %1022 = vmatprep.subr.mxu0 0.0
        %1023 = vmatpush2.msra.mxu0 0.0
        %1024 = vmatprep.mubr.f32.mxu0 0.0
        %1025 = vmatmul.mubr.f32.gmra.mxu0 %v936
        %v1026 = vpop.f32.mrf.mxu0
        %v1027 = vadd.f32 %v959, %v1026
        %v1028 = vpop.f32.mrf.mxu0
        %1029 = vmatprep.mubr.f32.mxu0 0.0
        %1030 = vmatmul.mubr.f32.gmra.mxu0 %v937
        %v1031 = vpop.f32.mrf.mxu0
        %v1032 = vadd.f32 %v959, %v1031
        %v1033 = vpop.f32.mrf.mxu0
        %1034 = vmatprep.mubr.f32.mxu0 0.0
        %1035 = vmatmul.mubr.f32.gmra.mxu0 %v938
        %v1036 = vpop.f32.mrf.mxu0
        %v1037 = vadd.f32 %v959, %v1036
        %v1038 = vpop.f32.mrf.mxu0
        %1039 = vmatprep.mubr.f32.mxu0 0.0
        %1040 = vmatmul.mubr.f32.gmra.mxu0 %v939
        %v1041 = vpop.f32.mrf.mxu0
        %v1042 = vadd.f32 %v959, %v1041
        %v1043 = vpop.f32.mrf.mxu0
        %1044 = vdwg.mxu0
        %v1045 = vadd.f32 %v1027, %v1032
        %v1046 = vadd.f32 %v1045, %v1037
        %v1047 = vadd.f32 %v1046, %v1042
        %v1048 = vrot.slane %v1047, 4
        %v1049 = vadd.f32 %v1047, %v1048
        %v1050 = vrot.slane %v1049, 2
        %v1051 = vadd.f32 %v1049, %v1050
        %v1052 = vrot.slane %v1051, 1
        %v1053 = vadd.f32 %v1051, %v1052
        %v1054 = vmul.f32 %v1053, %v894
        %v1055 = vsub.f32 %v1027, %v1054
        %v1056 = vsub.f32 %v1032, %v1054
        %v1057 = vsub.f32 %v1037, %v1054
        %v1058 = vsub.f32 %v1042, %v1054
        %v1059 = vmul.f32 %v1055, %v1055
        %v1060 = vmul.f32 %v1056, %v1056
        %v1061 = vmul.f32 %v1057, %v1057
        %v1062 = vmul.f32 %v1058, %v1058
        %v1063 = vadd.f32 %v1059, %v1060
        %v1064 = vadd.f32 %v1063, %v1061
        %v1065 = vadd.f32 %v1064, %v1062
        %v1066 = vrot.slane %v1065, 4
        %v1067 = vadd.f32 %v1065, %v1066
        %v1068 = vrot.slane %v1067, 2
        %v1069 = vadd.f32 %v1067, %v1068
        %v1070 = vrot.slane %v1069, 1
        %v1071 = vadd.f32 %v1069, %v1070
        %v1072 = vmul.f32 %v1071, %v894
        %v1073 = vadd.f32 %v1072, 1e-05
        %v1074 = vrsqrt.pop %v1073
        %v1075 = vmul.f32 %v1055, %v1074
        %v1076 = vmul.f32 %v1056, %v1074
        %v1077 = vmul.f32 %v1057, %v1074
        %v1078 = vmul.f32 %v1058, %v1074
        %v1079 = vlaneseq
        %v1080 = vshrl.u32 %v1079, 7
        %v1081 = vsub.s32 4, %v1080
        %v1082 = vrot.slane %v779, %v1081
        %v1083 = vmul.f32 %v1075, %v1082
        %v1084 = vmul.f32 %v1076, %v1082
        %v1085 = vmul.f32 %v1077, %v1082
        %v1086 = vmul.f32 %v1078, %v1082
        %v1087 = vlaneseq
        %v1088 = vshrl.u32 %v1087, 7
        %v1089 = vsub.s32 5, %v1088
        %v1090 = vrot.slane %v779, %v1089
        %v1091 = vadd.f32 %v1083, %v1090
        %v1092 = vadd.f32 %v1084, %v1090
        %v1093 = vadd.f32 %v1085, %v1090
        %v1094 = vadd.f32 %v1086, %v1090
        %p1095 = scmp.eq.s32.totalorder %s34, 1
        %p1096 = scmp.ne.s32.totalorder %s34, 1
        // Predicated region
        $region81: #{tpu_custom_call.1} parent=63 // pred_check
          %p1097 = pneg %p1096
        $region82: #{tpu_custom_call.1} parent=63 // pred_check_branch
          %1099 = sbr.rel (%p1097) target = $region84
        $region83: #{tpu_custom_call.1} parent=63 // pred_region
          %v1100 = vmax.f32 %v1091, 0.0
          %v1101 = vmax.f32 %v1092, 0.0
          %v1102 = vmax.f32 %v1093, 0.0
          %v1103 = vmax.f32 %v1094, 0.0
          %1104 = vst [vmem:[#allocation10] sm:$0xff] %v1100
          %1105 = vst [vmem:[#allocation10 + $0x8] sm:$0xff] %v1101
          %1106 = vst [vmem:[#allocation10 + $0x10] sm:$0xff] %v1102
          %1107 = vst [vmem:[#allocation10 + $0x18] sm:$0xff] %v1103
        $region84: #{tpu_custom_call.1} parent=63 // pred_fallthru
          _
        // Predicated region
        $region85: #{tpu_custom_call.1} parent=63 // pred_check
          %p1108 = pneg %p1095
        $region86: #{tpu_custom_call.1} parent=63 // pred_check_branch
          %1110 = sbr.rel (%p1108) target = $region88
        $region87: #{tpu_custom_call.1} parent=63 // pred_region
          %1111 = vst [vmem:[#allocation10] sm:$0xff] %v1091
          %1112 = vst [vmem:[#allocation10 + $0x8] sm:$0xff] %v1092
          %1113 = vst [vmem:[#allocation10 + $0x10] sm:$0xff] %v1093
          %1114 = vst [vmem:[#allocation10 + $0x18] sm:$0xff] %v1094
          %v1115 = vld [vmem:[%s8] sm:$0xf]
          %v1117 = vsel %vm574, %v1115, 0
          %1119 = vmatprep.subr.mxu0 0.0
          %1120 = vmatpush1.msra.mxu0 0.0
          %1121 = vmatprep.subr.mxu0 0.0
          %1122 = vmatpush1.msra.mxu0 0.0
          %1123 = vmatprep.subr.mxu0 0.0
          %1124 = vmatpush1.msra.mxu0 0.0
          %1125 = vmatprep.subr.mxu0 0.0
          %1126 = vmatpush1.msra.mxu0 0.0
          %1127 = vmatprep.subr.mxu0 0.0
          %1128 = vmatpush1.msra.mxu0 0.0
          %1129 = vmatprep.subr.mxu0 0.0
          %1130 = vmatpush1.msra.mxu0 0.0
          %1131 = vmatprep.subr.mxu0 0.0
          %1132 = vmatpush1.msra.mxu0 0.0
          %1133 = vmatprep.subr.mxu0 0.0
          %1134 = vmatpush1.msra.mxu0 0.0
          %1135 = vmatprep.subr.mxu0 0.0
          %1136 = vmatpush1.msra.mxu0 0.0
          %1137 = vmatprep.subr.mxu0 0.0
          %1138 = vmatpush1.msra.mxu0 0.0
          %1139 = vmatprep.subr.mxu0 0.0
          %1140 = vmatpush1.msra.mxu0 0.0
          %1141 = vmatprep.subr.mxu0 0.0
          %1142 = vmatpush1.msra.mxu0 0.0
          %1143 = vmatprep.subr.mxu0 0.0
          %1144 = vmatpush1.msra.mxu0 %v1094
          %1145 = vmatprep.subr.mxu0 0.0
          %1146 = vmatpush1.msra.mxu0 %v1093
          %1147 = vmatprep.subr.mxu0 0.0
          %1148 = vmatpush1.msra.mxu0 %v1092
          %1149 = vmatprep.subr.mxu0 0.0
          %1150 = vmatpush1.msra.mxu0 %v1091
          %1151 = vmatprep.subr.mxu0 0.0
          %1152 = vmatpush2.msra.mxu0 0.0
          %1153 = vmatprep.subr.mxu0 0.0
          %1154 = vmatpush2.msra.mxu0 0.0
          %1155 = vmatprep.subr.mxu0 0.0
          %1156 = vmatpush2.msra.mxu0 0.0
          %1157 = vmatprep.subr.mxu0 0.0
          %1158 = vmatpush2.msra.mxu0 0.0
          %1159 = vmatprep.subr.mxu0 0.0
          %1160 = vmatpush2.msra.mxu0 0.0
          %1161 = vmatprep.subr.mxu0 0.0
          %1162 = vmatpush2.msra.mxu0 0.0
          %1163 = vmatprep.subr.mxu0 0.0
          %1164 = vmatpush2.msra.mxu0 0.0
          %1165 = vmatprep.subr.mxu0 0.0
          %1166 = vmatpush2.msra.mxu0 0.0
          %1167 = vmatprep.subr.mxu0 0.0
          %1168 = vmatpush2.msra.mxu0 0.0
          %1169 = vmatprep.subr.mxu0 0.0
          %1170 = vmatpush2.msra.mxu0 0.0
          %1171 = vmatprep.subr.mxu0 0.0
          %1172 = vmatpush2.msra.mxu0 0.0
          %1173 = vmatprep.subr.mxu0 0.0
          %1174 = vmatpush2.msra.mxu0 0.0
          %1175 = vmatprep.subr.mxu0 0.0
          %1176 = vmatpush2.msra.mxu0 0.0
          %1177 = vmatprep.subr.mxu0 0.0
          %1178 = vmatpush2.msra.mxu0 0.0
          %1179 = vmatprep.subr.mxu0 0.0
          %1180 = vmatpush2.msra.mxu0 0.0
          %1181 = vmatprep.subr.mxu0 0.0
          %1182 = vmatpush2.msra.mxu0 0.0
          %1183 = vmatprep.mubr.f32.mxu0 0.0
          %1184 = vmatmul.mubr.f32.gmra.mxu0 %v1117
          %v1185 = vpop.f32.mrf.mxu0
          %v1186 = vadd.f32 0.0, %v1185
          %v1187 = vpop.f32.mrf.mxu0
          %1188 = vdwg.mxu0
          %v1189 = vld [vmem:[%s9] sm:$0xff]
          %v1190 = vld [vmem:[%s9 + $0x8] sm:$0xff]
          %v1191 = vld [vmem:[%s9 + $0x10] sm:$0xff]
          %v1192 = vld [vmem:[%s9 + $0x18] sm:$0xff]
          %v1193 = vld [vmem:[%s9 + $0x20] sm:$0xff]
          %v1194 = vld [vmem:[%s9 + $0x28] sm:$0xff]
          %v1195 = vld [vmem:[%s9 + $0x30] sm:$0xff]
          %v1196 = vld [vmem:[%s9 + $0x38] sm:$0xff]
          %v1197 = vld [vmem:[%s9 + $0x40] sm:$0xff]
          %v1198 = vld [vmem:[%s9 + $0x48] sm:$0xff]
          %v1199 = vld [vmem:[%s9 + $0x50] sm:$0xff]
          %v1200 = vld [vmem:[%s9 + $0x58] sm:$0xff]
          %v1201 = vld [vmem:[%s9 + $0x60] sm:$0xff]
          %v1202 = vld [vmem:[%s9 + $0x68] sm:$0xff]
          %v1203 = vld [vmem:[%s9 + $0x70] sm:$0xff]
          %v1204 = vld [vmem:[%s9 + $0x78] sm:$0xff]
          %v1205 = vld [vmem:[#allocation2] sm:$0x1]
          %v1207 = vlaneseq
          %v1208 = vshrl.u32 %v1207, 7
          %v1209 = vsub.s32 0, %v1208
          %v1210 = vrot.slane %v1205, %v1209
          %1212 = vmatprep.subr.mxu0 0.0
          %1213 = vmatpush1.msra.mxu0 %v1204
          %1214 = vmatprep.subr.mxu0 0.0
          %1215 = vmatpush1.msra.mxu0 %v1203
          %1216 = vmatprep.subr.mxu0 0.0
          %1217 = vmatpush1.msra.mxu0 %v1202
          %1218 = vmatprep.subr.mxu0 0.0
          %1219 = vmatpush1.msra.mxu0 %v1201
          %1220 = vmatprep.subr.mxu0 0.0
          %1221 = vmatpush1.msra.mxu0 %v1200
          %1222 = vmatprep.subr.mxu0 0.0
          %1223 = vmatpush1.msra.mxu0 %v1199
          %1224 = vmatprep.subr.mxu0 0.0
          %1225 = vmatpush1.msra.mxu0 %v1198
          %1226 = vmatprep.subr.mxu0 0.0
          %1227 = vmatpush1.msra.mxu0 %v1197
          %1228 = vmatprep.subr.mxu0 0.0
          %1229 = vmatpush1.msra.mxu0 %v1196
          %1230 = vmatprep.subr.mxu0 0.0
          %1231 = vmatpush1.msra.mxu0 %v1195
          %1232 = vmatprep.subr.mxu0 0.0
          %1233 = vmatpush1.msra.mxu0 %v1194
          %1234 = vmatprep.subr.mxu0 0.0
          %1235 = vmatpush1.msra.mxu0 %v1193
          %1236 = vmatprep.subr.mxu0 0.0
          %1237 = vmatpush1.msra.mxu0 %v1192
          %1238 = vmatprep.subr.mxu0 0.0
          %1239 = vmatpush1.msra.mxu0 %v1191
          %1240 = vmatprep.subr.mxu0 0.0
          %1241 = vmatpush1.msra.mxu0 %v1190
          %1242 = vmatprep.subr.mxu0 0.0
          %1243 = vmatpush1.msra.mxu0 %v1189
          %1244 = vmatprep.subr.mxu0 0.0
          %1245 = vmatpush2.msra.mxu0 0.0
          %1246 = vmatprep.subr.mxu0 0.0
          %1247 = vmatpush2.msra.mxu0 0.0
          %1248 = vmatprep.subr.mxu0 0.0
          %1249 = vmatpush2.msra.mxu0 0.0
          %1250 = vmatprep.subr.mxu0 0.0
          %1251 = vmatpush2.msra.mxu0 0.0
          %1252 = vmatprep.subr.mxu0 0.0
          %1253 = vmatpush2.msra.mxu0 0.0
          %1254 = vmatprep.subr.mxu0 0.0
          %1255 = vmatpush2.msra.mxu0 0.0
          %1256 = vmatprep.subr.mxu0 0.0
          %1257 = vmatpush2.msra.mxu0 0.0
          %1258 = vmatprep.subr.mxu0 0.0
          %1259 = vmatpush2.msra.mxu0 0.0
          %1260 = vmatprep.subr.mxu0 0.0
          %1261 = vmatpush2.msra.mxu0 0.0
          %1262 = vmatprep.subr.mxu0 0.0
          %1263 = vmatpush2.msra.mxu0 0.0
          %1264 = vmatprep.subr.mxu0 0.0
          %1265 = vmatpush2.msra.mxu0 0.0
          %1266 = vmatprep.subr.mxu0 0.0
          %1267 = vmatpush2.msra.mxu0 0.0
          %1268 = vmatprep.subr.mxu0 0.0
          %1269 = vmatpush2.msra.mxu0 0.0
          %1270 = vmatprep.subr.mxu0 0.0
          %1271 = vmatpush2.msra.mxu0 0.0
          %1272 = vmatprep.subr.mxu0 0.0
          %1273 = vmatpush2.msra.mxu0 0.0
          %1274 = vmatprep.subr.mxu0 0.0
          %1275 = vmatpush2.msra.mxu0 0.0
          %1276 = vmatprep.mubr.f32.mxu0 0.0
          %1277 = vmatmul.mubr.f32.gmra.mxu0 %v1186
          %v1278 = vpop.f32.mrf.mxu0
          %v1279 = vadd.f32 %v1210, %v1278
          %v1280 = vpop.f32.mrf.mxu0
          %1281 = vdwg.mxu0
          %vm1282 = vcmask 3072
          %1283 = vst.msk [vmem:[%s12] sm:$0xf] %vm1282, %v1279
        $region88: #{tpu_custom_call.1} parent=63 // pred_fallthru
          _
        // Predicated region
        $region89: #{tpu_custom_call.1} parent=63 // pred_check
          %p1284 = pneg %p298
        $region90: #{tpu_custom_call.1} parent=63 // pred_check_branch
          %1286 = sbr.rel (%p1284) target = $region92
        $region91: #{tpu_custom_call.1} parent=63 // pred_region
          %s1288 = ssub.s32 512, 512
          %1289 = vsyncadd [#allocation5], %s1288
          %s1290 = sshll.u32 [#allocation10], 4
          %s1291 = int_to_ptr.vmem [resolvable:$true] %s1290
          %1296 = dma.vmem_to_hbm [thread:$0]  %s1291, 512, %s11, [#allocation5], 128, 128, 8
        $region92: #{tpu_custom_call.1} parent=63 // pred_fallthru
          _
        // Predicated region
        $region93: #{tpu_custom_call.1} parent=63 // pred_check
          %p1297 = pneg %p319
        $region94: #{tpu_custom_call.1} parent=63 // pred_check_branch
          %1299 = sbr.rel (%p1297) target = $region96
        $region95: #{tpu_custom_call.1} parent=63 // pred_region
          _
        $region96: #{tpu_custom_call.1} parent=63 // pred_fallthru
          _
        // Predicated region
        $region97: #{tpu_custom_call.1} parent=63 // pred_check
          %p1300 = pneg %p298
        $region98: #{tpu_custom_call.1} parent=63 // pred_check_branch
          %1302 = sbr.rel (%p1300) target = $region100
        $region99: #{tpu_custom_call.1} parent=63 // pred_region
          %1303 = dma.done [#allocation5], 512
        $region100: #{tpu_custom_call.1} parent=63 // pred_fallthru
          _
        // Predicated region
        $region101: #{tpu_custom_call.1} parent=63 // pred_check
          %p1304 = pneg %p319
        $region102: #{tpu_custom_call.1} parent=63 // pred_check_branch
          %1306 = sbr.rel (%p1304) target = $region104
        $region103: #{tpu_custom_call.1} parent=63 // pred_region
          _
        $region104: #{tpu_custom_call.1} parent=63 // pred_fallthru
          _
      $region64: #{tpu_custom_call.1} parent=5 // pred_fallthru
        _
      %p1307 = scmp.le.s32.totalorder 2, %s29
      // Predicated region
      $region105: #{tpu_custom_call.1} parent=5 // pred_check
        %p1308 = pneg %p1307
      $region106: #{tpu_custom_call.1} parent=5 // pred_check_branch
        %1310 = sbr.rel (%p1308) target = $region108
      $region107: #{tpu_custom_call.1} parent=5 // pred_region
        %s1311 = ssub.s32 %s29, 2
      $region108: #{tpu_custom_call.1} parent=5 // pred_fallthru
        _
    $region6: #{tpu_custom_call.1} parent=1 // loop_footer
      %s33 = sadd.s32 1, %s29
    $region7: #{tpu_custom_call.1} parent=1 // loop_footer_branch
      %28 = sbr.rel target = $region3
    $region8: #{tpu_custom_call.1} parent=1 // loop_exit
      _
    %1312 = vsyncpa [#allocation4], 1
    %s1313 = scalar_lea.sflag [#allocation4], 1
    %1314 = vsyncpa %s1313, 1
    %1315 = vsyncpa [#allocation9], 1
    %s1316 = scalar_lea.sflag [#allocation9], 1
    %1317 = vsyncpa %s1316, 1
    %1318 = vsyncpa [#allocation5], 1
    %s1319 = scalar_lea.sflag [#allocation5], 1
    %1320 = vsyncpa %s1319, 1
    %1321 = vsyncpa [#allocation6], 1
    %s1322 = scalar_lea.sflag [#allocation6], 1
    %1323 = vsyncpa %s1322, 1

// kernel: tpu_custom_call.1
$region0: #{tpu_custom_call.1}
  #allocation0 [shape = 'u32[]', space=smem, size = 0x4, offset = 0x4, fixed_abs, tag = 'smem constant byte address 0x4 - core index']
  #allocation1 [shape = 'u32[144,128]{1,0:T(1,128)}', space=vmem, size = 0x12000, scoped, tag = 'internal scratch']
  #allocation2 [shape = 'f32[1,1]{1,0:T(1,128)S(1)}', space=vmem, size = 0x200, scoped, tag = 'scoped memory for tpu_custom_call.1']
  %s0 = inlined_call_operand.vmem [shape: f32[2], index: 0, kind: input, shape index: {}]
  %s1 = inlined_call_operand.vmem [shape: f32[32,128], index: 1, kind: input, shape index: {}]
  %s2 = inlined_call_operand.vmem [shape: bf16[64,32], index: 2, kind: input, shape index: {}]
  %s3 = inlined_call_operand.vmem [shape: bf16[64,32], index: 3, kind: input, shape index: {}]
  %s4 = inlined_call_operand.vmem [shape: bf16[2,64,128], index: 4, kind: input, shape index: {}]
  %s5 = inlined_call_operand.hbm [shape: f32[2,128,128], index: 5, kind: input, shape index: {}]
  %s6 = inlined_call_operand.hbm [shape: f32[2,128,128], index: 6, kind: input, shape index: {}]
  %s7 = inlined_call_operand.vmem [shape: f32[2,8,128], index: 7, kind: input, shape index: {}]
  %s8 = inlined_call_operand.vmem [shape: f32[4,32], index: 8, kind: input, shape index: {}]
  %s9 = inlined_call_operand.vmem [shape: f32[128,1], index: 9, kind: input, shape index: {}]
  %s10 = inlined_call_operand.<no memory space> [shape: f32[1,1], index: 10, kind: input, shape index: {}]
  %s11 = inlined_call_operand.hbm [shape: f32[32,128], index: 11, kind: output, shape index: {0}]
  %s12 = inlined_call_operand.vmem [shape: f32[4,1], index: 12, kind: output, shape index: {1}]
  %13 = xla_tuple %s11, %s12
  %s14 = sld [smem:[#allocation0]]
  $region109: #{tpu_custom_call.1} parent=0
    _
  %s16 = ssub.s32 1, %s14
  %s17 = scalar_select 0, %s16, %s14
  %v18 = vstv %s10
  %19 = vst [vmem:[#allocation2] sm:$0x1] %v18
  $region1: #{tpu_custom_call.1} parent=0
    #allocation3 [shape = 'u8[512]{0}', space=smem, size = 0x200, scoped, tag = 'input window, operand 0, single buffered']
    #allocation4 [shape = 's32[2]{0}', space=sflag, size = 0x8, scoped, tag = 'scoped memory for tpu_custom_call.1']
    #allocation5 [shape = 's32[2]{0}', space=sflag, size = 0x8, scoped, tag = 'scoped memory for tpu_custom_call.1']
    #allocation6 [shape = 's32[2]{0}', space=sflag, size = 0x8, scoped, tag = 'scoped memory for tpu_custom_call.1']
    #allocation7 [shape = 'u8[131072]{0}', space=vmem, size = 0x20000, scoped, tag = 'input window, operand 5']
    #allocation8 [shape = 'u8[131072]{0}', space=vmem, size = 0x20000, scoped, tag = 'input window, operand 6']
    #allocation9 [shape = 's32[2]{0}', space=sflag, size = 0x8, scoped, tag = 'scoped memory for tpu_custom_call.1']
    #allocation10 [shape = 'u8[16384]{0}', space=vmem, size = 0x4000, scoped, tag = 'output window, operand 0, single buffered']
    %20 = vsyncpa [#allocation6], 0
    %21 = vsyncpa [#allocation4], 0
    %s22 = scalar_lea.sflag [#allocation4], 1
    %23 = vsyncpa %s22, 0
    %24 = vsyncpa [#allocation9], 0
    %s25 = scalar_lea.sflag [#allocation9], 1
    %26 = vsyncpa %s25, 0
    %27 = vsyncpa [#allocation5], 0
    loop: start=0, step=1, limit=4
    $region2: #{tpu_custom_call.1} parent=1 // loop_pre_header
      _
    $region3: #{tpu_custom_call.1} parent=1 // loop_header
      %s29 = sphi 0, %s33
      %p30 = scmp.ge.s32.totalorder %s29, 4
      %s37 = sphi 0, %s37
      %s39 = sphi 0, %s37
      %s40 = sphi 0, %s39
      %s54 = sphi 0, %s40
      %s58 = sphi 0, %s58
      %s60 = sphi 0, %s58
      %s61 = sphi 0, %s60
      %s75 = sphi 0, %s61
      %s79 = sphi 0, %s79
      %s81 = sphi 0, %s79
      %s82 = sphi 0, %s81
      %s96 = sphi 0, %s82
      %s100 = sphi 0, %s100
      %s102 = sphi 0, %s100
      %s103 = sphi 0, %s102
      %s117 = sphi 0, %s103
      %s123 = sphi 0, %s125
      %s126 = sphi 0, %s123
      %s127 = sphi 0, %s126
      %s143 = sphi 0, %s127
      %s149 = sphi 0, %s151
      %s152 = sphi 0, %s149
      %s153 = sphi 0, %s152
      %s169 = sphi 0, %s153
      %s175 = sphi 0, %s177
      %s178 = sphi 0, %s175
      %s179 = sphi 0, %s178
      %s195 = sphi 0, %s179
      %s201 = sphi 0, %s203
      %s204 = sphi 0, %s201
      %s205 = sphi 0, %s204
      %s221 = sphi 0, %s205
      %s225 = sphi 0, %s225
      %s227 = sphi 0, %s225
      %s228 = sphi 0, %s227
      %s242 = sphi 0, %s228
      %s246 = sphi 0, %s246
      %s248 = sphi 0, %s246
      %s249 = sphi 0, %s248
      %s263 = sphi 0, %s249
      %s267 = sphi 0, %s267
      %s269 = sphi 0, %s267
      %s270 = sphi 0, %s269
      %s284 = sphi 0, %s270
      %s288 = sphi 0, %s288
      %s290 = sphi 0, %s288
      %s291 = sphi 0, %s290
      %s305 = sphi 0, %s291
      %s309 = sphi 0, %s309
      %s311 = sphi 0, %s309
      %s312 = sphi 0, %s311
      %s326 = sphi 0, %s312
    $region4: #{tpu_custom_call.1} parent=1 // loop_header_branch
      %32 = sbr.rel (%p30) target = $region8
    $region5: #{tpu_custom_call.1} parent=1 // loop_body
      %s34 = ssub.s32 %s29, 1
      %s35 = ssub.s32 %s29, 2
      %s36 = sadd.s32 %s29, 1
      %s38 = sadd.s32 %s37, 1
      %p41 = scmp.eq.s32.totalorder %s29, 1
      %p42 = scmp.ne.s32.totalorder %s37, %s39
      %p43 = scmp.eq.s32.totalorder %s29, 0
      %p44 = por %p42, %p43
      %p45 = scmp.ne.s32.totalorder %s37, %s39
      %p46 = scmp.eq.s32.totalorder %s34, 1
      %p47 = por %p45, %p46
      %p48 = scmp.ne.s32.totalorder %s39, %s40
      %p49 = scmp.eq.s32.totalorder %s34, 0
      %p50 = por %p48, %p49
      %p51 = scmp.ne.s32.totalorder %s39, %s40
      %p52 = scmp.eq.s32.totalorder %s35, 1
      %p53 = por %p51, %p52
      %p55 = scmp.ne.s32.totalorder %s40, %s54
      %p56 = scmp.eq.s32.totalorder %s35, 0
      %p57 = por %p55, %p56
      %s59 = sadd.s32 %s58, 1
      %p62 = scmp.eq.s32.totalorder %s29, 1
      %p63 = scmp.ne.s32.totalorder %s58, %s60
      %p64 = scmp.eq.s32.totalorder %s29, 0
      %p65 = por %p63, %p64
      %p66 = scmp.ne.s32.totalorder %s58, %s60
      %p67 = scmp.eq.s32.totalorder %s34, 1
      %p68 = por %p66, %p67
      %p69 = scmp.ne.s32.totalorder %s60, %s61
      %p70 = scmp.eq.s32.totalorder %s34, 0
      %p71 = por %p69, %p70
      %p72 = scmp.ne.s32.totalorder %s60, %s61
      %p73 = scmp.eq.s32.totalorder %s35, 1
      %p74 = por %p72, %p73
      %p76 = scmp.ne.s32.totalorder %s61, %s75
      %p77 = scmp.eq.s32.totalorder %s35, 0
      %p78 = por %p76, %p77
      %s80 = sadd.s32 %s79, 1
      %p83 = scmp.eq.s32.totalorder %s29, 1
      %p84 = scmp.ne.s32.totalorder %s79, %s81
      %p85 = scmp.eq.s32.totalorder %s29, 0
      %p86 = por %p84, %p85
      %p87 = scmp.ne.s32.totalorder %s79, %s81
      %p88 = scmp.eq.s32.totalorder %s34, 1
      %p89 = por %p87, %p88
      %p90 = scmp.ne.s32.totalorder %s81, %s82
      %p91 = scmp.eq.s32.totalorder %s34, 0
      %p92 = por %p90, %p91
      %p93 = scmp.ne.s32.totalorder %s81, %s82
      %p94 = scmp.eq.s32.totalorder %s35, 1
      %p95 = por %p93, %p94
      %p97 = scmp.ne.s32.totalorder %s82, %s96
      %p98 = scmp.eq.s32.totalorder %s35, 0
      %p99 = por %p97, %p98
      %s101 = sadd.s32 %s100, 1
      %p104 = scmp.eq.s32.totalorder %s29, 1
      %p105 = scmp.ne.s32.totalorder %s100, %s102
      %p106 = scmp.eq.s32.totalorder %s29, 0
      %p107 = por %p105, %p106
      %p108 = scmp.ne.s32.totalorder %s100, %s102
      %p109 = scmp.eq.s32.totalorder %s34, 1
      %p110 = por %p108, %p109
      %p111 = scmp.ne.s32.totalorder %s102, %s103
      %p112 = scmp.eq.s32.totalorder %s34, 0
      %p113 = por %p111, %p112
      %p114 = scmp.ne.s32.totalorder %s102, %s103
      %p115 = scmp.eq.s32.totalorder %s35, 1
      %p116 = por %p114, %p115
      %p118 = scmp.ne.s32.totalorder %s103, %s117
      %p119 = scmp.eq.s32.totalorder %s35, 0
      %p120 = por %p118, %p119
      %s121 = ssub.s32 %s29, %s36
      %p122 = scmp.eq.s32.totalorder %s121, 0
      %s124 = sadd.s32 %s123, 1
      %s125 = scalar_select %p122, %s123, %s124
      %p128 = pneg %p122
      %p129 = scmp.eq.s32.totalorder %s29, 1
      %p130 = por %p128, %p129
      %p131 = scmp.ne.s32.totalorder %s123, %s126
      %p132 = scmp.eq.s32.totalorder %s29, 0
      %p133 = por %p131, %p132
      %p134 = scmp.ne.s32.totalorder %s123, %s126
      %p135 = scmp.eq.s32.totalorder %s34, 1
      %p136 = por %p134, %p135
      %p137 = scmp.ne.s32.totalorder %s126, %s127
      %p138 = scmp.eq.s32.totalorder %s34, 0
      %p139 = por %p137, %p138
      %p140 = scmp.ne.s32.totalorder %s126, %s127
      %p141 = scmp.eq.s32.totalorder %s35, 1
      %p142 = por %p140, %p141
      %p144 = scmp.ne.s32.totalorder %s127, %s143
      %p145 = scmp.eq.s32.totalorder %s35, 0
      %p146 = por %p144, %p145
      %s147 = ssub.s32 %s29, %s36
      %p148 = scmp.eq.s32.totalorder %s147, 0
      %s150 = sadd.s32 %s149, 1
      %s151 = scalar_select %p148, %s149, %s150
      %p154 = pneg %p148
      %p155 = scmp.eq.s32.totalorder %s29, 1
      %p156 = por %p154, %p155
      %p157 = scmp.ne.s32.totalorder %s149, %s152
      %p158 = scmp.eq.s32.totalorder %s29, 0
      %p159 = por %p157, %p158
      %p160 = scmp.ne.s32.totalorder %s149, %s152
      %p161 = scmp.eq.s32.totalorder %s34, 1
      %p162 = por %p160, %p161
      %p163 = scmp.ne.s32.totalorder %s152, %s153
      %p164 = scmp.eq.s32.totalorder %s34, 0
      %p165 = por %p163, %p164
      %p166 = scmp.ne.s32.totalorder %s152, %s153
      %p167 = scmp.eq.s32.totalorder %s35, 1
      %p168 = por %p166, %p167
      %p170 = scmp.ne.s32.totalorder %s153, %s169
      %p171 = scmp.eq.s32.totalorder %s35, 0
      %p172 = por %p170, %p171
      %s173 = ssub.s32 %s29, %s36
      %p174 = scmp.eq.s32.totalorder %s173, 0
      %s176 = sadd.s32 %s175, 1
      %s177 = scalar_select %p174, %s175, %s176
      %p180 = pneg %p174
      %p181 = scmp.eq.s32.totalorder %s29, 1
      %p182 = por %p180, %p181
      %p183 = scmp.ne.s32.totalorder %s175, %s178
      %p184 = scmp.eq.s32.totalorder %s29, 0
      %p185 = por %p183, %p184
      %p186 = scmp.ne.s32.totalorder %s175, %s178
      %p187 = scmp.eq.s32.totalorder %s34, 1
      %p188 = por %p186, %p187
      %p189 = scmp.ne.s32.totalorder %s178, %s179
      %p190 = scmp.eq.s32.totalorder %s34, 0
      %p191 = por %p189, %p190
      %p192 = scmp.ne.s32.totalorder %s178, %s179
      %p193 = scmp.eq.s32.totalorder %s35, 1
      %p194 = por %p192, %p193
      %p196 = scmp.ne.s32.totalorder %s179, %s195
      %p197 = scmp.eq.s32.totalorder %s35, 0
      %p198 = por %p196, %p197
      %s199 = ssub.s32 %s29, %s36
      %p200 = scmp.eq.s32.totalorder %s199, 0
      %s202 = sadd.s32 %s201, 1
      %s203 = scalar_select %p200, %s201, %s202
      %p206 = pneg %p200
      %p207 = scmp.eq.s32.totalorder %s29, 1
      %p208 = por %p206, %p207
      %p209 = scmp.ne.s32.totalorder %s201, %s204
      %p210 = scmp.eq.s32.totalorder %s29, 0
      %p211 = por %p209, %p210
      %p212 = scmp.ne.s32.totalorder %s201, %s204
      %p213 = scmp.eq.s32.totalorder %s34, 1
      %p214 = por %p212, %p213
      %p215 = scmp.ne.s32.totalorder %s204, %s205
      %p216 = scmp.eq.s32.totalorder %s34, 0
      %p217 = por %p215, %p216
      %p218 = scmp.ne.s32.totalorder %s204, %s205
      %p219 = scmp.eq.s32.totalorder %s35, 1
      %p220 = por %p218, %p219
      %p222 = scmp.ne.s32.totalorder %s205, %s221
      %p223 = scmp.eq.s32.totalorder %s35, 0
      %p224 = por %p222, %p223
      %s226 = sadd.s32 %s225, 1
      %p229 = scmp.eq.s32.totalorder %s29, 1
      %p230 = scmp.ne.s32.totalorder %s225, %s227
      %p231 = scmp.eq.s32.totalorder %s29, 0
      %p232 = por %p230, %p231
      %p233 = scmp.ne.s32.totalorder %s225, %s227
      %p234 = scmp.eq.s32.totalorder %s34, 1
      %p235 = por %p233, %p234
      %p236 = scmp.ne.s32.totalorder %s227, %s228
      %p237 = scmp.eq.s32.totalorder %s34, 0
      %p238 = por %p236, %p237
      %p239 = scmp.ne.s32.totalorder %s227, %s228
      %p240 = scmp.eq.s32.totalorder %s35, 1
      %p241 = por %p239, %p240
      %p243 = scmp.ne.s32.totalorder %s228, %s242
      %p244 = scmp.eq.s32.totalorder %s35, 0
      %p245 = por %p243, %p244
      %s247 = sadd.s32 %s246, 1
      %p250 = scmp.eq.s32.totalorder %s29, 1
      %p251 = scmp.ne.s32.totalorder %s246, %s248
      %p252 = scmp.eq.s32.totalorder %s29, 0
      %p253 = por %p251, %p252
      %p254 = scmp.ne.s32.totalorder %s246, %s248
      %p255 = scmp.eq.s32.totalorder %s34, 1
      %p256 = por %p254, %p255
      %p257 = scmp.ne.s32.totalorder %s248, %s249
      %p258 = scmp.eq.s32.totalorder %s34, 0
      %p259 = por %p257, %p258
      %p260 = scmp.ne.s32.totalorder %s248, %s249
      %p261 = scmp.eq.s32.totalorder %s35, 1
      %p262 = por %p260, %p261
      %p264 = scmp.ne.s32.totalorder %s249, %s263
      %p265 = scmp.eq.s32.totalorder %s35, 0
      %p266 = por %p264, %p265
      %s268 = sadd.s32 %s267, 1
      %p271 = scmp.eq.s32.totalorder %s29, 1
      %p272 = scmp.ne.s32.totalorder %s267, %s269
      %p273 = scmp.eq.s32.totalorder %s29, 0
      %p274 = por %p272, %p273
      %p275 = scmp.ne.s32.totalorder %s267, %s269
      %p276 = scmp.eq.s32.totalorder %s34, 1
      %p277 = por %p275, %p276
      %p278 = scmp.ne.s32.totalorder %s269, %s270
      %p279 = scmp.eq.s32.totalorder %s34, 0
      %p280 = por %p278, %p279
      %p281 = scmp.ne.s32.totalorder %s269, %s270
      %p282 = scmp.eq.s32.totalorder %s35, 1
      %p283 = por %p281, %p282
      %p285 = scmp.ne.s32.totalorder %s270, %s284
      %p286 = scmp.eq.s32.totalorder %s35, 0
      %p287 = por %p285, %p286
      %s289 = sadd.s32 %s288, 1
      %p292 = scmp.eq.s32.totalorder %s29, 1
      %p293 = scmp.ne.s32.totalorder %s288, %s290
      %p294 = scmp.eq.s32.totalorder %s29, 0
      %p295 = por %p293, %p294
      %p296 = scmp.ne.s32.totalorder %s288, %s290
      %p297 = scmp.eq.s32.totalorder %s34, 1
      %p298 = por %p296, %p297
      %p299 = scmp.ne.s32.totalorder %s290, %s291
      %p300 = scmp.eq.s32.totalorder %s34, 0
      %p301 = por %p299, %p300
      %p302 = scmp.ne.s32.totalorder %s290, %s291
      %p303 = scmp.eq.s32.totalorder %s35, 1
      %p304 = por %p302, %p303
      %p306 = scmp.ne.s32.totalorder %s291, %s305
      %p307 = scmp.eq.s32.totalorder %s35, 0
      %p308 = por %p306, %p307
      %s310 = sadd.s32 %s309, 1
      %p313 = scmp.eq.s32.totalorder %s29, 1
      %p314 = scmp.ne.s32.totalorder %s309, %s311
      %p315 = scmp.eq.s32.totalorder %s29, 0
      %p316 = por %p314, %p315
      %p317 = scmp.ne.s32.totalorder %s309, %s311
      %p318 = scmp.eq.s32.totalorder %s34, 1
      %p319 = por %p317, %p318
      %p320 = scmp.ne.s32.totalorder %s311, %s312
      %p321 = scmp.eq.s32.totalorder %s34, 0
      %p322 = por %p320, %p321
      %p323 = scmp.ne.s32.totalorder %s311, %s312
      %p324 = scmp.eq.s32.totalorder %s35, 1
      %p325 = por %p323, %p324
      %p327 = scmp.ne.s32.totalorder %s312, %s326
      %p328 = scmp.eq.s32.totalorder %s35, 0
      %p329 = por %p327, %p328
      %p330 = scmp.le.s32.totalorder 1, %s29
      %p331 = scmp.lt.s32.totalorder %s29, 3
      %p332 = pnand %p330, %p331
      %p333 = pneg %p332
      // Predicated region
      $region9: #{tpu_custom_call.1} parent=5 // pred_check
        _
      $region10: #{tpu_custom_call.1} parent=5 // pred_check_branch
        %335 = sbr.rel (%p332) target = $region12
      $region11: #{tpu_custom_call.1} parent=5 // pred_region
        %s336 = ssub.s32 %s29, 1
        // Predicated region
        $region13: #{tpu_custom_call.1} parent=11 // pred_check
          %p337 = pneg %p50
        $region14: #{tpu_custom_call.1} parent=11 // pred_check_branch
          %339 = sbr.rel (%p337) target = $region16
        $region15: #{tpu_custom_call.1} parent=11 // pred_region
          %s341 = ssub.s32 16, 16
          %342 = vsyncadd [#allocation6], %s341
          %s344 = sshll.u32 %s0, 4
          %s345 = int_to_ptr.vmem [resolvable:$true] %s344
          %347 = dma.vmem_to_smem %s345, 16, [#allocation3], [#allocation6]
        $region16: #{tpu_custom_call.1} parent=11 // pred_fallthru
          _
        // Predicated region
        $region17: #{tpu_custom_call.1} parent=11 // pred_check
          %p348 = pneg %p71
        $region18: #{tpu_custom_call.1} parent=11 // pred_check_branch
          %350 = sbr.rel (%p348) target = $region20
        $region19: #{tpu_custom_call.1} parent=11 // pred_region
          _
        $region20: #{tpu_custom_call.1} parent=11 // pred_fallthru
          _
        // Predicated region
        $region21: #{tpu_custom_call.1} parent=11 // pred_check
          %p351 = pneg %p92
        $region22: #{tpu_custom_call.1} parent=11 // pred_check_branch
          %353 = sbr.rel (%p351) target = $region24
        $region23: #{tpu_custom_call.1} parent=11 // pred_region
          _
        $region24: #{tpu_custom_call.1} parent=11 // pred_fallthru
          _
        // Predicated region
        $region25: #{tpu_custom_call.1} parent=11 // pred_check
          %p354 = pneg %p113
        $region26: #{tpu_custom_call.1} parent=11 // pred_check_branch
          %356 = sbr.rel (%p354) target = $region28
        $region27: #{tpu_custom_call.1} parent=11 // pred_region
          _
        $region28: #{tpu_custom_call.1} parent=11 // pred_fallthru
          _
        // Predicated region
        $region29: #{tpu_custom_call.1} parent=11 // pred_check
          %p357 = pneg %p238
        $region30: #{tpu_custom_call.1} parent=11 // pred_check_branch
          %359 = sbr.rel (%p357) target = $region32
        $region31: #{tpu_custom_call.1} parent=11 // pred_region
          _
        $region32: #{tpu_custom_call.1} parent=11 // pred_fallthru
          _
        // Predicated region
        $region33: #{tpu_custom_call.1} parent=11 // pred_check
          %p360 = pneg %p259
        $region34: #{tpu_custom_call.1} parent=11 // pred_check_branch
          %362 = sbr.rel (%p360) target = $region36
        $region35: #{tpu_custom_call.1} parent=11 // pred_region
          _
        $region36: #{tpu_custom_call.1} parent=11 // pred_fallthru
          _
        // Predicated region
        $region37: #{tpu_custom_call.1} parent=11 // pred_check
          %p363 = pneg %p280
        $region38: #{tpu_custom_call.1} parent=11 // pred_check_branch
          %365 = sbr.rel (%p363) target = $region40
        $region39: #{tpu_custom_call.1} parent=11 // pred_region
          _
        $region40: #{tpu_custom_call.1} parent=11 // pred_fallthru
          _
      $region12: #{tpu_custom_call.1} parent=5 // pred_fallthru
        _
      %p366 = scmp.lt.s32.totalorder %s29, 2
      // Predicated region
      $region41: #{tpu_custom_call.1} parent=5 // pred_check
        %p367 = pneg %p366
      $region42: #{tpu_custom_call.1} parent=5 // pred_check_branch
        %369 = sbr.rel (%p367) target = $region44
      $region43: #{tpu_custom_call.1} parent=5 // pred_region
        // Predicated region
        $region45: #{tpu_custom_call.1} parent=43 // pred_check
          %p370 = pneg %p133
        $region46: #{tpu_custom_call.1} parent=43 // pred_check_branch
          %372 = sbr.rel (%p370) target = $region48
        $region47: #{tpu_custom_call.1} parent=43 // pred_region
          %p373 = scmp.lt.s32.totalorder %s29, 1
          %s374 = scalar_select %p373, %s29, 1
          %s375 = smul.addr %s374, 8
          %s376 = smul.addr %s375, 4
          %s377 = scalar_lea.vmem %s4, %s376
        $region48: #{tpu_custom_call.1} parent=43 // pred_fallthru
          _
        // Predicated region
        $region49: #{tpu_custom_call.1} parent=43 // pred_check
          %p378 = pneg %p159
        $region50: #{tpu_custom_call.1} parent=43 // pred_check_branch
          %380 = sbr.rel (%p378) target = $region52
        $region51: #{tpu_custom_call.1} parent=43 // pred_region
          %s381 = sand.u32 %s149, 1
          %s382 = scalar_lea.sflag [#allocation4], %s381
          %s383 = sand.u32 %s149, 1
          %s384 = smul.addr %s383, 128
          %s385 = scalar_lea.vmem [#allocation7], %s384
          %s387 = ssub.s32 2048, 2048
          %388 = vsyncadd %s382, %s387
          %s389 = smul.addr %s29, 16
          %s390 = smul.addr %s389, 128
          %s391 = scalar_lea.hbm %s5, %s390
          %s392 = sshll.u32 %s385, 4
          %s393 = int_to_ptr.vmem [resolvable:$true] %s392
          %398 = dma.hbm_to_vmem [thread:$0]  %s391, 2048, %s393, %s382, 128, 128, 8
        $region52: #{tpu_custom_call.1} parent=43 // pred_fallthru
          _
        // Predicated region
        $region53: #{tpu_custom_call.1} parent=43 // pred_check
          %p399 = pneg %p185
        $region54: #{tpu_custom_call.1} parent=43 // pred_check_branch
          %401 = sbr.rel (%p399) target = $region56
        $region55: #{tpu_custom_call.1} parent=43 // pred_region
          %s402 = sand.u32 %s175, 1
          %s403 = scalar_lea.sflag [#allocation9], %s402
          %s404 = sand.u32 %s175, 1
          %s405 = smul.addr %s404, 128
          %s406 = scalar_lea.vmem [#allocation8], %s405
          %s408 = ssub.s32 2048, 2048
          %409 = vsyncadd %s403, %s408
          %s410 = smul.addr %s29, 16
          %s411 = smul.addr %s410, 128
          %s412 = scalar_lea.hbm %s6, %s411
          %s413 = sshll.u32 %s406, 4
          %s414 = int_to_ptr.vmem [resolvable:$true] %s413
          %419 = dma.hbm_to_vmem [thread:$0]  %s412, 2048, %s414, %s403, 128, 128, 8
        $region56: #{tpu_custom_call.1} parent=43 // pred_fallthru
          _
        // Predicated region
        $region57: #{tpu_custom_call.1} parent=43 // pred_check
          %p420 = pneg %p211
        $region58: #{tpu_custom_call.1} parent=43 // pred_check_branch
          %422 = sbr.rel (%p420) target = $region60
        $region59: #{tpu_custom_call.1} parent=43 // pred_region
          %p423 = scmp.lt.s32.totalorder %s29, 1
          %s424 = scalar_select %p423, %s29, 1
          %s425 = smul.addr %s424, 8
          %s426 = scalar_lea.vmem %s7, %s425
        $region60: #{tpu_custom_call.1} parent=43 // pred_fallthru
          _
      $region44: #{tpu_custom_call.1} parent=5 // pred_fallthru
        _
      %p427 = scmp.le.s32.totalorder 1, %s29
      %p428 = scmp.lt.s32.totalorder %s29, 3
      %p429 = pnand %p427, %p428
      %p430 = pneg %p429
      // Predicated region
      $region61: #{tpu_custom_call.1} parent=5 // pred_check
        _
      $region62: #{tpu_custom_call.1} parent=5 // pred_check_branch
        %432 = sbr.rel (%p429) target = $region64
      $region63: #{tpu_custom_call.1} parent=5 // pred_region
        %s433 = ssub.s32 %s29, 1
        // Predicated region
        $region65: #{tpu_custom_call.1} parent=63 // pred_check
          %p434 = pneg %p50
        $region66: #{tpu_custom_call.1} parent=63 // pred_check_branch
          %436 = sbr.rel (%p434) target = $region68
        $region67: #{tpu_custom_call.1} parent=63 // pred_region
          %437 = dma.done [#allocation6], 16
        $region68: #{tpu_custom_call.1} parent=63 // pred_fallthru
          _
        %s438 = sand.u32 %s152, 1
        %s439 = scalar_lea.sflag [#allocation4], %s438
        %s440 = sand.u32 %s152, 1
        %s441 = smul.addr %s440, 128
        %s442 = scalar_lea.vmem [#allocation7], %s441
        // Predicated region
        $region69: #{tpu_custom_call.1} parent=63 // pred_check
          %p443 = pneg %p165
        $region70: #{tpu_custom_call.1} parent=63 // pred_check_branch
          %445 = sbr.rel (%p443) target = $region72
        $region71: #{tpu_custom_call.1} parent=63 // pred_region
          %446 = dma.done %s439, 2048
        $region72: #{tpu_custom_call.1} parent=63 // pred_fallthru
          _
        %s447 = sand.u32 %s178, 1
        %s448 = scalar_lea.sflag [#allocation9], %s447
        %s449 = sand.u32 %s178, 1
        %s450 = smul.addr %s449, 128
        %s451 = scalar_lea.vmem [#allocation8], %s450
        // Predicated region
        $region73: #{tpu_custom_call.1} parent=63 // pred_check
          %p452 = pneg %p191
        $region74: #{tpu_custom_call.1} parent=63 // pred_check_branch
          %454 = sbr.rel (%p452) target = $region76
        $region75: #{tpu_custom_call.1} parent=63 // pred_region
          %455 = dma.done %s448, 2048
        $region76: #{tpu_custom_call.1} parent=63 // pred_fallthru
          _
        %456 = sfence
        %p457 = pneg %p50
        %p458 = pneg %p47
        %p459 = pneg %p71
        %p460 = pneg %p68
        %p461 = pneg %p92
        %p462 = pneg %p89
        %p463 = pneg %p113
        %p464 = pneg %p110
        %p465 = scmp.lt.s32.totalorder %s34, 1
        %s466 = scalar_select %p465, %s34, 1
        %s467 = smul.addr %s466, 8
        %s468 = smul.addr %s467, 4
        %s469 = scalar_lea.vmem %s4, %s468
        %p470 = pneg %p139
        %p471 = pneg %p136
        %s472 = sand.u32 %s152, 1
        %s473 = scalar_lea.sflag [#allocation4], %s472
        %s474 = sand.u32 %s152, 1
        %s475 = smul.addr %s474, 128
        %s476 = scalar_lea.vmem [#allocation7], %s475
        %p477 = pneg %p165
        %p478 = pneg %p162
        %s479 = sand.u32 %s178, 1
        %s480 = scalar_lea.sflag [#allocation9], %s479
        %s481 = sand.u32 %s178, 1
        %s482 = smul.addr %s481, 128
        %s483 = scalar_lea.vmem [#allocation8], %s482
        %p484 = pneg %p191
        %p485 = pneg %p188
        %p486 = scmp.lt.s32.totalorder %s34, 1
        %s487 = scalar_select %p486, %s34, 1
        %s488 = smul.addr %s487, 8
        %s489 = scalar_lea.vmem %s7, %s488
        %p490 = pneg %p217
        %p491 = pneg %p214
        %p492 = pneg %p238
        %p493 = pneg %p235
        %p494 = pneg %p259
        %p495 = pneg %p256
        %p496 = pneg %p280
        %p497 = pneg %p277
        %p498 = pneg %p301
        %p499 = pneg %p298
        %p500 = pneg %p322
        %p501 = pneg %p319
        %p502 = scmp.lt.s32.totalorder %s34, 1
        %s503 = scalar_select %p502, %s34, 1
        %s504 = smul.addr %s503, 8
        %s505 = smul.addr %s504, 4
        %s506 = scalar_lea.vmem %s4, %s505
        %p507 = scmp.lt.s32.totalorder %s34, 1
        %s508 = scalar_select %p507, %s34, 1
        %s509 = smul.addr %s508, 8
        %s510 = scalar_lea.vmem %s7, %s509
        %p512 = scmp.eq.s32.totalorder %s34, 0
        // Predicated region
        $region77: #{tpu_custom_call.1} parent=63 // pred_check
          %p513 = pneg %p512
        $region78: #{tpu_custom_call.1} parent=63 // pred_check_branch
          %515 = sbr.rel (%p513) target = $region80
        $region79: #{tpu_custom_call.1} parent=63 // pred_region
          %v516 = vld [vmem:[%s1] sm:$0xff]
          %v517 = vld [vmem:[%s1 + $0x8] sm:$0xff]
          %v518 = vld [vmem:[%s1 + $0x10] sm:$0xff]
          %v519 = vld [vmem:[%s1 + $0x18] sm:$0xff]
          %520 = vst [vmem:[#allocation10] sm:$0xff] %v516
          %521 = vst [vmem:[#allocation10 + $0x8] sm:$0xff] %v517
          %522 = vst [vmem:[#allocation10 + $0x10] sm:$0xff] %v518
          %523 = vst [vmem:[#allocation10 + $0x18] sm:$0xff] %v519
        $region80: #{tpu_custom_call.1} parent=63 // pred_fallthru
          _
        %v524 = vld [vmem:[#allocation10] sm:$0xff]
        %v525 = vld [vmem:[#allocation10 + $0x8] sm:$0xff]
        %v526 = vld [vmem:[#allocation10 + $0x10] sm:$0xff]
        %v527 = vld [vmem:[#allocation10 + $0x18] sm:$0xff]
        %v528 = vpack.c.bf16 %v525, %v524
        %v529 = vpack.c.bf16 %v527, %v526
        %v530 = vld [vmem:[%s2] sm:$0xf]
        %v531 = vld [vmem:[%s2 + $0x4] sm:$0xf]
        %v532 = vld [vmem:[%s2 + $0x8] sm:$0xf]
        %v533 = vld [vmem:[%s2 + $0xc] sm:$0xf]
        %v534 = vld [vmem:[%s2 + $0x10] sm:$0xf]
        %v535 = vld [vmem:[%s2 + $0x14] sm:$0xf]
        %v536 = vld [vmem:[%s2 + $0x18] sm:$0xf]
        %v537 = vld [vmem:[%s2 + $0x1c] sm:$0xf]
        %v538 = vld [vmem:[%s506] sm:$0xf]
        %v539 = vld [vmem:[%s506 + $0x4] sm:$0xf]
        %v540 = vld [vmem:[%s506 + $0x8] sm:$0xf]
        %v541 = vld [vmem:[%s506 + $0xc] sm:$0xf]
        %v542 = vld [vmem:[%s506 + $0x10] sm:$0xf]
        %v543 = vld [vmem:[%s506 + $0x14] sm:$0xf]
        %v544 = vld [vmem:[%s506 + $0x18] sm:$0xf]
        %v545 = vld [vmem:[%s506 + $0x1c] sm:$0xf]
        %v546 = vunpack.c.l.bf16 %v538
        %v547 = vunpack.c.l.bf16 %v539
        %v548 = vunpack.c.l.bf16 %v540
        %v549 = vunpack.c.l.bf16 %v541
        %v550 = vunpack.c.l.bf16 %v542
        %v551 = vunpack.c.l.bf16 %v543
        %v552 = vunpack.c.l.bf16 %v544
        %v553 = vunpack.c.l.bf16 %v545
        %v562 = vunpack.c.l.b16 %v530
        %v563 = vunpack.c.l.b16 %v531
        %v564 = vunpack.c.l.b16 %v532
        %v565 = vunpack.c.l.b16 %v533
        %v566 = vunpack.c.l.b16 %v534
        %v567 = vunpack.c.l.b16 %v535
        %v568 = vunpack.c.l.b16 %v536
        %v569 = vunpack.c.l.b16 %v537
        %v570 = vpack.c.b16 %v563, %v562
        %v571 = vpack.c.b16 %v565, %v564
        %v572 = vpack.c.b16 %v567, %v566
        %v573 = vpack.c.b16 %v569, %v568
        %vm574 = vcmask 261120
        %v576 = vsel %vm574, %v570, 0
        %v579 = vsel %vm574, %v571, 0
        %v582 = vsel %vm574, %v572, 0
        %v585 = vsel %vm574, %v573, 0
        %587 = vmatprep.subr.bf16.mxu0 0
        %588 = vmatpush1.bf16.msra.mxu0 0
        %589 = vmatprep.subr.bf16.mxu0 0
        %590 = vmatpush1.bf16.msra.mxu0 0
        %591 = vmatprep.subr.bf16.mxu0 0
        %592 = vmatpush1.bf16.msra.mxu0 0
        %593 = vmatprep.subr.bf16.mxu0 0
        %594 = vmatpush1.bf16.msra.mxu0 0
        %595 = vmatprep.subr.bf16.mxu0 0
        %596 = vmatpush1.bf16.msra.mxu0 0
        %597 = vmatprep.subr.bf16.mxu0 0
        %598 = vmatpush1.bf16.msra.mxu0 0
        %599 = vmatprep.subr.bf16.mxu0 0
        %600 = vmatpush1.bf16.msra.mxu0 %v529
        %601 = vmatprep.subr.bf16.mxu0 0
        %602 = vmatpush1.bf16.msra.mxu0 %v528
        %603 = vmatprep.subr.bf16.mxu0 0
        %604 = vmatpush2.bf16.msra.mxu0 0
        %605 = vmatprep.subr.bf16.mxu0 0
        %606 = vmatpush2.bf16.msra.mxu0 0
        %607 = vmatprep.subr.bf16.mxu0 0
        %608 = vmatpush2.bf16.msra.mxu0 0
        %609 = vmatprep.subr.bf16.mxu0 0
        %610 = vmatpush2.bf16.msra.mxu0 0
        %611 = vmatprep.subr.bf16.mxu0 0
        %612 = vmatpush2.bf16.msra.mxu0 0
        %613 = vmatprep.subr.bf16.mxu0 0
        %614 = vmatpush2.bf16.msra.mxu0 0
        %615 = vmatprep.subr.bf16.mxu0 0
        %616 = vmatpush2.bf16.msra.mxu0 0
        %617 = vmatprep.subr.bf16.mxu0 0
        %618 = vmatpush2.bf16.msra.mxu0 0
        %619 = vmatprep.mubr.bf16.mxu0 0
        %620 = vmatmul.mubr.bf16.gmra.mxu0 %v576
        %v621 = vpop.f32.mrf.mxu0
        %v622 = vadd.f32 %v546, %v621
        %v623 = vpop.f32.mrf.mxu0
        %v624 = vpop.f32.mrf.mxu0
        %v625 = vadd.f32 %v547, %v624
        %v626 = vpop.f32.mrf.mxu0
        %627 = vmatprep.mubr.bf16.mxu0 0
        %628 = vmatmul.mubr.bf16.gmra.mxu0 %v579
        %v629 = vpop.f32.mrf.mxu0
        %v630 = vadd.f32 %v548, %v629
        %v631 = vpop.f32.mrf.mxu0
        %v632 = vpop.f32.mrf.mxu0
        %v633 = vadd.f32 %v549, %v632
        %v634 = vpop.f32.mrf.mxu0
        %635 = vmatprep.mubr.bf16.mxu0 0
        %636 = vmatmul.mubr.bf16.gmra.mxu0 %v582
        %v637 = vpop.f32.mrf.mxu0
        %v638 = vadd.f32 %v550, %v637
        %v639 = vpop.f32.mrf.mxu0
        %v640 = vpop.f32.mrf.mxu0
        %v641 = vadd.f32 %v551, %v640
        %v642 = vpop.f32.mrf.mxu0
        %643 = vmatprep.mubr.bf16.mxu0 0
        %644 = vmatmul.mubr.bf16.gmra.mxu0 %v585
        %v645 = vpop.f32.mrf.mxu0
        %v646 = vadd.f32 %v552, %v645
        %v647 = vpop.f32.mrf.mxu0
        %v648 = vpop.f32.mrf.mxu0
        %v649 = vadd.f32 %v553, %v648
        %v650 = vpop.f32.mrf.mxu0
        %651 = vdwg.mxu0
        %v652 = vmax.f32 %v622, 0.0
        %v653 = vmax.f32 %v625, 0.0
        %v654 = vmax.f32 %v630, 0.0
        %v655 = vmax.f32 %v633, 0.0
        %v656 = vmax.f32 %v638, 0.0
        %v657 = vmax.f32 %v641, 0.0
        %v658 = vmax.f32 %v646, 0.0
        %v659 = vmax.f32 %v649, 0.0
        %v660 = vld [vmem:[%s3] sm:$0xf]
        %v661 = vld [vmem:[%s3 + $0x4] sm:$0xf]
        %v662 = vld [vmem:[%s3 + $0x8] sm:$0xf]
        %v663 = vld [vmem:[%s3 + $0xc] sm:$0xf]
        %v664 = vld [vmem:[%s3 + $0x10] sm:$0xf]
        %v665 = vld [vmem:[%s3 + $0x14] sm:$0xf]
        %v666 = vld [vmem:[%s3 + $0x18] sm:$0xf]
        %v667 = vld [vmem:[%s3 + $0x1c] sm:$0xf]
        %v668 = vpack.c.bf16 %v653, %v652
        %v669 = vpack.c.bf16 %v655, %v654
        %v670 = vpack.c.bf16 %v657, %v656
        %v671 = vpack.c.bf16 %v659, %v658
        %v680 = vunpack.c.l.b16 %v660
        %v681 = vunpack.c.l.b16 %v661
        %v682 = vunpack.c.l.b16 %v662
        %v683 = vunpack.c.l.b16 %v663
        %v684 = vunpack.c.l.b16 %v664
        %v685 = vunpack.c.l.b16 %v665
        %v686 = vunpack.c.l.b16 %v666
        %v687 = vunpack.c.l.b16 %v667
        %v688 = vpack.c.b16 %v681, %v680
        %v689 = vpack.c.b16 %v683, %v682
        %v690 = vpack.c.b16 %v685, %v684
        %v691 = vpack.c.b16 %v687, %v686
        %696 = vxpose.xlu0.c.b16.start [1/8] %v688, 128
        %697 = vxpose.xlu0.c.b16.cont [2/8] %v689, 128
        %698 = vxpose.xlu0.c.b16.cont [3/8] %v690, 128
        %699 = vxpose.xlu0.c.b16.cont [4/8] %v691, 128
        %700 = vxpose.xlu0.c.b16.cont [5/8] 0, 128
        %701 = vxpose.xlu0.c.b16.cont [6/8] 0, 128
        %702 = vxpose.xlu0.c.b16.cont [7/8] 0, 128
        %703 = vxpose.xlu0.c.b16.end [8/8] 0, 128
        %v704 = vpop.trf.xlu0
        %v705 = vpop.trf.xlu0
        %v706 = vpop.trf.xlu0
        %v707 = vpop.trf.xlu0
        %v708 = vpop.trf.xlu0
        %v709 = vpop.trf.xlu0
        %v710 = vpop.trf.xlu0
        %v711 = vpop.trf.xlu0
        %vm712 = vcmask 523264
        %v714 = vsel %vm712, %v704, 0
        %v717 = vsel %vm712, %v705, 0
        %719 = vmatprep.subr.bf16.mxu0 0
        %720 = vmatpush1.bf16.msra.mxu0 0
        %721 = vmatprep.subr.bf16.mxu0 0
        %722 = vmatpush1.bf16.msra.mxu0 0
        %723 = vmatprep.subr.bf16.mxu0 0
        %724 = vmatpush1.bf16.msra.mxu0 0
        %725 = vmatprep.subr.bf16.mxu0 0
        %726 = vmatpush1.bf16.msra.mxu0 0
        %727 = vmatprep.subr.bf16.mxu0 0
        %728 = vmatpush1.bf16.msra.mxu0 %v671
        %729 = vmatprep.subr.bf16.mxu0 0
        %730 = vmatpush1.bf16.msra.mxu0 %v670
        %731 = vmatprep.subr.bf16.mxu0 0
        %732 = vmatpush1.bf16.msra.mxu0 %v669
        %733 = vmatprep.subr.bf16.mxu0 0
        %734 = vmatpush1.bf16.msra.mxu0 %v668
        %735 = vmatprep.subr.bf16.mxu0 0
        %736 = vmatpush2.bf16.msra.mxu0 0
        %737 = vmatprep.subr.bf16.mxu0 0
        %738 = vmatpush2.bf16.msra.mxu0 0
        %739 = vmatprep.subr.bf16.mxu0 0
        %740 = vmatpush2.bf16.msra.mxu0 0
        %741 = vmatprep.subr.bf16.mxu0 0
        %742 = vmatpush2.bf16.msra.mxu0 0
        %743 = vmatprep.subr.bf16.mxu0 0
        %744 = vmatpush2.bf16.msra.mxu0 0
        %745 = vmatprep.subr.bf16.mxu0 0
        %746 = vmatpush2.bf16.msra.mxu0 0
        %747 = vmatprep.subr.bf16.mxu0 0
        %748 = vmatpush2.bf16.msra.mxu0 0
        %749 = vmatprep.subr.bf16.mxu0 0
        %750 = vmatpush2.bf16.msra.mxu0 0
        %751 = vmatprep.mubr.bf16.mxu0 0
        %752 = vmatmul.mubr.bf16.gmra.mxu0 %v714
        %v753 = vpop.f32.mrf.mxu0
        %v754 = vadd.f32 0.0, %v753
        %v755 = vpop.f32.mrf.mxu0
        %v756 = vpop.f32.mrf.mxu0
        %v757 = vadd.f32 0.0, %v756
        %v758 = vpop.f32.mrf.mxu0
        %759 = vmatprep.mubr.bf16.mxu0 0
        %760 = vmatmul.mubr.bf16.gmra.mxu0 %v717
        %v761 = vpop.f32.mrf.mxu0
        %v762 = vadd.f32 0.0, %v761
        %v763 = vpop.f32.mrf.mxu0
        %v764 = vpop.f32.mrf.mxu0
        %v765 = vadd.f32 0.0, %v764
        %v766 = vpop.f32.mrf.mxu0
        %767 = vdwg.mxu0
        %s768 = sld [smem:[#allocation3 + %s34]]
        %s769 = sadd.f32 %s768, 1.0
        %v770 = vstv %s769
        %v771 = vmul.f32 %v770, %v524
        %v772 = vmul.f32 %v770, %v525
        %v773 = vmul.f32 %v770, %v526
        %v774 = vmul.f32 %v770, %v527
        %v775 = vadd.f32 %v771, %v754
        %v776 = vadd.f32 %v772, %v757
        %v777 = vadd.f32 %v773, %v762
        %v778 = vadd.f32 %v774, %v765
        %v779 = vld [vmem:[%s510] sm:$0xff]
        %v780 = vld [vmem:[%s442] sm:$0xff]
        %v781 = vld [vmem:[%s442 + $0x8] sm:$0xff]
        %v782 = vld [vmem:[%s442 + $0x10] sm:$0xff]
        %v783 = vld [vmem:[%s442 + $0x18] sm:$0xff]
        %v784 = vld [vmem:[%s442 + $0x20] sm:$0xff]
        %v785 = vld [vmem:[%s442 + $0x28] sm:$0xff]
        %v786 = vld [vmem:[%s442 + $0x30] sm:$0xff]
        %v787 = vld [vmem:[%s442 + $0x38] sm:$0xff]
        %v788 = vld [vmem:[%s442 + $0x40] sm:$0xff]
        %v789 = vld [vmem:[%s442 + $0x48] sm:$0xff]
        %v790 = vld [vmem:[%s442 + $0x50] sm:$0xff]
        %v791 = vld [vmem:[%s442 + $0x58] sm:$0xff]
        %v792 = vld [vmem:[%s442 + $0x60] sm:$0xff]
        %v793 = vld [vmem:[%s442 + $0x68] sm:$0xff]
        %v794 = vld [vmem:[%s442 + $0x70] sm:$0xff]
        %v795 = vld [vmem:[%s442 + $0x78] sm:$0xff]
        %v796 = vlaneseq
        %v797 = vshrl.u32 %v796, 7
        %v798 = vsub.s32 0, %v797
        %v799 = vrot.slane %v779, %v798
        %800 = vmatprep.subr.mxu0 0.0
        %801 = vmatpush1.msra.mxu0 %v795
        %802 = vmatprep.subr.mxu0 0.0
        %803 = vmatpush1.msra.mxu0 %v794
        %804 = vmatprep.subr.mxu0 0.0
        %805 = vmatpush1.msra.mxu0 %v793
        %806 = vmatprep.subr.mxu0 0.0
        %807 = vmatpush1.msra.mxu0 %v792
        %808 = vmatprep.subr.mxu0 0.0
        %809 = vmatpush1.msra.mxu0 %v791
        %810 = vmatprep.subr.mxu0 0.0
        %811 = vmatpush1.msra.mxu0 %v790
        %812 = vmatprep.subr.mxu0 0.0
        %813 = vmatpush1.msra.mxu0 %v789
        %814 = vmatprep.subr.mxu0 0.0
        %815 = vmatpush1.msra.mxu0 %v788
        %816 = vmatprep.subr.mxu0 0.0
        %817 = vmatpush1.msra.mxu0 %v787
        %818 = vmatprep.subr.mxu0 0.0
        %819 = vmatpush1.msra.mxu0 %v786
        %820 = vmatprep.subr.mxu0 0.0
        %821 = vmatpush1.msra.mxu0 %v785
        %822 = vmatprep.subr.mxu0 0.0
        %823 = vmatpush1.msra.mxu0 %v784
        %824 = vmatprep.subr.mxu0 0.0
        %825 = vmatpush1.msra.mxu0 %v783
        %826 = vmatprep.subr.mxu0 0.0
        %827 = vmatpush1.msra.mxu0 %v782
        %828 = vmatprep.subr.mxu0 0.0
        %829 = vmatpush1.msra.mxu0 %v781
        %830 = vmatprep.subr.mxu0 0.0
        %831 = vmatpush1.msra.mxu0 %v780
        %832 = vmatprep.subr.mxu0 0.0
        %833 = vmatpush2.msra.mxu0 0.0
        %834 = vmatprep.subr.mxu0 0.0
        %835 = vmatpush2.msra.mxu0 0.0
        %836 = vmatprep.subr.mxu0 0.0
        %837 = vmatpush2.msra.mxu0 0.0
        %838 = vmatprep.subr.mxu0 0.0
        %839 = vmatpush2.msra.mxu0 0.0
        %840 = vmatprep.subr.mxu0 0.0
        %841 = vmatpush2.msra.mxu0 0.0
        %842 = vmatprep.subr.mxu0 0.0
        %843 = vmatpush2.msra.mxu0 0.0
        %844 = vmatprep.subr.mxu0 0.0
        %845 = vmatpush2.msra.mxu0 0.0
        %846 = vmatprep.subr.mxu0 0.0
        %847 = vmatpush2.msra.mxu0 0.0
        %848 = vmatprep.subr.mxu0 0.0
        %849 = vmatpush2.msra.mxu0 0.0
        %850 = vmatprep.subr.mxu0 0.0
        %851 = vmatpush2.msra.mxu0 0.0
        %852 = vmatprep.subr.mxu0 0.0
        %853 = vmatpush2.msra.mxu0 0.0
        %854 = vmatprep.subr.mxu0 0.0
        %855 = vmatpush2.msra.mxu0 0.0
        %856 = vmatprep.subr.mxu0 0.0
        %857 = vmatpush2.msra.mxu0 0.0
        %858 = vmatprep.subr.mxu0 0.0
        %859 = vmatpush2.msra.mxu0 0.0
        %860 = vmatprep.subr.mxu0 0.0
        %861 = vmatpush2.msra.mxu0 0.0
        %862 = vmatprep.subr.mxu0 0.0
        %863 = vmatpush2.msra.mxu0 0.0
        %864 = vmatprep.mubr.f32.mxu0 0.0
        %865 = vmatmul.mubr.f32.gmra.mxu0 %v775
        %v866 = vpop.f32.mrf.mxu0
        %v867 = vadd.f32 %v799, %v866
        %v868 = vpop.f32.mrf.mxu0
        %869 = vmatprep.mubr.f32.mxu0 0.0
        %870 = vmatmul.mubr.f32.gmra.mxu0 %v776
        %v871 = vpop.f32.mrf.mxu0
        %v872 = vadd.f32 %v799, %v871
        %v873 = vpop.f32.mrf.mxu0
        %874 = vmatprep.mubr.f32.mxu0 0.0
        %875 = vmatmul.mubr.f32.gmra.mxu0 %v777
        %v876 = vpop.f32.mrf.mxu0
        %v877 = vadd.f32 %v799, %v876
        %v878 = vpop.f32.mrf.mxu0
        %879 = vmatprep.mubr.f32.mxu0 0.0
        %880 = vmatmul.mubr.f32.gmra.mxu0 %v778
        %v881 = vpop.f32.mrf.mxu0
        %v882 = vadd.f32 %v799, %v881
        %v883 = vpop.f32.mrf.mxu0
        %884 = vdwg.mxu0
        %v885 = vadd.f32 %v867, %v872
        %v886 = vadd.f32 %v885, %v877
        %v887 = vadd.f32 %v886, %v882
        %v888 = vrot.slane %v887, 4
        %v889 = vadd.f32 %v887, %v888
        %v890 = vrot.slane %v889, 2
        %v891 = vadd.f32 %v889, %v890
        %v892 = vrot.slane %v891, 1
        %v893 = vadd.f32 %v891, %v892
        %v894 = vrcp.pop 32.0
        %v895 = vmul.f32 %v893, %v894
        %v896 = vsub.f32 %v867, %v895
        %v897 = vsub.f32 %v872, %v895
        %v898 = vsub.f32 %v877, %v895
        %v899 = vsub.f32 %v882, %v895
        %v900 = vmul.f32 %v896, %v896
        %v901 = vmul.f32 %v897, %v897
        %v902 = vmul.f32 %v898, %v898
        %v903 = vmul.f32 %v899, %v899
        %v904 = vadd.f32 %v900, %v901
        %v905 = vadd.f32 %v904, %v902
        %v906 = vadd.f32 %v905, %v903
        %v907 = vrot.slane %v906, 4
        %v908 = vadd.f32 %v906, %v907
        %v909 = vrot.slane %v908, 2
        %v910 = vadd.f32 %v908, %v909
        %v911 = vrot.slane %v910, 1
        %v912 = vadd.f32 %v910, %v911
        %v913 = vmul.f32 %v912, %v894
        %v914 = vadd.f32 %v913, 1e-05
        %v915 = vrsqrt.pop %v914
        %v916 = vmul.f32 %v896, %v915
        %v917 = vmul.f32 %v897, %v915
        %v918 = vmul.f32 %v898, %v915
        %v919 = vmul.f32 %v899, %v915
        %v920 = vlaneseq
        %v921 = vshrl.u32 %v920, 7
        %v922 = vsub.s32 1, %v921
        %v923 = vrot.slane %v779, %v922
        %v924 = vmul.f32 %v916, %v923
        %v925 = vmul.f32 %v917, %v923
        %v926 = vmul.f32 %v918, %v923
        %v927 = vmul.f32 %v919, %v923
        %v928 = vlaneseq
        %v929 = vshrl.u32 %v928, 7
        %v930 = vsub.s32 2, %v929
        %v931 = vrot.slane %v779, %v930
        %v932 = vadd.f32 %v924, %v931
        %v933 = vadd.f32 %v925, %v931
        %v934 = vadd.f32 %v926, %v931
        %v935 = vadd.f32 %v927, %v931
        %v936 = vmax.f32 %v932, 0.0
        %v937 = vmax.f32 %v933, 0.0
        %v938 = vmax.f32 %v934, 0.0
        %v939 = vmax.f32 %v935, 0.0
        %v940 = vld [vmem:[%s451] sm:$0xff]
        %v941 = vld [vmem:[%s451 + $0x8] sm:$0xff]
        %v942 = vld [vmem:[%s451 + $0x10] sm:$0xff]
        %v943 = vld [vmem:[%s451 + $0x18] sm:$0xff]
        %v944 = vld [vmem:[%s451 + $0x20] sm:$0xff]
        %v945 = vld [vmem:[%s451 + $0x28] sm:$0xff]
        %v946 = vld [vmem:[%s451 + $0x30] sm:$0xff]
        %v947 = vld [vmem:[%s451 + $0x38] sm:$0xff]
        %v948 = vld [vmem:[%s451 + $0x40] sm:$0xff]
        %v949 = vld [vmem:[%s451 + $0x48] sm:$0xff]
        %v950 = vld [vmem:[%s451 + $0x50] sm:$0xff]
        %v951 = vld [vmem:[%s451 + $0x58] sm:$0xff]
        %v952 = vld [vmem:[%s451 + $0x60] sm:$0xff]
        %v953 = vld [vmem:[%s451 + $0x68] sm:$0xff]
        %v954 = vld [vmem:[%s451 + $0x70] sm:$0xff]
        %v955 = vld [vmem:[%s451 + $0x78] sm:$0xff]
        %v956 = vlaneseq
        %v957 = vshrl.u32 %v956, 7
        %v958 = vsub.s32 3, %v957
        %v959 = vrot.slane %v779, %v958
        %960 = vmatprep.subr.mxu0 0.0
        %961 = vmatpush1.msra.mxu0 %v955
        %962 = vmatprep.subr.mxu0 0.0
        %963 = vmatpush1.msra.mxu0 %v954
        %964 = vmatprep.subr.mxu0 0.0
        %965 = vmatpush1.msra.mxu0 %v953
        %966 = vmatprep.subr.mxu0 0.0
        %967 = vmatpush1.msra.mxu0 %v952
        %968 = vmatprep.subr.mxu0 0.0
        %969 = vmatpush1.msra.mxu0 %v951
        %970 = vmatprep.subr.mxu0 0.0
        %971 = vmatpush1.msra.mxu0 %v950
        %972 = vmatprep.subr.mxu0 0.0
        %973 = vmatpush1.msra.mxu0 %v949
        %974 = vmatprep.subr.mxu0 0.0
        %975 = vmatpush1.msra.mxu0 %v948
        %976 = vmatprep.subr.mxu0 0.0
        %977 = vmatpush1.msra.mxu0 %v947
        %978 = vmatprep.subr.mxu0 0.0
        %979 = vmatpush1.msra.mxu0 %v946
        %980 = vmatprep.subr.mxu0 0.0
        %981 = vmatpush1.msra.mxu0 %v945
        %982 = vmatprep.subr.mxu0 0.0
        %983 = vmatpush1.msra.mxu0 %v944
        %984 = vmatprep.subr.mxu0 0.0
        %985 = vmatpush1.msra.mxu0 %v943
        %986 = vmatprep.subr.mxu0 0.0
        %987 = vmatpush1.msra.mxu0 %v942
        %988 = vmatprep.subr.mxu0 0.0
        %989 = vmatpush1.msra.mxu0 %v941
        %990 = vmatprep.subr.mxu0 0.0
        %991 = vmatpush1.msra.mxu0 %v940
        %992 = vmatprep.subr.mxu0 0.0
        %993 = vmatpush2.msra.mxu0 0.0
        %994 = vmatprep.subr.mxu0 0.0
        %995 = vmatpush2.msra.mxu0 0.0
        %996 = vmatprep.subr.mxu0 0.0
        %997 = vmatpush2.msra.mxu0 0.0
        %998 = vmatprep.subr.mxu0 0.0
        %999 = vmatpush2.msra.mxu0 0.0
        %1000 = vmatprep.subr.mxu0 0.0
        %1001 = vmatpush2.msra.mxu0 0.0
        %1002 = vmatprep.subr.mxu0 0.0
        %1003 = vmatpush2.msra.mxu0 0.0
        %1004 = vmatprep.subr.mxu0 0.0
        %1005 = vmatpush2.msra.mxu0 0.0
        %1006 = vmatprep.subr.mxu0 0.0
        %1007 = vmatpush2.msra.mxu0 0.0
        %1008 = vmatprep.subr.mxu0 0.0
        %1009 = vmatpush2.msra.mxu0 0.0
        %1010 = vmatprep.subr.mxu0 0.0
        %1011 = vmatpush2.msra.mxu0 0.0
        %1012 = vmatprep.subr.mxu0 0.0
        %1013 = vmatpush2.msra.mxu0 0.0
        %1014 = vmatprep.subr.mxu0 0.0
        %1015 = vmatpush2.msra.mxu0 0.0
        %1016 = vmatprep.subr.mxu0 0.0
        %1017 = vmatpush2.msra.mxu0 0.0
        %1018 = vmatprep.subr.mxu0 0.0
        %1019 = vmatpush2.msra.mxu0 0.0
        %1020 = vmatprep.subr.mxu0 0.0
        %1021 = vmatpush2.msra.mxu0 0.0
        %1022 = vmatprep.subr.mxu0 0.0
        %1023 = vmatpush2.msra.mxu0 0.0
        %1024 = vmatprep.mubr.f32.mxu0 0.0
        %1025 = vmatmul.mubr.f32.gmra.mxu0 %v936
        %v1026 = vpop.f32.mrf.mxu0
        %v1027 = vadd.f32 %v959, %v1026
        %v1028 = vpop.f32.mrf.mxu0
        %1029 = vmatprep.mubr.f32.mxu0 0.0
        %1030 = vmatmul.mubr.f32.gmra.mxu0 %v937
        %v1031 = vpop.f32.mrf.mxu0
        %v1032 = vadd.f32 %v959, %v1031
        %v1033 = vpop.f32.mrf.mxu0
        %1034 = vmatprep.mubr.f32.mxu0 0.0
        %1035 = vmatmul.mubr.f32.gmra.mxu0 %v938
        %v1036 = vpop.f32.mrf.mxu0
        %v1037 = vadd.f32 %v959, %v1036
        %v1038 = vpop.f32.mrf.mxu0
        %1039 = vmatprep.mubr.f32.mxu0 0.0
        %1040 = vmatmul.mubr.f32.gmra.mxu0 %v939
        %v1041 = vpop.f32.mrf.mxu0
        %v1042 = vadd.f32 %v959, %v1041
        %v1043 = vpop.f32.mrf.mxu0
        %1044 = vdwg.mxu0
        %v1045 = vadd.f32 %v1027, %v1032
        %v1046 = vadd.f32 %v1045, %v1037
        %v1047 = vadd.f32 %v1046, %v1042
        %v1048 = vrot.slane %v1047, 4
        %v1049 = vadd.f32 %v1047, %v1048
        %v1050 = vrot.slane %v1049, 2
        %v1051 = vadd.f32 %v1049, %v1050
        %v1052 = vrot.slane %v1051, 1
        %v1053 = vadd.f32 %v1051, %v1052
        %v1054 = vmul.f32 %v1053, %v894
        %v1055 = vsub.f32 %v1027, %v1054
        %v1056 = vsub.f32 %v1032, %v1054
        %v1057 = vsub.f32 %v1037, %v1054
        %v1058 = vsub.f32 %v1042, %v1054
        %v1059 = vmul.f32 %v1055, %v1055
        %v1060 = vmul.f32 %v1056, %v1056
        %v1061 = vmul.f32 %v1057, %v1057
        %v1062 = vmul.f32 %v1058, %v1058
        %v1063 = vadd.f32 %v1059, %v1060
        %v1064 = vadd.f32 %v1063, %v1061
        %v1065 = vadd.f32 %v1064, %v1062
        %v1066 = vrot.slane %v1065, 4
        %v1067 = vadd.f32 %v1065, %v1066
        %v1068 = vrot.slane %v1067, 2
        %v1069 = vadd.f32 %v1067, %v1068
        %v1070 = vrot.slane %v1069, 1
        %v1071 = vadd.f32 %v1069, %v1070
        %v1072 = vmul.f32 %v1071, %v894
        %v1073 = vadd.f32 %v1072, 1e-05
        %v1074 = vrsqrt.pop %v1073
        %v1075 = vmul.f32 %v1055, %v1074
        %v1076 = vmul.f32 %v1056, %v1074
        %v1077 = vmul.f32 %v1057, %v1074
        %v1078 = vmul.f32 %v1058, %v1074
        %v1079 = vlaneseq
        %v1080 = vshrl.u32 %v1079, 7
        %v1081 = vsub.s32 4, %v1080
        %v1082 = vrot.slane %v779, %v1081
        %v1083 = vmul.f32 %v1075, %v1082
        %v1084 = vmul.f32 %v1076, %v1082
        %v1085 = vmul.f32 %v1077, %v1082
        %v1086 = vmul.f32 %v1078, %v1082
        %v1087 = vlaneseq
        %v1088 = vshrl.u32 %v1087, 7
        %v1089 = vsub.s32 5, %v1088
        %v1090 = vrot.slane %v779, %v1089
        %v1091 = vadd.f32 %v1083, %v1090
        %v1092 = vadd.f32 %v1084, %v1090
        %v1093 = vadd.f32 %v1085, %v1090
        %v1094 = vadd.f32 %v1086, %v1090
        %p1095 = scmp.eq.s32.totalorder %s34, 1
        %p1096 = scmp.ne.s32.totalorder %s34, 1
        // Predicated region
        $region81: #{tpu_custom_call.1} parent=63 // pred_check
          %p1097 = pneg %p1096
        $region82: #{tpu_custom_call.1} parent=63 // pred_check_branch
          %1099 = sbr.rel (%p1097) target = $region84
        $region83: #{tpu_custom_call.1} parent=63 // pred_region
          %v1100 = vmax.f32 %v1091, 0.0
          %v1101 = vmax.f32 %v1092, 0.0
          %v1102 = vmax.f32 %v1093, 0.0
          %v1103 = vmax.f32 %v1094, 0.0
          %1104 = vst [vmem:[#allocation10] sm:$0xff] %v1100
          %1105 = vst [vmem:[#allocation10 + $0x8] sm:$0xff] %v1101
          %1106 = vst [vmem:[#allocation10 + $0x10] sm:$0xff] %v1102
          %1107 = vst [vmem:[#allocation10 + $0x18] sm:$0xff] %v1103
        $region84: #{tpu_custom_call.1} parent=63 // pred_fallthru
          _
        // Predicated region
        $region85: #{tpu_custom_call.1} parent=63 // pred_check
          %p1108 = pneg %p1095
        $region86: #{tpu_custom_call.1} parent=63 // pred_check_branch
          %1110 = sbr.rel (%p1108) target = $region88
        $region87: #{tpu_custom_call.1} parent=63 // pred_region
          %1111 = vst [vmem:[#allocation10] sm:$0xff] %v1091
          %1112 = vst [vmem:[#allocation10 + $0x8] sm:$0xff] %v1092
          %1113 = vst [vmem:[#allocation10 + $0x10] sm:$0xff] %v1093
          %1114 = vst [vmem:[#allocation10 + $0x18] sm:$0xff] %v1094
          %v1115 = vld [vmem:[%s8] sm:$0xf]
          %v1117 = vsel %vm574, %v1115, 0
          %1119 = vmatprep.subr.mxu0 0.0
          %1120 = vmatpush1.msra.mxu0 0.0
          %1121 = vmatprep.subr.mxu0 0.0
          %1122 = vmatpush1.msra.mxu0 0.0
          %1123 = vmatprep.subr.mxu0 0.0
          %1124 = vmatpush1.msra.mxu0 0.0
          %1125 = vmatprep.subr.mxu0 0.0
          %1126 = vmatpush1.msra.mxu0 0.0
          %1127 = vmatprep.subr.mxu0 0.0
          %1128 = vmatpush1.msra.mxu0 0.0
          %1129 = vmatprep.subr.mxu0 0.0
          %1130 = vmatpush1.msra.mxu0 0.0
          %1131 = vmatprep.subr.mxu0 0.0
          %1132 = vmatpush1.msra.mxu0 0.0
          %1133 = vmatprep.subr.mxu0 0.0
          %1134 = vmatpush1.msra.mxu0 0.0
          %1135 = vmatprep.subr.mxu0 0.0
          %1136 = vmatpush1.msra.mxu0 0.0
          %1137 = vmatprep.subr.mxu0 0.0
          %1138 = vmatpush1.msra.mxu0 0.0
          %1139 = vmatprep.subr.mxu0 0.0
          %1140 = vmatpush1.msra.mxu0 0.0
          %1141 = vmatprep.subr.mxu0 0.0
          %1142 = vmatpush1.msra.mxu0 0.0
          %1143 = vmatprep.subr.mxu0 0.0
          %1144 = vmatpush1.msra.mxu0 %v1094
          %1145 = vmatprep.subr.mxu0 0.0
          %1146 = vmatpush1.msra.mxu0 %v1093
          %1147 = vmatprep.subr.mxu0 0.0
          %1148 = vmatpush1.msra.mxu0 %v1092
          %1149 = vmatprep.subr.mxu0 0.0
          %1150 = vmatpush1.msra.mxu0 %v1091
          %1151 = vmatprep.subr.mxu0 0.0
          %1152 = vmatpush2.msra.mxu0 0.0
          %1153 = vmatprep.subr.mxu0 0.0
          %1154 = vmatpush2.msra.mxu0 0.0
          %1155 = vmatprep.subr.mxu0 0.0
          %1156 = vmatpush2.msra.mxu0 0.0
          %1157 = vmatprep.subr.mxu0 0.0
          %1158 = vmatpush2.msra.mxu0 0.0
          %1159 = vmatprep.subr.mxu0 0.0
          %1160 = vmatpush2.msra.mxu0 0.0
          %1161 = vmatprep.subr.mxu0 0.0
          %1162 = vmatpush2.msra.mxu0 0.0
          %1163 = vmatprep.subr.mxu0 0.0
          %1164 = vmatpush2.msra.mxu0 0.0
          %1165 = vmatprep.subr.mxu0 0.0
          %1166 = vmatpush2.msra.mxu0 0.0
          %1167 = vmatprep.subr.mxu0 0.0
          %1168 = vmatpush2.msra.mxu0 0.0
          %1169 = vmatprep.subr.mxu0 0.0
          %1170 = vmatpush2.msra.mxu0 0.0
          %1171 = vmatprep.subr.mxu0 0.0
          %1172 = vmatpush2.msra.mxu0 0.0
          %1173 = vmatprep.subr.mxu0 0.0
          %1174 = vmatpush2.msra.mxu0 0.0
          %1175 = vmatprep.subr.mxu0 0.0
          %1176 = vmatpush2.msra.mxu0 0.0
          %1177 = vmatprep.subr.mxu0 0.0
          %1178 = vmatpush2.msra.mxu0 0.0
          %1179 = vmatprep.subr.mxu0 0.0
          %1180 = vmatpush2.msra.mxu0 0.0
          %1181 = vmatprep.subr.mxu0 0.0
          %1182 = vmatpush2.msra.mxu0 0.0
          %1183 = vmatprep.mubr.f32.mxu0 0.0
          %1184 = vmatmul.mubr.f32.gmra.mxu0 %v1117
          %v1185 = vpop.f32.mrf.mxu0
          %v1186 = vadd.f32 0.0, %v1185
          %v1187 = vpop.f32.mrf.mxu0
          %1188 = vdwg.mxu0
          %v1189 = vld [vmem:[%s9] sm:$0xff]
          %v1190 = vld [vmem:[%s9 + $0x8] sm:$0xff]
          %v1191 = vld [vmem:[%s9 + $0x10] sm:$0xff]
          %v1192 = vld [vmem:[%s9 + $0x18] sm:$0xff]
          %v1193 = vld [vmem:[%s9 + $0x20] sm:$0xff]
          %v1194 = vld [vmem:[%s9 + $0x28] sm:$0xff]
          %v1195 = vld [vmem:[%s9 + $0x30] sm:$0xff]
          %v1196 = vld [vmem:[%s9 + $0x38] sm:$0xff]
          %v1197 = vld [vmem:[%s9 + $0x40] sm:$0xff]
          %v1198 = vld [vmem:[%s9 + $0x48] sm:$0xff]
          %v1199 = vld [vmem:[%s9 + $0x50] sm:$0xff]
          %v1200 = vld [vmem:[%s9 + $0x58] sm:$0xff]
          %v1201 = vld [vmem:[%s9 + $0x60] sm:$0xff]
          %v1202 = vld [vmem:[%s9 + $0x68] sm:$0xff]
          %v1203 = vld [vmem:[%s9 + $0x70] sm:$0xff]
          %v1204 = vld [vmem:[%s9 + $0x78] sm:$0xff]
          %v1205 = vld [vmem:[#allocation2] sm:$0x1]
          %v1207 = vlaneseq
          %v1208 = vshrl.u32 %v1207, 7
          %v1209 = vsub.s32 0, %v1208
          %v1210 = vrot.slane %v1205, %v1209
          %1212 = vmatprep.subr.mxu0 0.0
          %1213 = vmatpush1.msra.mxu0 %v1204
          %1214 = vmatprep.subr.mxu0 0.0
          %1215 = vmatpush1.msra.mxu0 %v1203
          %1216 = vmatprep.subr.mxu0 0.0
          %1217 = vmatpush1.msra.mxu0 %v1202
          %1218 = vmatprep.subr.mxu0 0.0
          %1219 = vmatpush1.msra.mxu0 %v1201
          %1220 = vmatprep.subr.mxu0 0.0
          %1221 = vmatpush1.msra.mxu0 %v1200
          %1222 = vmatprep.subr.mxu0 0.0
          %1223 = vmatpush1.msra.mxu0 %v1199
          %1224 = vmatprep.subr.mxu0 0.0
          %1225 = vmatpush1.msra.mxu0 %v1198
          %1226 = vmatprep.subr.mxu0 0.0
          %1227 = vmatpush1.msra.mxu0 %v1197
          %1228 = vmatprep.subr.mxu0 0.0
          %1229 = vmatpush1.msra.mxu0 %v1196
          %1230 = vmatprep.subr.mxu0 0.0
          %1231 = vmatpush1.msra.mxu0 %v1195
          %1232 = vmatprep.subr.mxu0 0.0
          %1233 = vmatpush1.msra.mxu0 %v1194
          %1234 = vmatprep.subr.mxu0 0.0
          %1235 = vmatpush1.msra.mxu0 %v1193
          %1236 = vmatprep.subr.mxu0 0.0
          %1237 = vmatpush1.msra.mxu0 %v1192
          %1238 = vmatprep.subr.mxu0 0.0
          %1239 = vmatpush1.msra.mxu0 %v1191
          %1240 = vmatprep.subr.mxu0 0.0
          %1241 = vmatpush1.msra.mxu0 %v1190
          %1242 = vmatprep.subr.mxu0 0.0
          %1243 = vmatpush1.msra.mxu0 %v1189
          %1244 = vmatprep.subr.mxu0 0.0
          %1245 = vmatpush2.msra.mxu0 0.0
          %1246 = vmatprep.subr.mxu0 0.0
          %1247 = vmatpush2.msra.mxu0 0.0
          %1248 = vmatprep.subr.mxu0 0.0
          %1249 = vmatpush2.msra.mxu0 0.0
          %1250 = vmatprep.subr.mxu0 0.0
          %1251 = vmatpush2.msra.mxu0 0.0
          %1252 = vmatprep.subr.mxu0 0.0
          %1253 = vmatpush2.msra.mxu0 0.0
          %1254 = vmatprep.subr.mxu0 0.0
          %1255 = vmatpush2.msra.mxu0 0.0
          %1256 = vmatprep.subr.mxu0 0.0
          %1257 = vmatpush2.msra.mxu0 0.0
          %1258 = vmatprep.subr.mxu0 0.0
          %1259 = vmatpush2.msra.mxu0 0.0
          %1260 = vmatprep.subr.mxu0 0.0
          %1261 = vmatpush2.msra.mxu0 0.0
          %1262 = vmatprep.subr.mxu0 0.0
          %1263 = vmatpush2.msra.mxu0 0.0
          %1264 = vmatprep.subr.mxu0 0.0
          %1265 = vmatpush2.msra.mxu0 0.0
          %1266 = vmatprep.subr.mxu0 0.0
          %1267 = vmatpush2.msra.mxu0 0.0
          %1268 = vmatprep.subr.mxu0 0.0
          %1269 = vmatpush2.msra.mxu0 0.0
          %1270 = vmatprep.subr.mxu0 0.0
          %1271 = vmatpush2.msra.mxu0 0.0
          %1272 = vmatprep.subr.mxu0 0.0
          %1273 = vmatpush2.msra.mxu0 0.0
          %1274 = vmatprep.subr.mxu0 0.0
          %1275 = vmatpush2.msra.mxu0 0.0
          %1276 = vmatprep.mubr.f32.mxu0 0.0
          %1277 = vmatmul.mubr.f32.gmra.mxu0 %v1186
          %v1278 = vpop.f32.mrf.mxu0
          %v1279 = vadd.f32 %v1210, %v1278
          %v1280 = vpop.f32.mrf.mxu0
          %1281 = vdwg.mxu0
          %vm1282 = vcmask 3072
          %1283 = vst.msk [vmem:[%s12] sm:$0xf] %vm1282, %v1279
        $region88: #{tpu_custom_call.1} parent=63 // pred_fallthru
          _
        // Predicated region
        $region89: #{tpu_custom_call.1} parent=63 // pred_check
          %p1284 = pneg %p298
        $region90: #{tpu_custom_call.1} parent=63 // pred_check_branch
          %1286 = sbr.rel (%p1284) target = $region92
        $region91: #{tpu_custom_call.1} parent=63 // pred_region
          %s1288 = ssub.s32 512, 512
          %1289 = vsyncadd [#allocation5], %s1288
          %s1290 = sshll.u32 [#allocation10], 4
          %s1291 = int_to_ptr.vmem [resolvable:$true] %s1290
          %1296 = dma.vmem_to_hbm [thread:$0]  %s1291, 512, %s11, [#allocation5], 128, 128, 8
        $region92: #{tpu_custom_call.1} parent=63 // pred_fallthru
          _
        // Predicated region
        $region93: #{tpu_custom_call.1} parent=63 // pred_check
          %p1297 = pneg %p319
        $region94: #{tpu_custom_call.1} parent=63 // pred_check_branch
          %1299 = sbr.rel (%p1297) target = $region96
        $region95: #{tpu_custom_call.1} parent=63 // pred_region
          _
        $region96: #{tpu_custom_call.1} parent=63 // pred_fallthru
          _
        // Predicated region
        $region97: #{tpu_custom_call.1} parent=63 // pred_check
          %p1300 = pneg %p298
        $region98: #{tpu_custom_call.1} parent=63 // pred_check_branch
          %1302 = sbr.rel (%p1300) target = $region100
        $region99: #{tpu_custom_call.1} parent=63 // pred_region
          %1303 = dma.done [#allocation5], 512
        $region100: #{tpu_custom_call.1} parent=63 // pred_fallthru
          _
        // Predicated region
        $region101: #{tpu_custom_call.1} parent=63 // pred_check
          %p1304 = pneg %p319
        $region102: #{tpu_custom_call.1} parent=63 // pred_check_branch
          %1306 = sbr.rel (%p1304) target = $region104
        $region103: #{tpu_custom_call.1} parent=63 // pred_region
          _
        $region104: #{tpu_custom_call.1} parent=63 // pred_fallthru
          _
      $region64: #{tpu_custom_call.1} parent=5 // pred_fallthru
        _
      %p1307 = scmp.le.s32.totalorder 2, %s29
      // Predicated region
      $region105: #{tpu_custom_call.1} parent=5 // pred_check
        %p1308 = pneg %p1307
      $region106: #{tpu_custom_call.1} parent=5 // pred_check_branch
        %1310 = sbr.rel (%p1308) target = $region108
      $region107: #{tpu_custom_call.1} parent=5 // pred_region
        %s1311 = ssub.s32 %s29, 2
      $region108: #{tpu_custom_call.1} parent=5 // pred_fallthru
        _
    $region6: #{tpu_custom_call.1} parent=1 // loop_footer
      %s33 = sadd.s32 1, %s29
    $region7: #{tpu_custom_call.1} parent=1 // loop_footer_branch
      %28 = sbr.rel target = $region3
    $region8: #{tpu_custom_call.1} parent=1 // loop_exit
      _
    %1312 = vsyncpa [#allocation4], 1
    %s1313 = scalar_lea.sflag [#allocation4], 1
    %1314 = vsyncpa %s1313, 1
    %1315 = vsyncpa [#allocation9], 1
    %s1316 = scalar_lea.sflag [#allocation9], 1
    %1317 = vsyncpa %s1316, 1
    %1318 = vsyncpa [#allocation5], 1
    %s1319 = scalar_lea.sflag [#allocation5], 1
    %1320 = vsyncpa %s1319, 1
    %1321 = vsyncpa [#allocation6], 1
    %s1322 = scalar_lea.sflag [#allocation6], 1
    %1323 = vsyncpa %s1322, 1

</llo_original>
